<compile_context>
chip_gen: v7x
topology: tpu7x:2x2x1
jax: 0.10.0
libtpu: 0.0.40
codegen_flags: <defaults>
</compile_context>

<pallas_src>
import jax
import jax.numpy as jnp
from jax import lax
from jax.experimental import pallas as pl
from jax.experimental.pallas import tpu as pltpu


def _leaky(x, slope=0.2):
    # LeakyReLU(0.2): max(x, 0.2*x) is exact for both signs.
    return jnp.maximum(x, slope * x)


# ----------------------------- fused Pallas kernel ---------------------------

def _make_kernel(B, Ho, Wo, Cin, Cout):
    """Build the fused DownBlockComp kernel for a batch block of B images."""
    M = B * Ho * Wo
    bf16, f32 = jnp.bfloat16, jnp.float32

    def kernel(x_ref, w1_ref, w2_ref, w3_ref, o_ref, m1s_ref):
        # x_ref  : (B, Ho+1, Wo+1, 4*Cin) bf16  phase-packed padded input,
        #          last dim ordered (row_phase, col_phase, cin)
        # w1_ref : (16*Cin, Cout) bf16   main[0] 4x4/s2 conv as im2col matrix
        # w2_ref : (9*Cout, Cout) bf16   main[2] 3x3/s1 conv as im2col matrix
        # w3_ref : (Cin, Cout)    bf16   direct-branch 1x1 conv
        # o_ref  : (Cout, M)      f32    channels-major, lane-dense output
        # m1s_ref: (B, Ho+2, Wo+2, Cout) bf16 scratch for LeakyReLU(conv1)

        # ---- main[0]: 4x4 / stride-2 / pad-1 conv as ONE matmul (K=16*Cin) ----
        # Window (qi, qj) of the phase-packed input carries the 4 taps
        # (ki, kj) = (2*qi + pi, 2*qj + pj); concatenating the 4 windows along
        # channels builds the (M, 16*Cin) im2col operand in one shot.
        wins = [x_ref[:, qi:qi + Ho, qj:qj + Wo, :]
                for qi in range(2) for qj in range(2)]
        a1 = jnp.concatenate(wins, axis=-1).reshape(M, 16 * Cin)
        m1 = _leaky(jnp.dot(a1, w1_ref[...], preferred_element_type=f32))

        # Stage LeakyReLU(conv1) in VMEM with a zero border for the 3x3 conv.
        # Only the border is zeroed (tiny), and it is re-zeroed every step so the
        # batch grid axis can stay "parallel" on megacore parts; the interior is
        # fully overwritten each step.
        m1s_ref[:, 0:1, :, :] = jnp.zeros((B, 1, Wo + 2, Cout), bf16)
        m1s_ref[:, Ho + 1:Ho + 2, :, :] = jnp.zeros((B, 1, Wo + 2, Cout), bf16)
        m1s_ref[:, :, 0:1, :] = jnp.zeros((B, Ho + 2, 1, Cout), bf16)
        m1s_ref[:, :, Wo + 1:Wo + 2, :] = jnp.zeros((B, Ho + 2, 1, Cout), bf16)
        m1s_ref[:, 1:1 + Ho, 1:1 + Wo, :] = (
            m1.reshape(B, Ho, Wo, Cout).astype(bf16))

        # ---- main[2]: 3x3 / stride-1 / pad-1 conv as ONE matmul (K=9*Cout) ----
        taps = [m1s_ref[:, di:di + Ho, dj:dj + Wo, :]
                for di in range(3) for dj in range(3)]
        a2 = jnp.concatenate(taps, axis=-1).reshape(M, 9 * Cout)
        main = _leaky(jnp.dot(a2, w2_ref[...], preferred_element_type=f32))

        # ---- direct: AvgPool2d(2,2) + Conv 1x1 --------------------------------
        # The four 2x2-pool taps of the *unpadded* input are four phase windows
        # of the padded input (coordinates shifted by the +1 padding).
        x = x_ref
        pooled = (x[:, 0:Ho, 0:Wo, 3 * Cin:4 * Cin].astype(f32)
                  + x[:, 0:Ho, 1:1 + Wo, 2 * Cin:3 * Cin].astype(f32)
                  + x[:, 1:1 + Ho, 0:Wo, 1 * Cin:2 * Cin].astype(f32)
                  + x[:, 1:1 + Ho, 1:1 + Wo, 0:Cin].astype(f32)) * 0.25
        direct = _leaky(jnp.dot(pooled.reshape(M, Cin).astype(bf16),
                                w3_ref[...], preferred_element_type=f32))

        out = (main + direct) * 0.5                    # (M, Cout) f32
        # Channels-major store: the lane dim is M (>=128), not Cout.
        o_ref[...] = out.T.astype(o_ref.dtype)

    return kernel


# --------------------------------- wrapper -----------------------------------

def down_block_comp(x_nchw, w1, w2, w3, *, batch_block=None):
    """Forward of DownBlockComp. x_nchw: (N, Cin, H, W) f32; weights OIHW f32."""
    N, Cin, H, W = x_nchw.shape
    Cout = w1.shape[0]
    assert H % 2 == 0 and W % 2 == 0
    Ho, Wo = H // 2, W // 2
    Hp, Wp = Ho + 1, Wo + 1                     # phase-plane extent of the padded input

    if batch_block is None:
        # Target >= 256 matmul rows per grid step, but never exceed the batch.
        batch_block = min(N, max(1, pl.cdiv(256, Ho * Wo)))
    while N % batch_block:
        batch_block -= 1
    B = batch_block
    steps = N // B

    # Input: pad by 1 (conv1's padding) and pack the 2x2 stride phases into the
    # channel axis -> (N, Hp, Wp, 4*Cin), last dim ordered (row_phase, col_phase, c).
    # Single pad + single transpose, shipped as bf16.
    xp = jnp.pad(x_nchw, ((0, 0), (0, 0), (1, 1), (1, 1)))
    xph = (xp.reshape(N, Cin, Hp, 2, Wp, 2)
             .transpose(0, 2, 4, 3, 5, 1)       # (N, Hp, Wp, ph_r, ph_c, Cin)
             .reshape(N, Hp, Wp, 4 * Cin)
             .astype(jnp.bfloat16))

    # Weights -> im2col matrices (bf16). w1's K order must match the kernel's
    # concat order (qi, qj, pi, pj, c), where (ki, kj) = (2*qi + pi, 2*qj + pj).
    w1m = (w1.transpose(2, 3, 1, 0)             # (kh, kw, Cin, Cout)
             .reshape(2, 2, 2, 2, Cin, Cout)    # (qi, pi, qj, pj, Cin, Cout)
             .transpose(0, 2, 1, 3, 4, 5)       # (qi, qj, pi, pj, Cin, Cout)
             .reshape(16 * Cin, Cout)
             .astype(jnp.bfloat16))
    w2m = (w2.transpose(2, 3, 1, 0)             # (kh, kw, Cout_in, Cout)
             .reshape(9 * Cout, Cout)
             .astype(jnp.bfloat16))
    w3m = w3.reshape(Cout, Cin).T.astype(jnp.bfloat16)

    Mstep = B * Ho * Wo
    flops = 2 * N * Ho * Wo * Cout * (16 * Cin + 9 * Cout + Cin)
    bytes_accessed = (xph.size * 2 + w1m.size * 2 + w2m.size * 2 + w3m.size * 2
                      + N * Cout * Ho * Wo * 4)

    kernel = _make_kernel(B, Ho, Wo, Cin, Cout)
    out = pl.pallas_call(
        kernel,
        out_shape=jax.ShapeDtypeStruct((Cout, N * Ho * Wo), jnp.float32),
        grid=(steps,),
        in_specs=[
            pl.BlockSpec((B, Hp, Wp, 4 * Cin), lambda s: (s, 0, 0, 0)),
            pl.BlockSpec((16 * Cin, Cout), lambda s: (0, 0)),
            pl.BlockSpec((9 * Cout, Cout), lambda s: (0, 0)),
            pl.BlockSpec((Cin, Cout), lambda s: (0, 0)),
        ],
        out_specs=pl.BlockSpec((Cout, Mstep), lambda s: (0, s)),
        scratch_shapes=[pltpu.VMEM((B, Ho + 2, Wo + 2, Cout), jnp.bfloat16)],
        compiler_params=pltpu.CompilerParams(
            dimension_semantics=("parallel",)),
        cost_estimate=pl.CostEstimate(flops=flops, transcendentals=0,
                                      bytes_accessed=bytes_accessed),
    )(xph, w1m, w2m, w3m)

    # (Cout, N*Ho*Wo) with column order (n, h, w) -> NCHW.
    return out.reshape(Cout, N, Ho, Wo).transpose(1, 0, 2, 3)


# --------------------------- parameters / reference ---------------------------

def spectral_normalize(w, key, n_iter=1, eps=1e-12):
    """One-step power-iteration spectral norm (nn.utils.spectral_norm semantics
    with a deterministic synthetic `u`), applied once at setup."""
    cout = w.shape[0]
    wmat = w.reshape(cout, -1)
    u = jax.random.normal(key, (cout,), dtype=w.dtype)
    u = u / (jnp.linalg.norm(u) + eps)
    v = None
    for _ in range(n_iter):
        v = wmat.T @ u
        v = v / (jnp.linalg.norm(v) + eps)
        u = wmat @ v
        u = u / (jnp.linalg.norm(u) + eps)
    sigma = u @ (wmat @ v)
    return w / sigma


def init_params(key, in_planes, out_planes):
    k1, k2, k3, s1, s2, s3 = jax.random.split(key, 6)

    def _init(k, shape):
        fan_in = shape[1] * shape[2] * shape[3]
        bound = 1.0 / jnp.sqrt(fan_in)
        return jax.random.uniform(k, shape, jnp.float32, -bound, bound)

    w1 = spectral_normalize(_init(k1, (out_planes, in_planes, 4, 4)), s1)
    w2 = spectral_normalize(_init(k2, (out_planes, out_planes, 3, 3)), s2)
    w3 = spectral_normalize(_init(k3, (out_planes, in_planes, 1, 1)), s3)
    return w1, w2, w3


def _reference(x_nchw, w1, w2, w3):
    """Independent plain-JAX (f32, lax.conv) reference of DownBlockComp."""
    dn = ("NCHW", "OIHW", "NCHW")
    leaky = lambda t: jnp.maximum(t, 0.2 * t)
    h = lax.conv_general_dilated(x_nchw, w1, window_strides=(2, 2),
                                 padding=((1, 1), (1, 1)), dimension_numbers=dn)
    h = leaky(h)
    h = lax.conv_general_dilated(h, w2, window_strides=(1, 1),
                                 padding=((1, 1), (1, 1)), dimension_numbers=dn)
    main = leaky(h)
    N, cin, H, W = x_nchw.shape
    pooled = x_nchw.reshape(N, cin, H // 2, 2, W // 2, 2).mean(axis=(3, 5))
    d = lax.conv_general_dilated(pooled, w3, window_strides=(1, 1),
                                 padding=((0, 0), (0, 0)), dimension_numbers=dn)
    direct = leaky(d)
    return (main + direct) * 0.5


# ----------------------------------- main -------------------------------------

if __name__ == "__main__":
    key = jax.random.PRNGKey(0)
    kx, kp = jax.random.split(key)

    N, Cin, Cout, H, W = 2, 4, 8, 16, 16
    x = jax.random.normal(kx, (N, Cin, H, W), dtype=jnp.float32)
    w1, w2, w3 = init_params(kp, Cin, Cout)

    fwd = jax.jit(down_block_comp)
    out = jax.block_until_ready(fwd(x, w1, w2, w3))
    assert out.shape == (N, Cout, H // 2, W // 2), out.shape

    ref = jax.block_until_ready(_reference(x, w1, w2, w3))
    max_err = float(jnp.max(jnp.abs(out - ref)))
    # bf16 MXU operands / bf16 staged intermediate vs. a full-f32 reference.
    assert jnp.allclose(out, ref, rtol=5e-2, atol=5e-2), max_err

    print("KERNEL_OK")
</pallas_src>

<mosaic_0001>
module attributes {stable_mosaic.version = 11 : i64} {
  func.func @kernel(%arg0: i32, %arg1: memref<2x9x9x16xbf16, #tpu.memory_space<vmem>>, %arg2: memref<64x8xbf16, #tpu.memory_space<vmem>>, %arg3: memref<72x8xbf16, #tpu.memory_space<vmem>>, %arg4: memref<4x8xbf16, #tpu.memory_space<vmem>>, %arg5: memref<8x128xf32, #tpu.memory_space<vmem>>, %arg6: memref<2x10x10x8xbf16, #tpu.memory_space<vmem>>) attributes {dimension_semantics = [#tpu.dimension_semantics<parallel>], iteration_bounds = array<i64: 1>, scalar_prefetch = 0 : i64, scratch_operands = 1 : i64, tpu.core_type = #tpu.core_type<tc>, window_params = [{transform_indices = @transform_0, window_bounds = array<i64: 2, 9, 9, 16>}, {pipeline_mode = #tpu.pipeline_mode<synchronous>, transform_indices = @transform_1, window_bounds = array<i64: 64, 8>}, {pipeline_mode = #tpu.pipeline_mode<synchronous>, transform_indices = @transform_2, window_bounds = array<i64: 72, 8>}, {pipeline_mode = #tpu.pipeline_mode<synchronous>, transform_indices = @transform_3, window_bounds = array<i64: 4, 8>}, {transform_indices = @transform_4, window_bounds = array<i64: 8, 128>}]} {
    %c0 = arith.constant 0 : index
    %c0_0 = arith.constant 0 : index
    %c0_1 = arith.constant 0 : index
    %c0_2 = arith.constant 0 : index
    %0 = vector.load %arg1[%c0, %c0_0, %c0_1, %c0_2] : memref<2x9x9x16xbf16, #tpu.memory_space<vmem>>, vector<2x8x8x16xbf16>
    %c0_3 = arith.constant 0 : index
    %c0_4 = arith.constant 0 : index
    %c1 = arith.constant 1 : index
    %c0_5 = arith.constant 0 : index
    %1 = vector.load %arg1[%c0_3, %c0_4, %c1, %c0_5] : memref<2x9x9x16xbf16, #tpu.memory_space<vmem>>, vector<2x8x8x16xbf16>
    %c0_6 = arith.constant 0 : index
    %c1_7 = arith.constant 1 : index
    %c0_8 = arith.constant 0 : index
    %c0_9 = arith.constant 0 : index
    %2 = vector.load %arg1[%c0_6, %c1_7, %c0_8, %c0_9] : memref<2x9x9x16xbf16, #tpu.memory_space<vmem>>, vector<2x8x8x16xbf16>
    %c0_10 = arith.constant 0 : index
    %c1_11 = arith.constant 1 : index
    %c1_12 = arith.constant 1 : index
    %c0_13 = arith.constant 0 : index
    %3 = vector.load %arg1[%c0_10, %c1_11, %c1_12, %c0_13] : memref<2x9x9x16xbf16, #tpu.memory_space<vmem>>, vector<2x8x8x16xbf16>
    %4 = tpu.concatenate %0, %1, %2, %3 in 3 : vector<2x8x8x16xbf16>, vector<2x8x8x16xbf16>, vector<2x8x8x16xbf16>, vector<2x8x8x16xbf16> -> vector<2x8x8x64xbf16>
    %5 = vector.shape_cast %4 : vector<2x8x8x64xbf16> to vector<128x64xbf16>
    %c0_14 = arith.constant 0 : index
    %c0_15 = arith.constant 0 : index
    %6 = vector.load %arg2[%c0_14, %c0_15] : memref<64x8xbf16, #tpu.memory_space<vmem>>, vector<64x8xbf16>
    %cst = arith.constant dense<0.000000e+00> : vector<128x8xf32>
    %7 = tpu.matmul %5, %6, %cst {dimension_numbers = #tpu.dot_dimension_numbers<[1], [0], [0], [1], [0, 0, 1, 1], [], []>} : vector<128x64xbf16>, vector<64x8xbf16>, vector<128x8xf32> -> vector<128x8xf32>
    %cst_16 = arith.constant 2.000000e-01 : f32
    %8 = vector.broadcast %cst_16 : f32 to vector<128x8xf32>
    %9 = arith.mulf %8, %7 : vector<128x8xf32>
    %10 = arith.maximumf %7, %9 : vector<128x8xf32>
    %cst_17 = arith.constant 0.000000e+00 : bf16
    %11 = vector.broadcast %cst_17 : bf16 to vector<2x1x10x8xbf16>
    %c0_18 = arith.constant 0 : index
    %c0_19 = arith.constant 0 : index
    %c0_20 = arith.constant 0 : index
    %c0_21 = arith.constant 0 : index
    %12 = vector.load %arg6[%c0_18, %c0_19, %c0_20, %c0_21] : memref<2x10x10x8xbf16, #tpu.memory_space<vmem>>, vector<2x1x10x8xbf16>
    tpu.vector_store %arg6[%c0_18, %c0_19, %c0_20, %c0_21], %11 {strides = array<i32>} : memref<2x10x10x8xbf16, #tpu.memory_space<vmem>>, vector<2x1x10x8xbf16>,
    %cst_22 = arith.constant 0.000000e+00 : bf16
    %13 = vector.broadcast %cst_22 : bf16 to vector<2x1x10x8xbf16>
    %c0_23 = arith.constant 0 : index
    %c9 = arith.constant 9 : index
    %c0_24 = arith.constant 0 : index
    %c0_25 = arith.constant 0 : index
    %14 = vector.load %arg6[%c0_23, %c9, %c0_24, %c0_25] : memref<2x10x10x8xbf16, #tpu.memory_space<vmem>>, vector<2x1x10x8xbf16>
    tpu.vector_store %arg6[%c0_23, %c9, %c0_24, %c0_25], %13 {strides = array<i32>} : memref<2x10x10x8xbf16, #tpu.memory_space<vmem>>, vector<2x1x10x8xbf16>,
    %cst_26 = arith.constant 0.000000e+00 : bf16
    %15 = vector.broadcast %cst_26 : bf16 to vector<2x10x1x8xbf16>
    %c0_27 = arith.constant 0 : index
    %c0_28 = arith.constant 0 : index
    %c0_29 = arith.constant 0 : index
    %c0_30 = arith.constant 0 : index
    %16 = vector.load %arg6[%c0_27, %c0_28, %c0_29, %c0_30] : memref<2x10x10x8xbf16, #tpu.memory_space<vmem>>, vector<2x10x1x8xbf16>
    tpu.vector_store %arg6[%c0_27, %c0_28, %c0_29, %c0_30], %15 {strides = array<i32>} : memref<2x10x10x8xbf16, #tpu.memory_space<vmem>>, vector<2x10x1x8xbf16>,
    %cst_31 = arith.constant 0.000000e+00 : bf16
    %17 = vector.broadcast %cst_31 : bf16 to vector<2x10x1x8xbf16>
    %c0_32 = arith.constant 0 : index
    %c0_33 = arith.constant 0 : index
    %c9_34 = arith.constant 9 : index
    %c0_35 = arith.constant 0 : index
    %18 = vector.load %arg6[%c0_32, %c0_33, %c9_34, %c0_35] : memref<2x10x10x8xbf16, #tpu.memory_space<vmem>>, vector<2x10x1x8xbf16>
    tpu.vector_store %arg6[%c0_32, %c0_33, %c9_34, %c0_35], %17 {strides = array<i32>} : memref<2x10x10x8xbf16, #tpu.memory_space<vmem>>, vector<2x10x1x8xbf16>,
    %19 = vector.shape_cast %10 : vector<128x8xf32> to vector<2x8x8x8xf32>
    %20 = arith.truncf %19 : vector<2x8x8x8xf32> to vector<2x8x8x8xbf16>
    %c0_36 = arith.constant 0 : index
    %c1_37 = arith.constant 1 : index
    %c1_38 = arith.constant 1 : index
    %c0_39 = arith.constant 0 : index
    %21 = vector.load %arg6[%c0_36, %c1_37, %c1_38, %c0_39] : memref<2x10x10x8xbf16, #tpu.memory_space<vmem>>, vector<2x8x8x8xbf16>
    tpu.vector_store %arg6[%c0_36, %c1_37, %c1_38, %c0_39], %20 {strides = array<i32>} : memref<2x10x10x8xbf16, #tpu.memory_space<vmem>>, vector<2x8x8x8xbf16>,
    %c0_40 = arith.constant 0 : index
    %c0_41 = arith.constant 0 : index
    %c0_42 = arith.constant 0 : index
    %c0_43 = arith.constant 0 : index
    %22 = vector.load %arg6[%c0_40, %c0_41, %c0_42, %c0_43] : memref<2x10x10x8xbf16, #tpu.memory_space<vmem>>, vector<2x8x8x8xbf16>
    %c0_44 = arith.constant 0 : index
    %c0_45 = arith.constant 0 : index
    %c1_46 = arith.constant 1 : index
    %c0_47 = arith.constant 0 : index
    %23 = vector.load %arg6[%c0_44, %c0_45, %c1_46, %c0_47] : memref<2x10x10x8xbf16, #tpu.memory_space<vmem>>, vector<2x8x8x8xbf16>
    %c0_48 = arith.constant 0 : index
    %c0_49 = arith.constant 0 : index
    %c2 = arith.constant 2 : index
    %c0_50 = arith.constant 0 : index
    %24 = vector.load %arg6[%c0_48, %c0_49, %c2, %c0_50] : memref<2x10x10x8xbf16, #tpu.memory_space<vmem>>, vector<2x8x8x8xbf16>
    %c0_51 = arith.constant 0 : index
    %c1_52 = arith.constant 1 : index
    %c0_53 = arith.constant 0 : index
    %c0_54 = arith.constant 0 : index
    %25 = vector.load %arg6[%c0_51, %c1_52, %c0_53, %c0_54] : memref<2x10x10x8xbf16, #tpu.memory_space<vmem>>, vector<2x8x8x8xbf16>
    %c0_55 = arith.constant 0 : index
    %c1_56 = arith.constant 1 : index
    %c1_57 = arith.constant 1 : index
    %c0_58 = arith.constant 0 : index
    %26 = vector.load %arg6[%c0_55, %c1_56, %c1_57, %c0_58] : memref<2x10x10x8xbf16, #tpu.memory_space<vmem>>, vector<2x8x8x8xbf16>
    %c0_59 = arith.constant 0 : index
    %c1_60 = arith.constant 1 : index
    %c2_61 = arith.constant 2 : index
    %c0_62 = arith.constant 0 : index
    %27 = vector.load %arg6[%c0_59, %c1_60, %c2_61, %c0_62] : memref<2x10x10x8xbf16, #tpu.memory_space<vmem>>, vector<2x8x8x8xbf16>
    %c0_63 = arith.constant 0 : index
    %c2_64 = arith.constant 2 : index
    %c0_65 = arith.constant 0 : index
    %c0_66 = arith.constant 0 : index
    %28 = vector.load %arg6[%c0_63, %c2_64, %c0_65, %c0_66] : memref<2x10x10x8xbf16, #tpu.memory_space<vmem>>, vector<2x8x8x8xbf16>
    %c0_67 = arith.constant 0 : index
    %c2_68 = arith.constant 2 : index
    %c1_69 = arith.constant 1 : index
    %c0_70 = arith.constant 0 : index
    %29 = vector.load %arg6[%c0_67, %c2_68, %c1_69, %c0_70] : memref<2x10x10x8xbf16, #tpu.memory_space<vmem>>, vector<2x8x8x8xbf16>
    %c0_71 = arith.constant 0 : index
    %c2_72 = arith.constant 2 : index
    %c2_73 = arith.constant 2 : index
    %c0_74 = arith.constant 0 : index
    %30 = vector.load %arg6[%c0_71, %c2_72, %c2_73, %c0_74] : memref<2x10x10x8xbf16, #tpu.memory_space<vmem>>, vector<2x8x8x8xbf16>
    %31 = tpu.concatenate %22, %23, %24, %25, %26, %27, %28, %29, %30 in 3 : vector<2x8x8x8xbf16>, vector<2x8x8x8xbf16>, vector<2x8x8x8xbf16>, vector<2x8x8x8xbf16>, vector<2x8x8x8xbf16>, vector<2x8x8x8xbf16>, vector<2x8x8x8xbf16>, vector<2x8x8x8xbf16>, vector<2x8x8x8xbf16> -> vector<2x8x8x72xbf16>
    %32 = vector.shape_cast %31 : vector<2x8x8x72xbf16> to vector<128x72xbf16>
    %c0_75 = arith.constant 0 : index
    %c0_76 = arith.constant 0 : index
    %33 = vector.load %arg3[%c0_75, %c0_76] : memref<72x8xbf16, #tpu.memory_space<vmem>>, vector<72x8xbf16>
    %cst_77 = arith.constant dense<0.000000e+00> : vector<128x8xf32>
    %34 = tpu.matmul %32, %33, %cst_77 {dimension_numbers = #tpu.dot_dimension_numbers<[1], [0], [0], [1], [0, 0, 1, 1], [], []>} : vector<128x72xbf16>, vector<72x8xbf16>, vector<128x8xf32> -> vector<128x8xf32>
    %cst_78 = arith.constant 2.000000e-01 : f32
    %35 = vector.broadcast %cst_78 : f32 to vector<128x8xf32>
    %36 = arith.mulf %35, %34 : vector<128x8xf32>
    %37 = arith.maximumf %34, %36 : vector<128x8xf32>
    %c0_79 = arith.constant 0 : index
    %c0_80 = arith.constant 0 : index
    %c0_81 = arith.constant 0 : index
    %c12 = arith.constant 12 : index
    %38 = vector.load %arg1[%c0_79, %c0_80, %c0_81, %c12] : memref<2x9x9x16xbf16, #tpu.memory_space<vmem>>, vector<2x8x8x4xbf16>
    %39 = arith.extf %38 : vector<2x8x8x4xbf16> to vector<2x8x8x4xf32>
    %c0_82 = arith.constant 0 : index
    %c0_83 = arith.constant 0 : index
    %c1_84 = arith.constant 1 : index
    %c8 = arith.constant 8 : index
    %40 = vector.load %arg1[%c0_82, %c0_83, %c1_84, %c8] : memref<2x9x9x16xbf16, #tpu.memory_space<vmem>>, vector<2x8x8x4xbf16>
    %41 = arith.extf %40 : vector<2x8x8x4xbf16> to vector<2x8x8x4xf32>
    %42 = arith.addf %39, %41 : vector<2x8x8x4xf32>
    %c0_85 = arith.constant 0 : index
    %c1_86 = arith.constant 1 : index
    %c0_87 = arith.constant 0 : index
    %c4 = arith.constant 4 : index
    %43 = vector.load %arg1[%c0_85, %c1_86, %c0_87, %c4] : memref<2x9x9x16xbf16, #tpu.memory_space<vmem>>, vector<2x8x8x4xbf16>
    %44 = arith.extf %43 : vector<2x8x8x4xbf16> to vector<2x8x8x4xf32>
    %45 = arith.addf %42, %44 : vector<2x8x8x4xf32>
    %c0_88 = arith.constant 0 : index
    %c1_89 = arith.constant 1 : index
    %c1_90 = arith.constant 1 : index
    %c0_91 = arith.constant 0 : index
    %46 = vector.load %arg1[%c0_88, %c1_89, %c1_90, %c0_91] : memref<2x9x9x16xbf16, #tpu.memory_space<vmem>>, vector<2x8x8x4xbf16>
    %47 = arith.extf %46 : vector<2x8x8x4xbf16> to vector<2x8x8x4xf32>
    %48 = arith.addf %45, %47 : vector<2x8x8x4xf32>
    %cst_92 = arith.constant 2.500000e-01 : f32
    %49 = vector.broadcast %cst_92 : f32 to vector<2x8x8x4xf32>
    %50 = arith.mulf %48, %49 : vector<2x8x8x4xf32>
    %51 = vector.shape_cast %50 : vector<2x8x8x4xf32> to vector<128x4xf32>
    %52 = arith.truncf %51 : vector<128x4xf32> to vector<128x4xbf16>
    %c0_93 = arith.constant 0 : index
    %c0_94 = arith.constant 0 : index
    %53 = vector.load %arg4[%c0_93, %c0_94] : memref<4x8xbf16, #tpu.memory_space<vmem>>, vector<4x8xbf16>
    %cst_95 = arith.constant dense<0.000000e+00> : vector<128x8xf32>
    %54 = tpu.matmul %52, %53, %cst_95 {dimension_numbers = #tpu.dot_dimension_numbers<[1], [0], [0], [1], [0, 0, 1, 1], [], []>} : vector<128x4xbf16>, vector<4x8xbf16>, vector<128x8xf32> -> vector<128x8xf32>
    %cst_96 = arith.constant 2.000000e-01 : f32
    %55 = vector.broadcast %cst_96 : f32 to vector<128x8xf32>
    %56 = arith.mulf %55, %54 : vector<128x8xf32>
    %57 = arith.maximumf %54, %56 : vector<128x8xf32>
    %58 = arith.addf %37, %57 : vector<128x8xf32>
    %cst_97 = arith.constant 5.000000e-01 : f32
    %59 = vector.broadcast %cst_97 : f32 to vector<128x8xf32>
    %60 = arith.mulf %58, %59 : vector<128x8xf32>
    %61 = tpu.transpose %60, [1, 0] : vector<128x8xf32> -> vector<8x128xf32>
    %c0_98 = arith.constant 0 : index
    %c0_99 = arith.constant 0 : index
    %62 = vector.load %arg5[%c0_98, %c0_99] : memref<8x128xf32, #tpu.memory_space<vmem>>, vector<8x128xf32>
    tpu.vector_store %arg5[%c0_98, %c0_99], %61 {strides = array<i32>} : memref<8x128xf32, #tpu.memory_space<vmem>>, vector<8x128xf32>,
    return
  }
  func.func @transform_0(%arg0: i32) -> (i32, i32, i32, i32) {
    %c0_i32 = arith.constant 0 : i32
    %c0_i32_0 = arith.constant 0 : i32
    %c0_i32_1 = arith.constant 0 : i32
    %c0_i32_2 = arith.constant 0 : i32
    return %arg0, %c0_i32, %c0_i32_0, %c0_i32_1 : i32, i32, i32, i32
  }
  func.func @transform_1(%arg0: i32) -> (i32, i32) {
    %c0_i32 = arith.constant 0 : i32
    %c0_i32_0 = arith.constant 0 : i32
    %c0_i32_1 = arith.constant 0 : i32
    return %c0_i32, %c0_i32_0 : i32, i32
  }
  func.func @transform_2(%arg0: i32) -> (i32, i32) {
    %c0_i32 = arith.constant 0 : i32
    %c0_i32_0 = arith.constant 0 : i32
    %c0_i32_1 = arith.constant 0 : i32
    return %c0_i32, %c0_i32_0 : i32, i32
  }
  func.func @transform_3(%arg0: i32) -> (i32, i32) {
    %c0_i32 = arith.constant 0 : i32
    %c0_i32_0 = arith.constant 0 : i32
    %c0_i32_1 = arith.constant 0 : i32
    return %c0_i32, %c0_i32_0 : i32, i32
  }
  func.func @transform_4(%arg0: i32) -> (i32, i32) {
    %c0_i32 = arith.constant 0 : i32
    %c0_i32_0 = arith.constant 0 : i32
    return %c0_i32, %arg0 : i32, i32
  }
}

</mosaic_0001>

<llo_original>
// kernel: down_block_comp.1
$region0: #{down_block_comp.1}
  #allocation0 [shape = 'u32[]', space=smem, size = 0x4, offset = 0x4, fixed_abs, tag = 'smem constant byte address 0x4 - core index']
  #allocation1 [shape = 'u32[144,128]{1,0:T(1,128)}', space=vmem, size = 0x12000, scoped, tag = 'internal scratch']
  #allocation2 [shape = 'bf16[2,10,10,8]{3,2,1,0:T(8,128)(2,1)}', space=vmem, size = 0x14000, scoped, tag = 'scratch operand']
  %s0 = inlined_call_operand.vmem [shape: bf16[2,9,9,16], index: 0, kind: input, shape index: {}]
  %s1 = inlined_call_operand.vmem [shape: bf16[64,8], index: 1, kind: input, shape index: {}]
  %s2 = inlined_call_operand.vmem [shape: bf16[72,8], index: 2, kind: input, shape index: {}]
  %s3 = inlined_call_operand.vmem [shape: bf16[4,8], index: 3, kind: input, shape index: {}]
  %s4 = inlined_call_operand.vmem [shape: f32[8,128], index: 4, kind: output, shape index: {}]
  %s5 = sld [smem:[#allocation0]]
  $region26: #{down_block_comp.1} parent=0
    _
  %s7 = ssub.s32 1, %s5
  %s8 = scalar_select 0, %s7, %s5
  // Predicated region
  $region2: #{down_block_comp.1} parent=0 // pred_check
    _
  $region3: #{down_block_comp.1} parent=0 // pred_check_branch
    %10 = sbr.rel (0) target = $region5
  $region4: #{down_block_comp.1} parent=0 // pred_region
    _
  $region5: #{down_block_comp.1} parent=0 // pred_fallthru
    _
  // Predicated region
  $region6: #{down_block_comp.1} parent=0 // pred_check
    _
  $region7: #{down_block_comp.1} parent=0 // pred_check_branch
    %12 = sbr.rel (0) target = $region9
  $region8: #{down_block_comp.1} parent=0 // pred_region
    _
  $region9: #{down_block_comp.1} parent=0 // pred_fallthru
    _
  // Predicated region
  $region10: #{down_block_comp.1} parent=0 // pred_check
    _
  $region11: #{down_block_comp.1} parent=0 // pred_check_branch
    %14 = sbr.rel (0) target = $region13
  $region12: #{down_block_comp.1} parent=0 // pred_region
    _
  $region13: #{down_block_comp.1} parent=0 // pred_fallthru
    _
  // Predicated region
  $region14: #{down_block_comp.1} parent=0 // pred_check
    _
  $region15: #{down_block_comp.1} parent=0 // pred_check_branch
    %16 = sbr.rel (0) target = $region17
  $region16: #{down_block_comp.1} parent=0 // pred_region
    _
  $region17: #{down_block_comp.1} parent=0 // pred_fallthru
    _
  %v18 = vld [vmem:[%s0] sm:$0xf]
  %v19 = vld [vmem:[%s0 + $0x8] sm:$0xf]
  %v20 = vld [vmem:[%s0 + $0x10] sm:$0xf]
  %v21 = vld [vmem:[%s0 + $0x18] sm:$0xf]
  %v22 = vld [vmem:[%s0 + $0x20] sm:$0xf]
  %v23 = vld [vmem:[%s0 + $0x28] sm:$0xf]
  %v24 = vld [vmem:[%s0 + $0x30] sm:$0xf]
  %v25 = vld [vmem:[%s0 + $0x38] sm:$0xf]
  %v26 = vld [vmem:[%s0 + $0x48] sm:$0xf]
  %v27 = vld [vmem:[%s0 + $0x50] sm:$0xf]
  %v28 = vld [vmem:[%s0 + $0x58] sm:$0xf]
  %v29 = vld [vmem:[%s0 + $0x60] sm:$0xf]
  %v30 = vld [vmem:[%s0 + $0x68] sm:$0xf]
  %v31 = vld [vmem:[%s0 + $0x70] sm:$0xf]
  %v32 = vld [vmem:[%s0 + $0x78] sm:$0xf]
  %v33 = vld [vmem:[%s0 + $0x80] sm:$0xf]
  %v34 = vld [vmem:[%s0 + $0x4] sm:$0x1]
  %v35 = vld [vmem:[%s0 + $0xc] sm:$0x1]
  %v36 = vld [vmem:[%s0 + $0x14] sm:$0x1]
  %v37 = vld [vmem:[%s0 + $0x1c] sm:$0x1]
  %v38 = vld [vmem:[%s0 + $0x24] sm:$0x1]
  %v39 = vld [vmem:[%s0 + $0x2c] sm:$0x1]
  %v40 = vld [vmem:[%s0 + $0x34] sm:$0x1]
  %v41 = vld [vmem:[%s0 + $0x3c] sm:$0x1]
  %v42 = vld [vmem:[%s0 + $0x4c] sm:$0x1]
  %v43 = vld [vmem:[%s0 + $0x54] sm:$0x1]
  %v44 = vld [vmem:[%s0 + $0x5c] sm:$0x1]
  %v45 = vld [vmem:[%s0 + $0x64] sm:$0x1]
  %v46 = vld [vmem:[%s0 + $0x6c] sm:$0x1]
  %v47 = vld [vmem:[%s0 + $0x74] sm:$0x1]
  %v48 = vld [vmem:[%s0 + $0x7c] sm:$0x1]
  %v49 = vld [vmem:[%s0 + $0x84] sm:$0x1]
  %s50 = scalar_lea.vmem %s0, 8
  %v51 = vld [vmem:[%s50] sm:$0xf]
  %v52 = vld [vmem:[%s50 + $0x8] sm:$0xf]
  %v53 = vld [vmem:[%s50 + $0x10] sm:$0xf]
  %v54 = vld [vmem:[%s50 + $0x18] sm:$0xf]
  %v55 = vld [vmem:[%s50 + $0x20] sm:$0xf]
  %v56 = vld [vmem:[%s50 + $0x28] sm:$0xf]
  %v57 = vld [vmem:[%s50 + $0x30] sm:$0xf]
  %v58 = vld [vmem:[%s50 + $0x38] sm:$0xf]
  %v59 = vld [vmem:[%s50 + $0x48] sm:$0xf]
  %v60 = vld [vmem:[%s50 + $0x50] sm:$0xf]
  %v61 = vld [vmem:[%s50 + $0x58] sm:$0xf]
  %v62 = vld [vmem:[%s50 + $0x60] sm:$0xf]
  %v63 = vld [vmem:[%s50 + $0x68] sm:$0xf]
  %v64 = vld [vmem:[%s50 + $0x70] sm:$0xf]
  %v65 = vld [vmem:[%s50 + $0x78] sm:$0xf]
  %v66 = vld [vmem:[%s50 + $0x80] sm:$0xf]
  %v67 = vld [vmem:[%s50 + $0x4] sm:$0x1]
  %v68 = vld [vmem:[%s50 + $0xc] sm:$0x1]
  %v69 = vld [vmem:[%s50 + $0x14] sm:$0x1]
  %v70 = vld [vmem:[%s50 + $0x1c] sm:$0x1]
  %v71 = vld [vmem:[%s50 + $0x24] sm:$0x1]
  %v72 = vld [vmem:[%s50 + $0x2c] sm:$0x1]
  %v73 = vld [vmem:[%s50 + $0x34] sm:$0x1]
  %v74 = vld [vmem:[%s50 + $0x3c] sm:$0x1]
  %v75 = vld [vmem:[%s50 + $0x4c] sm:$0x1]
  %v76 = vld [vmem:[%s50 + $0x54] sm:$0x1]
  %v77 = vld [vmem:[%s50 + $0x5c] sm:$0x1]
  %v78 = vld [vmem:[%s50 + $0x64] sm:$0x1]
  %v79 = vld [vmem:[%s50 + $0x6c] sm:$0x1]
  %v80 = vld [vmem:[%s50 + $0x74] sm:$0x1]
  %v81 = vld [vmem:[%s50 + $0x7c] sm:$0x1]
  %v82 = vld [vmem:[%s50 + $0x84] sm:$0x1]
  %v115 = vunpack.c.l.b16 %v18
  %v116 = vunpack.c.l.b16 %v34
  %v117 = vunpack.c.l.b16 %v19
  %v118 = vunpack.c.l.b16 %v35
  %v119 = vunpack.c.l.b16 %v20
  %v120 = vunpack.c.l.b16 %v36
  %v121 = vunpack.c.l.b16 %v21
  %v122 = vunpack.c.l.b16 %v37
  %v123 = vunpack.c.l.b16 %v22
  %v124 = vunpack.c.l.b16 %v38
  %v125 = vunpack.c.l.b16 %v23
  %v126 = vunpack.c.l.b16 %v39
  %v127 = vunpack.c.l.b16 %v24
  %v128 = vunpack.c.l.b16 %v40
  %v129 = vunpack.c.l.b16 %v25
  %v130 = vunpack.c.l.b16 %v41
  %v131 = vunpack.c.l.b16 %v26
  %v132 = vunpack.c.l.b16 %v42
  %v133 = vunpack.c.l.b16 %v27
  %v134 = vunpack.c.l.b16 %v43
  %v135 = vunpack.c.l.b16 %v28
  %v136 = vunpack.c.l.b16 %v44
  %v137 = vunpack.c.l.b16 %v29
  %v138 = vunpack.c.l.b16 %v45
  %v139 = vunpack.c.l.b16 %v30
  %v140 = vunpack.c.l.b16 %v46
  %v141 = vunpack.c.l.b16 %v31
  %v142 = vunpack.c.l.b16 %v47
  %v143 = vunpack.c.l.b16 %v32
  %v144 = vunpack.c.l.b16 %v48
  %v145 = vunpack.c.l.b16 %v33
  %v146 = vunpack.c.l.b16 %v49
  %v147 = vpack.c.b16 %v116, %v115
  %v148 = vpack.c.b16 %v118, %v117
  %v149 = vpack.c.b16 %v120, %v119
  %v150 = vpack.c.b16 %v122, %v121
  %v151 = vpack.c.b16 %v124, %v123
  %v152 = vpack.c.b16 %v126, %v125
  %v153 = vpack.c.b16 %v128, %v127
  %v154 = vpack.c.b16 %v130, %v129
  %v155 = vpack.c.b16 %v132, %v131
  %v156 = vpack.c.b16 %v134, %v133
  %v157 = vpack.c.b16 %v136, %v135
  %v158 = vpack.c.b16 %v138, %v137
  %v159 = vpack.c.b16 %v140, %v139
  %v160 = vpack.c.b16 %v142, %v141
  %v161 = vpack.c.b16 %v144, %v143
  %v162 = vpack.c.b16 %v146, %v145
  %v164 = vshrl.u32 %v147, 16
  %v166 = vshll.u32 %v147, 16
  %v168 = vrot.slane %v166, 1
  %v169 = vor.u32 %v164, %v168
  %v171 = vshrl.u32 %v148, 16
  %v173 = vshll.u32 %v148, 16
  %v175 = vrot.slane %v173, 1
  %v176 = vor.u32 %v171, %v175
  %v178 = vshrl.u32 %v149, 16
  %v180 = vshll.u32 %v149, 16
  %v182 = vrot.slane %v180, 1
  %v183 = vor.u32 %v178, %v182
  %v185 = vshrl.u32 %v150, 16
  %v187 = vshll.u32 %v150, 16
  %v189 = vrot.slane %v187, 1
  %v190 = vor.u32 %v185, %v189
  %v192 = vshrl.u32 %v151, 16
  %v194 = vshll.u32 %v151, 16
  %v196 = vrot.slane %v194, 1
  %v197 = vor.u32 %v192, %v196
  %v199 = vshrl.u32 %v152, 16
  %v201 = vshll.u32 %v152, 16
  %v203 = vrot.slane %v201, 1
  %v204 = vor.u32 %v199, %v203
  %v206 = vshrl.u32 %v153, 16
  %v208 = vshll.u32 %v153, 16
  %v210 = vrot.slane %v208, 1
  %v211 = vor.u32 %v206, %v210
  %v213 = vshrl.u32 %v154, 16
  %v215 = vshll.u32 %v154, 16
  %v217 = vrot.slane %v215, 1
  %v218 = vor.u32 %v213, %v217
  %v220 = vshrl.u32 %v155, 16
  %v222 = vshll.u32 %v155, 16
  %v224 = vrot.slane %v222, 1
  %v225 = vor.u32 %v220, %v224
  %v227 = vshrl.u32 %v156, 16
  %v229 = vshll.u32 %v156, 16
  %v231 = vrot.slane %v229, 1
  %v232 = vor.u32 %v227, %v231
  %v234 = vshrl.u32 %v157, 16
  %v236 = vshll.u32 %v157, 16
  %v238 = vrot.slane %v236, 1
  %v239 = vor.u32 %v234, %v238
  %v241 = vshrl.u32 %v158, 16
  %v243 = vshll.u32 %v158, 16
  %v245 = vrot.slane %v243, 1
  %v246 = vor.u32 %v241, %v245
  %v248 = vshrl.u32 %v159, 16
  %v250 = vshll.u32 %v159, 16
  %v252 = vrot.slane %v250, 1
  %v253 = vor.u32 %v248, %v252
  %v255 = vshrl.u32 %v160, 16
  %v257 = vshll.u32 %v160, 16
  %v259 = vrot.slane %v257, 1
  %v260 = vor.u32 %v255, %v259
  %v262 = vshrl.u32 %v161, 16
  %v264 = vshll.u32 %v161, 16
  %v266 = vrot.slane %v264, 1
  %v267 = vor.u32 %v262, %v266
  %v269 = vshrl.u32 %v162, 16
  %v271 = vshll.u32 %v162, 16
  %v273 = vrot.slane %v271, 1
  %v274 = vor.u32 %v269, %v273
  %275 = vrot.lane.b32.xlu0 %v169, 16
  %v276 = vpop.permute.xlu0 %275
  %277 = vrot.lane.b32.xlu0 %v176, 16
  %v278 = vpop.permute.xlu0 %277
  %279 = vrot.lane.b32.xlu0 %v183, 16
  %v280 = vpop.permute.xlu0 %279
  %281 = vrot.lane.b32.xlu0 %v190, 16
  %v282 = vpop.permute.xlu0 %281
  %283 = vrot.lane.b32.xlu0 %v197, 16
  %v284 = vpop.permute.xlu0 %283
  %285 = vrot.lane.b32.xlu0 %v204, 16
  %v286 = vpop.permute.xlu0 %285
  %287 = vrot.lane.b32.xlu0 %v211, 16
  %v288 = vpop.permute.xlu0 %287
  %289 = vrot.lane.b32.xlu0 %v218, 16
  %v290 = vpop.permute.xlu0 %289
  %291 = vrot.lane.b32.xlu0 %v225, 16
  %v292 = vpop.permute.xlu0 %291
  %293 = vrot.lane.b32.xlu0 %v232, 16
  %v294 = vpop.permute.xlu0 %293
  %295 = vrot.lane.b32.xlu0 %v239, 16
  %v296 = vpop.permute.xlu0 %295
  %297 = vrot.lane.b32.xlu0 %v246, 16
  %v298 = vpop.permute.xlu0 %297
  %299 = vrot.lane.b32.xlu0 %v253, 16
  %v300 = vpop.permute.xlu0 %299
  %301 = vrot.lane.b32.xlu0 %v260, 16
  %v302 = vpop.permute.xlu0 %301
  %303 = vrot.lane.b32.xlu0 %v267, 16
  %v304 = vpop.permute.xlu0 %303
  %305 = vrot.lane.b32.xlu0 %v274, 16
  %v306 = vpop.permute.xlu0 %305
  %v323 = vunpack.c.l.b16 %v51
  %v324 = vunpack.c.l.b16 %v52
  %v325 = vunpack.c.l.b16 %v53
  %v326 = vunpack.c.l.b16 %v54
  %v327 = vunpack.c.l.b16 %v55
  %v328 = vunpack.c.l.b16 %v56
  %v329 = vunpack.c.l.b16 %v57
  %v330 = vunpack.c.l.b16 %v58
  %v331 = vunpack.c.l.b16 %v59
  %v332 = vunpack.c.l.b16 %v60
  %v333 = vunpack.c.l.b16 %v61
  %v334 = vunpack.c.l.b16 %v62
  %v335 = vunpack.c.l.b16 %v63
  %v336 = vunpack.c.l.b16 %v64
  %v337 = vunpack.c.l.b16 %v65
  %v338 = vunpack.c.l.b16 %v66
  %v339 = vpack.c.b16 %v323, %v323
  %v340 = vpack.c.b16 %v324, %v324
  %v341 = vpack.c.b16 %v325, %v325
  %v342 = vpack.c.b16 %v326, %v326
  %v343 = vpack.c.b16 %v327, %v327
  %v344 = vpack.c.b16 %v328, %v328
  %v345 = vpack.c.b16 %v329, %v329
  %v346 = vpack.c.b16 %v330, %v330
  %v347 = vpack.c.b16 %v331, %v331
  %v348 = vpack.c.b16 %v332, %v332
  %v349 = vpack.c.b16 %v333, %v333
  %v350 = vpack.c.b16 %v334, %v334
  %v351 = vpack.c.b16 %v335, %v335
  %v352 = vpack.c.b16 %v336, %v336
  %v353 = vpack.c.b16 %v337, %v337
  %v354 = vpack.c.b16 %v338, %v338
  %355 = vrot.lane.b32.xlu0 %v339, 32
  %v356 = vpop.permute.xlu0 %355
  %357 = vrot.lane.b32.xlu0 %v340, 32
  %v358 = vpop.permute.xlu0 %357
  %359 = vrot.lane.b32.xlu0 %v341, 32
  %v360 = vpop.permute.xlu0 %359
  %361 = vrot.lane.b32.xlu0 %v342, 32
  %v362 = vpop.permute.xlu0 %361
  %363 = vrot.lane.b32.xlu0 %v343, 32
  %v364 = vpop.permute.xlu0 %363
  %365 = vrot.lane.b32.xlu0 %v344, 32
  %v366 = vpop.permute.xlu0 %365
  %367 = vrot.lane.b32.xlu0 %v345, 32
  %v368 = vpop.permute.xlu0 %367
  %369 = vrot.lane.b32.xlu0 %v346, 32
  %v370 = vpop.permute.xlu0 %369
  %371 = vrot.lane.b32.xlu0 %v347, 32
  %v372 = vpop.permute.xlu0 %371
  %373 = vrot.lane.b32.xlu0 %v348, 32
  %v374 = vpop.permute.xlu0 %373
  %375 = vrot.lane.b32.xlu0 %v349, 32
  %v376 = vpop.permute.xlu0 %375
  %377 = vrot.lane.b32.xlu0 %v350, 32
  %v378 = vpop.permute.xlu0 %377
  %379 = vrot.lane.b32.xlu0 %v351, 32
  %v380 = vpop.permute.xlu0 %379
  %381 = vrot.lane.b32.xlu0 %v352, 32
  %v382 = vpop.permute.xlu0 %381
  %383 = vrot.lane.b32.xlu0 %v353, 32
  %v384 = vpop.permute.xlu0 %383
  %385 = vrot.lane.b32.xlu0 %v354, 32
  %v386 = vpop.permute.xlu0 %385
  %v403 = vunpack.c.l.b16 %v67
  %v404 = vunpack.c.l.b16 %v68
  %v405 = vunpack.c.l.b16 %v69
  %v406 = vunpack.c.l.b16 %v70
  %v407 = vunpack.c.l.b16 %v71
  %v408 = vunpack.c.l.b16 %v72
  %v409 = vunpack.c.l.b16 %v73
  %v410 = vunpack.c.l.b16 %v74
  %v411 = vunpack.c.l.b16 %v75
  %v412 = vunpack.c.l.b16 %v76
  %v413 = vunpack.c.l.b16 %v77
  %v414 = vunpack.c.l.b16 %v78
  %v415 = vunpack.c.l.b16 %v79
  %v416 = vunpack.c.l.b16 %v80
  %v417 = vunpack.c.l.b16 %v81
  %v418 = vunpack.c.l.b16 %v82
  %v419 = vpack.c.b16 %v403, %v323
  %v420 = vpack.c.b16 %v404, %v324
  %v421 = vpack.c.b16 %v405, %v325
  %v422 = vpack.c.b16 %v406, %v326
  %v423 = vpack.c.b16 %v407, %v327
  %v424 = vpack.c.b16 %v408, %v328
  %v425 = vpack.c.b16 %v409, %v329
  %v426 = vpack.c.b16 %v410, %v330
  %v427 = vpack.c.b16 %v411, %v331
  %v428 = vpack.c.b16 %v412, %v332
  %v429 = vpack.c.b16 %v413, %v333
  %v430 = vpack.c.b16 %v414, %v334
  %v431 = vpack.c.b16 %v415, %v335
  %v432 = vpack.c.b16 %v416, %v336
  %v433 = vpack.c.b16 %v417, %v337
  %v434 = vpack.c.b16 %v418, %v338
  %v436 = vshrl.u32 %v419, 16
  %v438 = vshll.u32 %v419, 16
  %v440 = vrot.slane %v438, 1
  %v441 = vor.u32 %v436, %v440
  %v443 = vshrl.u32 %v420, 16
  %v445 = vshll.u32 %v420, 16
  %v447 = vrot.slane %v445, 1
  %v448 = vor.u32 %v443, %v447
  %v450 = vshrl.u32 %v421, 16
  %v452 = vshll.u32 %v421, 16
  %v454 = vrot.slane %v452, 1
  %v455 = vor.u32 %v450, %v454
  %v457 = vshrl.u32 %v422, 16
  %v459 = vshll.u32 %v422, 16
  %v461 = vrot.slane %v459, 1
  %v462 = vor.u32 %v457, %v461
  %v464 = vshrl.u32 %v423, 16
  %v466 = vshll.u32 %v423, 16
  %v468 = vrot.slane %v466, 1
  %v469 = vor.u32 %v464, %v468
  %v471 = vshrl.u32 %v424, 16
  %v473 = vshll.u32 %v424, 16
  %v475 = vrot.slane %v473, 1
  %v476 = vor.u32 %v471, %v475
  %v478 = vshrl.u32 %v425, 16
  %v480 = vshll.u32 %v425, 16
  %v482 = vrot.slane %v480, 1
  %v483 = vor.u32 %v478, %v482
  %v485 = vshrl.u32 %v426, 16
  %v487 = vshll.u32 %v426, 16
  %v489 = vrot.slane %v487, 1
  %v490 = vor.u32 %v485, %v489
  %v492 = vshrl.u32 %v427, 16
  %v494 = vshll.u32 %v427, 16
  %v496 = vrot.slane %v494, 1
  %v497 = vor.u32 %v492, %v496
  %v499 = vshrl.u32 %v428, 16
  %v501 = vshll.u32 %v428, 16
  %v503 = vrot.slane %v501, 1
  %v504 = vor.u32 %v499, %v503
  %v506 = vshrl.u32 %v429, 16
  %v508 = vshll.u32 %v429, 16
  %v510 = vrot.slane %v508, 1
  %v511 = vor.u32 %v506, %v510
  %v513 = vshrl.u32 %v430, 16
  %v515 = vshll.u32 %v430, 16
  %v517 = vrot.slane %v515, 1
  %v518 = vor.u32 %v513, %v517
  %v520 = vshrl.u32 %v431, 16
  %v522 = vshll.u32 %v431, 16
  %v524 = vrot.slane %v522, 1
  %v525 = vor.u32 %v520, %v524
  %v527 = vshrl.u32 %v432, 16
  %v529 = vshll.u32 %v432, 16
  %v531 = vrot.slane %v529, 1
  %v532 = vor.u32 %v527, %v531
  %v534 = vshrl.u32 %v433, 16
  %v536 = vshll.u32 %v433, 16
  %v538 = vrot.slane %v536, 1
  %v539 = vor.u32 %v534, %v538
  %v541 = vshrl.u32 %v434, 16
  %v543 = vshll.u32 %v434, 16
  %v545 = vrot.slane %v543, 1
  %v546 = vor.u32 %v541, %v545
  %547 = vrot.lane.b32.xlu0 %v441, 48
  %v548 = vpop.permute.xlu0 %547
  %549 = vrot.lane.b32.xlu0 %v448, 48
  %v550 = vpop.permute.xlu0 %549
  %551 = vrot.lane.b32.xlu0 %v455, 48
  %v552 = vpop.permute.xlu0 %551
  %553 = vrot.lane.b32.xlu0 %v462, 48
  %v554 = vpop.permute.xlu0 %553
  %555 = vrot.lane.b32.xlu0 %v469, 48
  %v556 = vpop.permute.xlu0 %555
  %557 = vrot.lane.b32.xlu0 %v476, 48
  %v558 = vpop.permute.xlu0 %557
  %559 = vrot.lane.b32.xlu0 %v483, 48
  %v560 = vpop.permute.xlu0 %559
  %561 = vrot.lane.b32.xlu0 %v490, 48
  %v562 = vpop.permute.xlu0 %561
  %563 = vrot.lane.b32.xlu0 %v497, 48
  %v564 = vpop.permute.xlu0 %563
  %565 = vrot.lane.b32.xlu0 %v504, 48
  %v566 = vpop.permute.xlu0 %565
  %567 = vrot.lane.b32.xlu0 %v511, 48
  %v568 = vpop.permute.xlu0 %567
  %569 = vrot.lane.b32.xlu0 %v518, 48
  %v570 = vpop.permute.xlu0 %569
  %571 = vrot.lane.b32.xlu0 %v525, 48
  %v572 = vpop.permute.xlu0 %571
  %573 = vrot.lane.b32.xlu0 %v532, 48
  %v574 = vpop.permute.xlu0 %573
  %575 = vrot.lane.b32.xlu0 %v539, 48
  %v576 = vpop.permute.xlu0 %575
  %577 = vrot.lane.b32.xlu0 %v546, 48
  %v578 = vpop.permute.xlu0 %577
  %vm579 = vcmask 130048
  %v582 = vsel %vm579, %v18, %v276
  %v585 = vsel %vm579, %v19, %v278
  %v588 = vsel %vm579, %v20, %v280
  %v591 = vsel %vm579, %v21, %v282
  %v594 = vsel %vm579, %v22, %v284
  %v597 = vsel %vm579, %v23, %v286
  %v600 = vsel %vm579, %v24, %v288
  %v603 = vsel %vm579, %v25, %v290
  %v606 = vsel %vm579, %v26, %v292
  %v609 = vsel %vm579, %v27, %v294
  %v612 = vsel %vm579, %v28, %v296
  %v615 = vsel %vm579, %v29, %v298
  %v618 = vsel %vm579, %v30, %v300
  %v621 = vsel %vm579, %v31, %v302
  %v624 = vsel %vm579, %v32, %v304
  %v627 = vsel %vm579, %v33, %v306
  %vm628 = vcmask 261120
  %v630 = vsel %vm628, %v582, %v356
  %v632 = vsel %vm628, %v585, %v358
  %v634 = vsel %vm628, %v588, %v360
  %v636 = vsel %vm628, %v591, %v362
  %v638 = vsel %vm628, %v594, %v364
  %v640 = vsel %vm628, %v597, %v366
  %v642 = vsel %vm628, %v600, %v368
  %v644 = vsel %vm628, %v603, %v370
  %v646 = vsel %vm628, %v606, %v372
  %v648 = vsel %vm628, %v609, %v374
  %v650 = vsel %vm628, %v612, %v376
  %v652 = vsel %vm628, %v615, %v378
  %v654 = vsel %vm628, %v618, %v380
  %v656 = vsel %vm628, %v621, %v382
  %v658 = vsel %vm628, %v624, %v384
  %v660 = vsel %vm628, %v627, %v386
  %vm661 = vcmask 392192
  %v663 = vsel %vm661, %v630, %v548
  %v665 = vsel %vm661, %v632, %v550
  %v667 = vsel %vm661, %v634, %v552
  %v669 = vsel %vm661, %v636, %v554
  %v671 = vsel %vm661, %v638, %v556
  %v673 = vsel %vm661, %v640, %v558
  %v675 = vsel %vm661, %v642, %v560
  %v677 = vsel %vm661, %v644, %v562
  %v679 = vsel %vm661, %v646, %v564
  %v681 = vsel %vm661, %v648, %v566
  %v683 = vsel %vm661, %v650, %v568
  %v685 = vsel %vm661, %v652, %v570
  %v687 = vsel %vm661, %v654, %v572
  %v689 = vsel %vm661, %v656, %v574
  %v691 = vsel %vm661, %v658, %v576
  %v693 = vsel %vm661, %v660, %v578
  %v694 = vld [vmem:[%s1] sm:$0xf]
  %v695 = vld [vmem:[%s1 + $0x4] sm:$0xf]
  %v696 = vld [vmem:[%s1 + $0x8] sm:$0xf]
  %v697 = vld [vmem:[%s1 + $0xc] sm:$0xf]
  %v698 = vld [vmem:[%s1 + $0x10] sm:$0xf]
  %v699 = vld [vmem:[%s1 + $0x14] sm:$0xf]
  %v700 = vld [vmem:[%s1 + $0x18] sm:$0xf]
  %v701 = vld [vmem:[%s1 + $0x1c] sm:$0xf]
  %v718 = vunpack.c.l.b16 %v663
  %v719 = vunpack.c.l.b16 %v665
  %v720 = vunpack.c.l.b16 %v667
  %v721 = vunpack.c.l.b16 %v669
  %v722 = vunpack.c.l.b16 %v671
  %v723 = vunpack.c.l.b16 %v673
  %v724 = vunpack.c.l.b16 %v675
  %v725 = vunpack.c.l.b16 %v677
  %v726 = vunpack.c.l.b16 %v679
  %v727 = vunpack.c.l.b16 %v681
  %v728 = vunpack.c.l.b16 %v683
  %v729 = vunpack.c.l.b16 %v685
  %v730 = vunpack.c.l.b16 %v687
  %v731 = vunpack.c.l.b16 %v689
  %v732 = vunpack.c.l.b16 %v691
  %v733 = vunpack.c.l.b16 %v693
  %v734 = vpack.c.b16 %v719, %v718
  %v735 = vpack.c.b16 %v721, %v720
  %v736 = vpack.c.b16 %v723, %v722
  %v737 = vpack.c.b16 %v725, %v724
  %v738 = vpack.c.b16 %v727, %v726
  %v739 = vpack.c.b16 %v729, %v728
  %v740 = vpack.c.b16 %v731, %v730
  %v741 = vpack.c.b16 %v733, %v732
  %v750 = vunpack.c.l.b16 %v694
  %v751 = vunpack.c.l.b16 %v695
  %v752 = vunpack.c.l.b16 %v696
  %v753 = vunpack.c.l.b16 %v697
  %v754 = vunpack.c.l.b16 %v698
  %v755 = vunpack.c.l.b16 %v699
  %v756 = vunpack.c.l.b16 %v700
  %v757 = vunpack.c.l.b16 %v701
  %v758 = vpack.c.b16 %v751, %v750
  %v759 = vpack.c.b16 %v753, %v752
  %v760 = vpack.c.b16 %v755, %v754
  %v761 = vpack.c.b16 %v757, %v756
  %vm766 = vcmask 523264
  %v768 = vsel %vm766, %v734, 0
  %v771 = vsel %vm766, %v735, 0
  %v774 = vsel %vm766, %v736, 0
  %v777 = vsel %vm766, %v737, 0
  %v780 = vsel %vm766, %v738, 0
  %v783 = vsel %vm766, %v739, 0
  %v786 = vsel %vm766, %v740, 0
  %v789 = vsel %vm766, %v741, 0
  %791 = vmatprep.subr.bf16.mxu0 0
  %792 = vmatpush1.bf16.msra.mxu0 %v758
  %793 = vmatprep.subr.bf16.mxu0 0
  %794 = vmatpush1.bf16.msra.mxu0 %v759
  %795 = vmatprep.subr.bf16.mxu0 0
  %796 = vmatpush1.bf16.msra.mxu0 %v760
  %797 = vmatprep.subr.bf16.mxu0 0
  %798 = vmatpush1.bf16.msra.mxu0 %v761
  %799 = vmatprep.subr.bf16.mxu0 0
  %800 = vmatpush1.bf16.msra.mxu0 0
  %801 = vmatprep.subr.bf16.mxu0 0
  %802 = vmatpush1.bf16.msra.mxu0 0
  %803 = vmatprep.subr.bf16.mxu0 0
  %804 = vmatpush1.bf16.msra.mxu0 0
  %805 = vmatprep.subr.bf16.mxu0 0
  %806 = vmatpush1.bf16.msra.mxu0 0
  %807 = vmatprep.subr.bf16.mxu0 0
  %808 = vmatpush1.bf16.msra.mxu0 0
  %809 = vmatprep.subr.bf16.mxu0 0
  %810 = vmatpush1.bf16.msra.mxu0 0
  %811 = vmatprep.subr.bf16.mxu0 0
  %812 = vmatpush1.bf16.msra.mxu0 0
  %813 = vmatprep.subr.bf16.mxu0 0
  %814 = vmatpush1.bf16.msra.mxu0 0
  %815 = vmatprep.subr.bf16.mxu0 0
  %816 = vmatpush1.bf16.msra.mxu0 0
  %817 = vmatprep.subr.bf16.mxu0 0
  %818 = vmatpush1.bf16.msra.mxu0 0
  %819 = vmatprep.subr.bf16.mxu0 0
  %820 = vmatpush1.bf16.msra.mxu0 0
  %821 = vmatprep.subr.bf16.mxu0 0
  %822 = vmatpush1.bf16.msra.mxu0 0
  %823 = vmatprep.mubr.bf16.mxu0 0
  %824 = vmatmul.mubr.bf16.gmra.mrb[0].mxu0 %v768
  %v825 = vpop.f32.mrb[0].mxu0
  %v826 = vadd.f32 0.0, %v825
  %v827 = vpop.f32.mrb[0].mxu0
  %v828 = vpop.f32.mrb[0].mxu0
  %v829 = vadd.f32 0.0, %v828
  %v830 = vpop.f32.mrb[0].mxu0
  %831 = vmatprep.mubr.bf16.mxu0 0
  %832 = vmatmul.mubr.bf16.gmra.mrb[0].mxu0 %v771
  %v833 = vpop.f32.mrb[0].mxu0
  %v834 = vadd.f32 0.0, %v833
  %v835 = vpop.f32.mrb[0].mxu0
  %v836 = vpop.f32.mrb[0].mxu0
  %v837 = vadd.f32 0.0, %v836
  %v838 = vpop.f32.mrb[0].mxu0
  %839 = vmatprep.mubr.bf16.mxu0 0
  %840 = vmatmul.mubr.bf16.gmra.mrb[0].mxu0 %v774
  %v841 = vpop.f32.mrb[0].mxu0
  %v842 = vadd.f32 0.0, %v841
  %v843 = vpop.f32.mrb[0].mxu0
  %v844 = vpop.f32.mrb[0].mxu0
  %v845 = vadd.f32 0.0, %v844
  %v846 = vpop.f32.mrb[0].mxu0
  %847 = vmatprep.mubr.bf16.mxu0 0
  %848 = vmatmul.mubr.bf16.gmra.mrb[0].mxu0 %v777
  %v849 = vpop.f32.mrb[0].mxu0
  %v850 = vadd.f32 0.0, %v849
  %v851 = vpop.f32.mrb[0].mxu0
  %v852 = vpop.f32.mrb[0].mxu0
  %v853 = vadd.f32 0.0, %v852
  %v854 = vpop.f32.mrb[0].mxu0
  %855 = vmatprep.mubr.bf16.mxu0 0
  %856 = vmatmul.mubr.bf16.gmra.mrb[0].mxu0 %v780
  %v857 = vpop.f32.mrb[0].mxu0
  %v858 = vadd.f32 0.0, %v857
  %v859 = vpop.f32.mrb[0].mxu0
  %v860 = vpop.f32.mrb[0].mxu0
  %v861 = vadd.f32 0.0, %v860
  %v862 = vpop.f32.mrb[0].mxu0
  %863 = vmatprep.mubr.bf16.mxu0 0
  %864 = vmatmul.mubr.bf16.gmra.mrb[0].mxu0 %v783
  %v865 = vpop.f32.mrb[0].mxu0
  %v866 = vadd.f32 0.0, %v865
  %v867 = vpop.f32.mrb[0].mxu0
  %v868 = vpop.f32.mrb[0].mxu0
  %v869 = vadd.f32 0.0, %v868
  %v870 = vpop.f32.mrb[0].mxu0
  %871 = vmatprep.mubr.bf16.mxu0 0
  %872 = vmatmul.mubr.bf16.gmra.mrb[0].mxu0 %v786
  %v873 = vpop.f32.mrb[0].mxu0
  %v874 = vadd.f32 0.0, %v873
  %v875 = vpop.f32.mrb[0].mxu0
  %v876 = vpop.f32.mrb[0].mxu0
  %v877 = vadd.f32 0.0, %v876
  %v878 = vpop.f32.mrb[0].mxu0
  %879 = vmatprep.mubr.bf16.mxu0 0
  %880 = vmatmul.mubr.bf16.gmra.mrb[0].mxu0 %v789
  %v881 = vpop.f32.mrb[0].mxu0
  %v882 = vadd.f32 0.0, %v881
  %v883 = vpop.f32.mrb[0].mxu0
  %v884 = vpop.f32.mrb[0].mxu0
  %v885 = vadd.f32 0.0, %v884
  %v886 = vpop.f32.mrb[0].mxu0
  %887 = vdwg.mxu0
  %v888 = vmul.f32 %v826, 0.2
  %v889 = vmul.f32 %v829, 0.2
  %v890 = vmul.f32 %v834, 0.2
  %v891 = vmul.f32 %v837, 0.2
  %v892 = vmul.f32 %v842, 0.2
  %v893 = vmul.f32 %v845, 0.2
  %v894 = vmul.f32 %v850, 0.2
  %v895 = vmul.f32 %v853, 0.2
  %v896 = vmul.f32 %v858, 0.2
  %v897 = vmul.f32 %v861, 0.2
  %v898 = vmul.f32 %v866, 0.2
  %v899 = vmul.f32 %v869, 0.2
  %v900 = vmul.f32 %v874, 0.2
  %v901 = vmul.f32 %v877, 0.2
  %v902 = vmul.f32 %v882, 0.2
  %v903 = vmul.f32 %v885, 0.2
  %v904 = vmax.f32 %v826, %v888
  %v905 = vmax.f32 %v829, %v889
  %v906 = vmax.f32 %v834, %v890
  %v907 = vmax.f32 %v837, %v891
  %v908 = vmax.f32 %v842, %v892
  %v909 = vmax.f32 %v845, %v893
  %v910 = vmax.f32 %v850, %v894
  %v911 = vmax.f32 %v853, %v895
  %v912 = vmax.f32 %v858, %v896
  %v913 = vmax.f32 %v861, %v897
  %v914 = vmax.f32 %v866, %v898
  %v915 = vmax.f32 %v869, %v899
  %v916 = vmax.f32 %v874, %v900
  %v917 = vmax.f32 %v877, %v901
  %v918 = vmax.f32 %v882, %v902
  %v919 = vmax.f32 %v885, %v903
  %vm920 = vcmask 60416
  %921 = vst.msk [vmem:[#allocation2] sm:$0xf] %vm920, 0
  %vm922 = vcmask 57344
  %923 = vst.msk [vmem:[#allocation2 + $0x4] sm:$0x1] %vm922, 0
  %924 = vst.msk [vmem:[#allocation2 + $0x50] sm:$0xf] %vm920, 0
  %925 = vst.msk [vmem:[#allocation2 + $0x54] sm:$0x1] %vm922, 0
  %s926 = scalar_lea.vmem [#allocation2], 72
  %927 = vst.msk [vmem:[%s926] sm:$0xf] %vm920, 0
  %928 = vst.msk [vmem:[%s926 + $0x4] sm:$0x1] %vm922, 0
  %929 = vst.msk [vmem:[%s926 + $0x50] sm:$0xf] %vm920, 0
  %930 = vst.msk [vmem:[%s926 + $0x54] sm:$0x1] %vm922, 0
  %vm931 = vcmask 57344
  %vm932 = vsmask.f32 256
  %vm933 = vmand %vm931, %vm932
  %v934 = vld [vmem:[#allocation2] sm:$0x1]
  %v935 = vsel %vm933, 0, %v934
  %936 = vst [vmem:[#allocation2] sm:$0x1] %v935
  %v937 = vld [vmem:[#allocation2 + $0x8] sm:$0x1]
  %v938 = vsel %vm933, 0, %v937
  %939 = vst [vmem:[#allocation2 + $0x8] sm:$0x1] %v938
  %v940 = vld [vmem:[#allocation2 + $0x10] sm:$0x1]
  %v941 = vsel %vm933, 0, %v940
  %942 = vst [vmem:[#allocation2 + $0x10] sm:$0x1] %v941
  %v943 = vld [vmem:[#allocation2 + $0x18] sm:$0x1]
  %v944 = vsel %vm933, 0, %v943
  %945 = vst [vmem:[#allocation2 + $0x18] sm:$0x1] %v944
  %v946 = vld [vmem:[#allocation2 + $0x20] sm:$0x1]
  %v947 = vsel %vm933, 0, %v946
  %948 = vst [vmem:[#allocation2 + $0x20] sm:$0x1] %v947
  %v949 = vld [vmem:[#allocation2 + $0x28] sm:$0x1]
  %v950 = vsel %vm933, 0, %v949
  %951 = vst [vmem:[#allocation2 + $0x28] sm:$0x1] %v950
  %v952 = vld [vmem:[#allocation2 + $0x30] sm:$0x1]
  %v953 = vsel %vm933, 0, %v952
  %954 = vst [vmem:[#allocation2 + $0x30] sm:$0x1] %v953
  %v955 = vld [vmem:[#allocation2 + $0x38] sm:$0x1]
  %v956 = vsel %vm933, 0, %v955
  %957 = vst [vmem:[#allocation2 + $0x38] sm:$0x1] %v956
  %v958 = vld [vmem:[#allocation2 + $0x40] sm:$0x1]
  %v959 = vsel %vm933, 0, %v958
  %960 = vst [vmem:[#allocation2 + $0x40] sm:$0x1] %v959
  %v961 = vld [vmem:[#allocation2 + $0x48] sm:$0x1]
  %v962 = vsel %vm933, 0, %v961
  %963 = vst [vmem:[#allocation2 + $0x48] sm:$0x1] %v962
  %v964 = vld [vmem:[#allocation2 + $0x50] sm:$0x1]
  %v965 = vsel %vm933, 0, %v964
  %966 = vst [vmem:[#allocation2 + $0x50] sm:$0x1] %v965
  %v967 = vld [vmem:[#allocation2 + $0x58] sm:$0x1]
  %v968 = vsel %vm933, 0, %v967
  %969 = vst [vmem:[#allocation2 + $0x58] sm:$0x1] %v968
  %v970 = vld [vmem:[#allocation2 + $0x60] sm:$0x1]
  %v971 = vsel %vm933, 0, %v970
  %972 = vst [vmem:[#allocation2 + $0x60] sm:$0x1] %v971
  %v973 = vld [vmem:[#allocation2 + $0x68] sm:$0x1]
  %v974 = vsel %vm933, 0, %v973
  %975 = vst [vmem:[#allocation2 + $0x68] sm:$0x1] %v974
  %v976 = vld [vmem:[#allocation2 + $0x70] sm:$0x1]
  %v977 = vsel %vm933, 0, %v976
  %978 = vst [vmem:[#allocation2 + $0x70] sm:$0x1] %v977
  %v979 = vld [vmem:[#allocation2 + $0x78] sm:$0x1]
  %v980 = vsel %vm933, 0, %v979
  %981 = vst [vmem:[#allocation2 + $0x78] sm:$0x1] %v980
  %v982 = vld [vmem:[#allocation2 + $0x80] sm:$0x1]
  %v983 = vsel %vm933, 0, %v982
  %984 = vst [vmem:[#allocation2 + $0x80] sm:$0x1] %v983
  %v985 = vld [vmem:[#allocation2 + $0x88] sm:$0x1]
  %v986 = vsel %vm933, 0, %v985
  %987 = vst [vmem:[#allocation2 + $0x88] sm:$0x1] %v986
  %v988 = vld [vmem:[#allocation2 + $0x90] sm:$0x1]
  %v989 = vsel %vm933, 0, %v988
  %990 = vst [vmem:[#allocation2 + $0x90] sm:$0x1] %v989
  %v991 = vld [vmem:[#allocation2 + $0x98] sm:$0x1]
  %v992 = vsel %vm933, 0, %v991
  %993 = vst [vmem:[#allocation2 + $0x98] sm:$0x1] %v992
  %vm994 = vsmask.f32 7938
  %vm995 = vmand %vm931, %vm994
  %v996 = vld [vmem:[#allocation2 + $0x4] sm:$0x1]
  %v997 = vsel %vm995, 0, %v996
  %998 = vst [vmem:[#allocation2 + $0x4] sm:$0x1] %v997
  %v999 = vld [vmem:[#allocation2 + $0xc] sm:$0x1]
  %v1000 = vsel %vm995, 0, %v999
  %1001 = vst [vmem:[#allocation2 + $0xc] sm:$0x1] %v1000
  %v1002 = vld [vmem:[#allocation2 + $0x14] sm:$0x1]
  %v1003 = vsel %vm995, 0, %v1002
  %1004 = vst [vmem:[#allocation2 + $0x14] sm:$0x1] %v1003
  %v1005 = vld [vmem:[#allocation2 + $0x1c] sm:$0x1]
  %v1006 = vsel %vm995, 0, %v1005
  %1007 = vst [vmem:[#allocation2 + $0x1c] sm:$0x1] %v1006
  %v1008 = vld [vmem:[#allocation2 + $0x24] sm:$0x1]
  %v1009 = vsel %vm995, 0, %v1008
  %1010 = vst [vmem:[#allocation2 + $0x24] sm:$0x1] %v1009
  %v1011 = vld [vmem:[#allocation2 + $0x2c] sm:$0x1]
  %v1012 = vsel %vm995, 0, %v1011
  %1013 = vst [vmem:[#allocation2 + $0x2c] sm:$0x1] %v1012
  %v1014 = vld [vmem:[#allocation2 + $0x34] sm:$0x1]
  %v1015 = vsel %vm995, 0, %v1014
  %1016 = vst [vmem:[#allocation2 + $0x34] sm:$0x1] %v1015
  %v1017 = vld [vmem:[#allocation2 + $0x3c] sm:$0x1]
  %v1018 = vsel %vm995, 0, %v1017
  %1019 = vst [vmem:[#allocation2 + $0x3c] sm:$0x1] %v1018
  %v1020 = vld [vmem:[#allocation2 + $0x44] sm:$0x1]
  %v1021 = vsel %vm995, 0, %v1020
  %1022 = vst [vmem:[#allocation2 + $0x44] sm:$0x1] %v1021
  %v1023 = vld [vmem:[#allocation2 + $0x4c] sm:$0x1]
  %v1024 = vsel %vm995, 0, %v1023
  %1025 = vst [vmem:[#allocation2 + $0x4c] sm:$0x1] %v1024
  %v1026 = vld [vmem:[#allocation2 + $0x54] sm:$0x1]
  %v1027 = vsel %vm995, 0, %v1026
  %1028 = vst [vmem:[#allocation2 + $0x54] sm:$0x1] %v1027
  %v1029 = vld [vmem:[#allocation2 + $0x5c] sm:$0x1]
  %v1030 = vsel %vm995, 0, %v1029
  %1031 = vst [vmem:[#allocation2 + $0x5c] sm:$0x1] %v1030
  %v1032 = vld [vmem:[#allocation2 + $0x64] sm:$0x1]
  %v1033 = vsel %vm995, 0, %v1032
  %1034 = vst [vmem:[#allocation2 + $0x64] sm:$0x1] %v1033
  %v1035 = vld [vmem:[#allocation2 + $0x6c] sm:$0x1]
  %v1036 = vsel %vm995, 0, %v1035
  %1037 = vst [vmem:[#allocation2 + $0x6c] sm:$0x1] %v1036
  %v1038 = vld [vmem:[#allocation2 + $0x74] sm:$0x1]
  %v1039 = vsel %vm995, 0, %v1038
  %1040 = vst [vmem:[#allocation2 + $0x74] sm:$0x1] %v1039
  %v1041 = vld [vmem:[#allocation2 + $0x7c] sm:$0x1]
  %v1042 = vsel %vm995, 0, %v1041
  %1043 = vst [vmem:[#allocation2 + $0x7c] sm:$0x1] %v1042
  %v1044 = vld [vmem:[#allocation2 + $0x84] sm:$0x1]
  %v1045 = vsel %vm995, 0, %v1044
  %1046 = vst [vmem:[#allocation2 + $0x84] sm:$0x1] %v1045
  %v1047 = vld [vmem:[#allocation2 + $0x8c] sm:$0x1]
  %v1048 = vsel %vm995, 0, %v1047
  %1049 = vst [vmem:[#allocation2 + $0x8c] sm:$0x1] %v1048
  %v1050 = vld [vmem:[#allocation2 + $0x94] sm:$0x1]
  %v1051 = vsel %vm995, 0, %v1050
  %1052 = vst [vmem:[#allocation2 + $0x94] sm:$0x1] %v1051
  %v1053 = vld [vmem:[#allocation2 + $0x9c] sm:$0x1]
  %v1054 = vsel %vm995, 0, %v1053
  %1055 = vst [vmem:[#allocation2 + $0x9c] sm:$0x1] %v1054
  %v1056 = vpack.c.bf16 %v904, %v904
  %v1057 = vpack.c.bf16 %v905, %v905
  %v1058 = vpack.c.bf16 %v906, %v906
  %v1059 = vpack.c.bf16 %v907, %v907
  %v1060 = vpack.c.bf16 %v908, %v908
  %v1061 = vpack.c.bf16 %v909, %v909
  %v1062 = vpack.c.bf16 %v910, %v910
  %v1063 = vpack.c.bf16 %v911, %v911
  %v1064 = vpack.c.bf16 %v912, %v912
  %v1065 = vpack.c.bf16 %v913, %v913
  %v1066 = vpack.c.bf16 %v914, %v914
  %v1067 = vpack.c.bf16 %v915, %v915
  %v1068 = vpack.c.bf16 %v916, %v916
  %v1069 = vpack.c.bf16 %v917, %v917
  %v1070 = vpack.c.bf16 %v918, %v918
  %v1071 = vpack.c.bf16 %v919, %v919
  %v1088 = vunpack.c.l.b16 %v1056
  %v1089 = vunpack.c.l.b16 %v1057
  %v1090 = vunpack.c.l.b16 %v1058
  %v1091 = vunpack.c.l.b16 %v1059
  %v1092 = vunpack.c.l.b16 %v1060
  %v1093 = vunpack.c.l.b16 %v1061
  %v1094 = vunpack.c.l.b16 %v1062
  %v1095 = vunpack.c.l.b16 %v1063
  %v1096 = vunpack.c.l.b16 %v1064
  %v1097 = vunpack.c.l.b16 %v1065
  %v1098 = vunpack.c.l.b16 %v1066
  %v1099 = vunpack.c.l.b16 %v1067
  %v1100 = vunpack.c.l.b16 %v1068
  %v1101 = vunpack.c.l.b16 %v1069
  %v1102 = vunpack.c.l.b16 %v1070
  %v1103 = vunpack.c.l.b16 %v1071
  %v1104 = vpack.c.b16 %v1088, %v1088
  %v1105 = vpack.c.b16 %v1089, %v1089
  %v1106 = vpack.c.b16 %v1090, %v1090
  %v1107 = vpack.c.b16 %v1091, %v1091
  %v1108 = vpack.c.b16 %v1092, %v1092
  %v1109 = vpack.c.b16 %v1093, %v1093
  %v1110 = vpack.c.b16 %v1094, %v1094
  %v1111 = vpack.c.b16 %v1095, %v1095
  %v1112 = vpack.c.b16 %v1096, %v1096
  %v1113 = vpack.c.b16 %v1097, %v1097
  %v1114 = vpack.c.b16 %v1098, %v1098
  %v1115 = vpack.c.b16 %v1099, %v1099
  %v1116 = vpack.c.b16 %v1100, %v1100
  %v1117 = vpack.c.b16 %v1101, %v1101
  %v1118 = vpack.c.b16 %v1102, %v1102
  %v1119 = vpack.c.b16 %v1103, %v1103
  %v1121 = vshrl.u32 %v1104, 16
  %v1123 = vrot.slane %v1121, 7
  %v1124 = vshll.u32 %v1104, 16
  %v1126 = vor.u32 %v1123, %v1124
  %v1127 = vrot.slane %v1123, 4
  %v1129 = vshrl.u32 %v1105, 16
  %v1131 = vrot.slane %v1129, 7
  %v1132 = vshll.u32 %v1105, 16
  %v1134 = vor.u32 %v1131, %v1132
  %v1135 = vrot.slane %v1131, 4
  %v1137 = vshrl.u32 %v1106, 16
  %v1139 = vrot.slane %v1137, 7
  %v1140 = vshll.u32 %v1106, 16
  %v1142 = vor.u32 %v1139, %v1140
  %v1143 = vrot.slane %v1139, 4
  %v1145 = vshrl.u32 %v1107, 16
  %v1147 = vrot.slane %v1145, 7
  %v1148 = vshll.u32 %v1107, 16
  %v1150 = vor.u32 %v1147, %v1148
  %v1151 = vrot.slane %v1147, 4
  %v1153 = vshrl.u32 %v1108, 16
  %v1155 = vrot.slane %v1153, 7
  %v1156 = vshll.u32 %v1108, 16
  %v1158 = vor.u32 %v1155, %v1156
  %v1159 = vrot.slane %v1155, 4
  %v1161 = vshrl.u32 %v1109, 16
  %v1163 = vrot.slane %v1161, 7
  %v1164 = vshll.u32 %v1109, 16
  %v1166 = vor.u32 %v1163, %v1164
  %v1167 = vrot.slane %v1163, 4
  %v1169 = vshrl.u32 %v1110, 16
  %v1171 = vrot.slane %v1169, 7
  %v1172 = vshll.u32 %v1110, 16
  %v1174 = vor.u32 %v1171, %v1172
  %v1175 = vrot.slane %v1171, 4
  %v1177 = vshrl.u32 %v1111, 16
  %v1179 = vrot.slane %v1177, 7
  %v1180 = vshll.u32 %v1111, 16
  %v1182 = vor.u32 %v1179, %v1180
  %v1183 = vrot.slane %v1179, 4
  %v1185 = vshrl.u32 %v1112, 16
  %v1187 = vrot.slane %v1185, 7
  %v1188 = vshll.u32 %v1112, 16
  %v1190 = vor.u32 %v1187, %v1188
  %v1191 = vrot.slane %v1187, 4
  %v1193 = vshrl.u32 %v1113, 16
  %v1195 = vrot.slane %v1193, 7
  %v1196 = vshll.u32 %v1113, 16
  %v1198 = vor.u32 %v1195, %v1196
  %v1199 = vrot.slane %v1195, 4
  %v1201 = vshrl.u32 %v1114, 16
  %v1203 = vrot.slane %v1201, 7
  %v1204 = vshll.u32 %v1114, 16
  %v1206 = vor.u32 %v1203, %v1204
  %v1207 = vrot.slane %v1203, 4
  %v1209 = vshrl.u32 %v1115, 16
  %v1211 = vrot.slane %v1209, 7
  %v1212 = vshll.u32 %v1115, 16
  %v1214 = vor.u32 %v1211, %v1212
  %v1215 = vrot.slane %v1211, 4
  %v1217 = vshrl.u32 %v1116, 16
  %v1219 = vrot.slane %v1217, 7
  %v1220 = vshll.u32 %v1116, 16
  %v1222 = vor.u32 %v1219, %v1220
  %v1223 = vrot.slane %v1219, 4
  %v1225 = vshrl.u32 %v1117, 16
  %v1227 = vrot.slane %v1225, 7
  %v1228 = vshll.u32 %v1117, 16
  %v1230 = vor.u32 %v1227, %v1228
  %v1231 = vrot.slane %v1227, 4
  %v1233 = vshrl.u32 %v1118, 16
  %v1235 = vrot.slane %v1233, 7
  %v1236 = vshll.u32 %v1118, 16
  %v1238 = vor.u32 %v1235, %v1236
  %v1239 = vrot.slane %v1235, 4
  %v1241 = vshrl.u32 %v1119, 16
  %v1243 = vrot.slane %v1241, 7
  %v1244 = vshll.u32 %v1119, 16
  %v1246 = vor.u32 %v1243, %v1244
  %v1247 = vrot.slane %v1243, 4
  %s1280 = scalar_lea.vmem [#allocation2], 8
  %vm1281 = vcmask 60416
  %vm1282 = vmand %vm1281, %vm994
  %v1283 = vld [vmem:[%s1280] sm:$0xf]
  %v1284 = vsel %vm1282, %v1126, %v1283
  %1285 = vst [vmem:[%s1280] sm:$0xf] %v1284
  %v1286 = vld [vmem:[%s1280 + $0x4] sm:$0x1]
  %v1287 = vsel %vm933, %v1127, %v1286
  %1288 = vst [vmem:[%s1280 + $0x4] sm:$0x1] %v1287
  %v1289 = vld [vmem:[%s1280 + $0x8] sm:$0xf]
  %v1290 = vsel %vm1282, %v1134, %v1289
  %1291 = vst [vmem:[%s1280 + $0x8] sm:$0xf] %v1290
  %v1292 = vld [vmem:[%s1280 + $0xc] sm:$0x1]
  %v1293 = vsel %vm933, %v1135, %v1292
  %1294 = vst [vmem:[%s1280 + $0xc] sm:$0x1] %v1293
  %v1295 = vld [vmem:[%s1280 + $0x10] sm:$0xf]
  %v1296 = vsel %vm1282, %v1142, %v1295
  %1297 = vst [vmem:[%s1280 + $0x10] sm:$0xf] %v1296
  %v1298 = vld [vmem:[%s1280 + $0x14] sm:$0x1]
  %v1299 = vsel %vm933, %v1143, %v1298
  %1300 = vst [vmem:[%s1280 + $0x14] sm:$0x1] %v1299
  %v1301 = vld [vmem:[%s1280 + $0x18] sm:$0xf]
  %v1302 = vsel %vm1282, %v1150, %v1301
  %1303 = vst [vmem:[%s1280 + $0x18] sm:$0xf] %v1302
  %v1304 = vld [vmem:[%s1280 + $0x1c] sm:$0x1]
  %v1305 = vsel %vm933, %v1151, %v1304
  %1306 = vst [vmem:[%s1280 + $0x1c] sm:$0x1] %v1305
  %v1307 = vld [vmem:[%s1280 + $0x20] sm:$0xf]
  %v1308 = vsel %vm1282, %v1158, %v1307
  %1309 = vst [vmem:[%s1280 + $0x20] sm:$0xf] %v1308
  %v1310 = vld [vmem:[%s1280 + $0x24] sm:$0x1]
  %v1311 = vsel %vm933, %v1159, %v1310
  %1312 = vst [vmem:[%s1280 + $0x24] sm:$0x1] %v1311
  %v1313 = vld [vmem:[%s1280 + $0x28] sm:$0xf]
  %v1314 = vsel %vm1282, %v1166, %v1313
  %1315 = vst [vmem:[%s1280 + $0x28] sm:$0xf] %v1314
  %v1316 = vld [vmem:[%s1280 + $0x2c] sm:$0x1]
  %v1317 = vsel %vm933, %v1167, %v1316
  %1318 = vst [vmem:[%s1280 + $0x2c] sm:$0x1] %v1317
  %v1319 = vld [vmem:[%s1280 + $0x30] sm:$0xf]
  %v1320 = vsel %vm1282, %v1174, %v1319
  %1321 = vst [vmem:[%s1280 + $0x30] sm:$0xf] %v1320
  %v1322 = vld [vmem:[%s1280 + $0x34] sm:$0x1]
  %v1323 = vsel %vm933, %v1175, %v1322
  %1324 = vst [vmem:[%s1280 + $0x34] sm:$0x1] %v1323
  %v1325 = vld [vmem:[%s1280 + $0x38] sm:$0xf]
  %v1326 = vsel %vm1282, %v1182, %v1325
  %1327 = vst [vmem:[%s1280 + $0x38] sm:$0xf] %v1326
  %v1328 = vld [vmem:[%s1280 + $0x3c] sm:$0x1]
  %v1329 = vsel %vm933, %v1183, %v1328
  %1330 = vst [vmem:[%s1280 + $0x3c] sm:$0x1] %v1329
  %v1331 = vld [vmem:[%s1280 + $0x50] sm:$0xf]
  %v1332 = vsel %vm1282, %v1190, %v1331
  %1333 = vst [vmem:[%s1280 + $0x50] sm:$0xf] %v1332
  %v1334 = vld [vmem:[%s1280 + $0x54] sm:$0x1]
  %v1335 = vsel %vm933, %v1191, %v1334
  %1336 = vst [vmem:[%s1280 + $0x54] sm:$0x1] %v1335
  %v1337 = vld [vmem:[%s1280 + $0x58] sm:$0xf]
  %v1338 = vsel %vm1282, %v1198, %v1337
  %1339 = vst [vmem:[%s1280 + $0x58] sm:$0xf] %v1338
  %v1340 = vld [vmem:[%s1280 + $0x5c] sm:$0x1]
  %v1341 = vsel %vm933, %v1199, %v1340
  %1342 = vst [vmem:[%s1280 + $0x5c] sm:$0x1] %v1341
  %v1343 = vld [vmem:[%s1280 + $0x60] sm:$0xf]
  %v1344 = vsel %vm1282, %v1206, %v1343
  %1345 = vst [vmem:[%s1280 + $0x60] sm:$0xf] %v1344
  %v1346 = vld [vmem:[%s1280 + $0x64] sm:$0x1]
  %v1347 = vsel %vm933, %v1207, %v1346
  %1348 = vst [vmem:[%s1280 + $0x64] sm:$0x1] %v1347
  %v1349 = vld [vmem:[%s1280 + $0x68] sm:$0xf]
  %v1350 = vsel %vm1282, %v1214, %v1349
  %1351 = vst [vmem:[%s1280 + $0x68] sm:$0xf] %v1350
  %v1352 = vld [vmem:[%s1280 + $0x6c] sm:$0x1]
  %v1353 = vsel %vm933, %v1215, %v1352
  %1354 = vst [vmem:[%s1280 + $0x6c] sm:$0x1] %v1353
  %v1355 = vld [vmem:[%s1280 + $0x70] sm:$0xf]
  %v1356 = vsel %vm1282, %v1222, %v1355
  %1357 = vst [vmem:[%s1280 + $0x70] sm:$0xf] %v1356
  %v1358 = vld [vmem:[%s1280 + $0x74] sm:$0x1]
  %v1359 = vsel %vm933, %v1223, %v1358
  %1360 = vst [vmem:[%s1280 + $0x74] sm:$0x1] %v1359
  %v1361 = vld [vmem:[%s1280 + $0x78] sm:$0xf]
  %v1362 = vsel %vm1282, %v1230, %v1361
  %1363 = vst [vmem:[%s1280 + $0x78] sm:$0xf] %v1362
  %v1364 = vld [vmem:[%s1280 + $0x7c] sm:$0x1]
  %v1365 = vsel %vm933, %v1231, %v1364
  %1366 = vst [vmem:[%s1280 + $0x7c] sm:$0x1] %v1365
  %v1367 = vld [vmem:[%s1280 + $0x80] sm:$0xf]
  %v1368 = vsel %vm1282, %v1238, %v1367
  %1369 = vst [vmem:[%s1280 + $0x80] sm:$0xf] %v1368
  %v1370 = vld [vmem:[%s1280 + $0x84] sm:$0x1]
  %v1371 = vsel %vm933, %v1239, %v1370
  %1372 = vst [vmem:[%s1280 + $0x84] sm:$0x1] %v1371
  %v1373 = vld [vmem:[%s1280 + $0x88] sm:$0xf]
  %v1374 = vsel %vm1282, %v1246, %v1373
  %1375 = vst [vmem:[%s1280 + $0x88] sm:$0xf] %v1374
  %v1376 = vld [vmem:[%s1280 + $0x8c] sm:$0x1]
  %v1377 = vsel %vm933, %v1247, %v1376
  %1378 = vst [vmem:[%s1280 + $0x8c] sm:$0x1] %v1377
  %v1379 = vld [vmem:[#allocation2] sm:$0xf]
  %v1380 = vld [vmem:[#allocation2 + $0x8] sm:$0xf]
  %v1381 = vld [vmem:[#allocation2 + $0x10] sm:$0xf]
  %v1382 = vld [vmem:[#allocation2 + $0x18] sm:$0xf]
  %v1383 = vld [vmem:[#allocation2 + $0x20] sm:$0xf]
  %v1384 = vld [vmem:[#allocation2 + $0x28] sm:$0xf]
  %v1385 = vld [vmem:[#allocation2 + $0x30] sm:$0xf]
  %v1386 = vld [vmem:[#allocation2 + $0x38] sm:$0xf]
  %v1387 = vld [vmem:[#allocation2 + $0x50] sm:$0xf]
  %v1388 = vld [vmem:[#allocation2 + $0x58] sm:$0xf]
  %v1389 = vld [vmem:[#allocation2 + $0x60] sm:$0xf]
  %v1390 = vld [vmem:[#allocation2 + $0x68] sm:$0xf]
  %v1391 = vld [vmem:[#allocation2 + $0x70] sm:$0xf]
  %v1392 = vld [vmem:[#allocation2 + $0x78] sm:$0xf]
  %v1393 = vld [vmem:[#allocation2 + $0x80] sm:$0xf]
  %v1394 = vld [vmem:[#allocation2 + $0x88] sm:$0xf]
  %v1395 = vld [vmem:[#allocation2 + $0x4] sm:$0x1]
  %v1396 = vld [vmem:[#allocation2 + $0xc] sm:$0x1]
  %v1397 = vld [vmem:[#allocation2 + $0x14] sm:$0x1]
  %v1398 = vld [vmem:[#allocation2 + $0x1c] sm:$0x1]
  %v1399 = vld [vmem:[#allocation2 + $0x24] sm:$0x1]
  %v1400 = vld [vmem:[#allocation2 + $0x2c] sm:$0x1]
  %v1401 = vld [vmem:[#allocation2 + $0x34] sm:$0x1]
  %v1402 = vld [vmem:[#allocation2 + $0x3c] sm:$0x1]
  %v1403 = vld [vmem:[#allocation2 + $0x54] sm:$0x1]
  %v1404 = vld [vmem:[#allocation2 + $0x5c] sm:$0x1]
  %v1405 = vld [vmem:[#allocation2 + $0x64] sm:$0x1]
  %v1406 = vld [vmem:[#allocation2 + $0x6c] sm:$0x1]
  %v1407 = vld [vmem:[#allocation2 + $0x74] sm:$0x1]
  %v1408 = vld [vmem:[#allocation2 + $0x7c] sm:$0x1]
  %v1409 = vld [vmem:[#allocation2 + $0x84] sm:$0x1]
  %v1410 = vld [vmem:[#allocation2 + $0x8c] sm:$0x1]
  %v1411 = vld [vmem:[#allocation2] sm:$0xe]
  %v1412 = vld [vmem:[#allocation2 + $0x8] sm:$0xe]
  %v1413 = vld [vmem:[#allocation2 + $0x10] sm:$0xe]
  %v1414 = vld [vmem:[#allocation2 + $0x18] sm:$0xe]
  %v1415 = vld [vmem:[#allocation2 + $0x20] sm:$0xe]
  %v1416 = vld [vmem:[#allocation2 + $0x28] sm:$0xe]
  %v1417 = vld [vmem:[#allocation2 + $0x30] sm:$0xe]
  %v1418 = vld [vmem:[#allocation2 + $0x38] sm:$0xe]
  %v1419 = vld [vmem:[#allocation2 + $0x50] sm:$0xe]
  %v1420 = vld [vmem:[#allocation2 + $0x58] sm:$0xe]
  %v1421 = vld [vmem:[#allocation2 + $0x60] sm:$0xe]
  %v1422 = vld [vmem:[#allocation2 + $0x68] sm:$0xe]
  %v1423 = vld [vmem:[#allocation2 + $0x70] sm:$0xe]
  %v1424 = vld [vmem:[#allocation2 + $0x78] sm:$0xe]
  %v1425 = vld [vmem:[#allocation2 + $0x80] sm:$0xe]
  %v1426 = vld [vmem:[#allocation2 + $0x88] sm:$0xe]
  %v1427 = vld [vmem:[%s1280] sm:$0xf]
  %v1428 = vld [vmem:[%s1280 + $0x8] sm:$0xf]
  %v1429 = vld [vmem:[%s1280 + $0x10] sm:$0xf]
  %v1430 = vld [vmem:[%s1280 + $0x18] sm:$0xf]
  %v1431 = vld [vmem:[%s1280 + $0x20] sm:$0xf]
  %v1432 = vld [vmem:[%s1280 + $0x28] sm:$0xf]
  %v1433 = vld [vmem:[%s1280 + $0x30] sm:$0xf]
  %v1434 = vld [vmem:[%s1280 + $0x38] sm:$0xf]
  %v1435 = vld [vmem:[%s1280 + $0x50] sm:$0xf]
  %v1436 = vld [vmem:[%s1280 + $0x58] sm:$0xf]
  %v1437 = vld [vmem:[%s1280 + $0x60] sm:$0xf]
  %v1438 = vld [vmem:[%s1280 + $0x68] sm:$0xf]
  %v1439 = vld [vmem:[%s1280 + $0x70] sm:$0xf]
  %v1440 = vld [vmem:[%s1280 + $0x78] sm:$0xf]
  %v1441 = vld [vmem:[%s1280 + $0x80] sm:$0xf]
  %v1442 = vld [vmem:[%s1280 + $0x88] sm:$0xf]
  %v1443 = vld [vmem:[%s1280 + $0x4] sm:$0x1]
  %v1444 = vld [vmem:[%s1280 + $0xc] sm:$0x1]
  %v1445 = vld [vmem:[%s1280 + $0x14] sm:$0x1]
  %v1446 = vld [vmem:[%s1280 + $0x1c] sm:$0x1]
  %v1447 = vld [vmem:[%s1280 + $0x24] sm:$0x1]
  %v1448 = vld [vmem:[%s1280 + $0x2c] sm:$0x1]
  %v1449 = vld [vmem:[%s1280 + $0x34] sm:$0x1]
  %v1450 = vld [vmem:[%s1280 + $0x3c] sm:$0x1]
  %v1451 = vld [vmem:[%s1280 + $0x54] sm:$0x1]
  %v1452 = vld [vmem:[%s1280 + $0x5c] sm:$0x1]
  %v1453 = vld [vmem:[%s1280 + $0x64] sm:$0x1]
  %v1454 = vld [vmem:[%s1280 + $0x6c] sm:$0x1]
  %v1455 = vld [vmem:[%s1280 + $0x74] sm:$0x1]
  %v1456 = vld [vmem:[%s1280 + $0x7c] sm:$0x1]
  %v1457 = vld [vmem:[%s1280 + $0x84] sm:$0x1]
  %v1458 = vld [vmem:[%s1280 + $0x8c] sm:$0x1]
  %v1459 = vld [vmem:[%s1280] sm:$0xe]
  %v1460 = vld [vmem:[%s1280 + $0x8] sm:$0xe]
  %v1461 = vld [vmem:[%s1280 + $0x10] sm:$0xe]
  %v1462 = vld [vmem:[%s1280 + $0x18] sm:$0xe]
  %v1463 = vld [vmem:[%s1280 + $0x20] sm:$0xe]
  %v1464 = vld [vmem:[%s1280 + $0x28] sm:$0xe]
  %v1465 = vld [vmem:[%s1280 + $0x30] sm:$0xe]
  %v1466 = vld [vmem:[%s1280 + $0x38] sm:$0xe]
  %v1467 = vld [vmem:[%s1280 + $0x50] sm:$0xe]
  %v1468 = vld [vmem:[%s1280 + $0x58] sm:$0xe]
  %v1469 = vld [vmem:[%s1280 + $0x60] sm:$0xe]
  %v1470 = vld [vmem:[%s1280 + $0x68] sm:$0xe]
  %v1471 = vld [vmem:[%s1280 + $0x70] sm:$0xe]
  %v1472 = vld [vmem:[%s1280 + $0x78] sm:$0xe]
  %v1473 = vld [vmem:[%s1280 + $0x80] sm:$0xe]
  %v1474 = vld [vmem:[%s1280 + $0x88] sm:$0xe]
  %s1475 = scalar_lea.vmem [#allocation2], 16
  %v1476 = vld [vmem:[%s1475] sm:$0xf]
  %v1477 = vld [vmem:[%s1475 + $0x8] sm:$0xf]
  %v1478 = vld [vmem:[%s1475 + $0x10] sm:$0xf]
  %v1479 = vld [vmem:[%s1475 + $0x18] sm:$0xf]
  %v1480 = vld [vmem:[%s1475 + $0x20] sm:$0xf]
  %v1481 = vld [vmem:[%s1475 + $0x28] sm:$0xf]
  %v1482 = vld [vmem:[%s1475 + $0x30] sm:$0xf]
  %v1483 = vld [vmem:[%s1475 + $0x38] sm:$0xf]
  %v1484 = vld [vmem:[%s1475 + $0x50] sm:$0xf]
  %v1485 = vld [vmem:[%s1475 + $0x58] sm:$0xf]
  %v1486 = vld [vmem:[%s1475 + $0x60] sm:$0xf]
  %v1487 = vld [vmem:[%s1475 + $0x68] sm:$0xf]
  %v1488 = vld [vmem:[%s1475 + $0x70] sm:$0xf]
  %v1489 = vld [vmem:[%s1475 + $0x78] sm:$0xf]
  %v1490 = vld [vmem:[%s1475 + $0x80] sm:$0xf]
  %v1491 = vld [vmem:[%s1475 + $0x88] sm:$0xf]
  %v1492 = vld [vmem:[%s1475 + $0x4] sm:$0x1]
  %v1493 = vld [vmem:[%s1475 + $0xc] sm:$0x1]
  %v1494 = vld [vmem:[%s1475 + $0x14] sm:$0x1]
  %v1495 = vld [vmem:[%s1475 + $0x1c] sm:$0x1]
  %v1496 = vld [vmem:[%s1475 + $0x24] sm:$0x1]
  %v1497 = vld [vmem:[%s1475 + $0x2c] sm:$0x1]
  %v1498 = vld [vmem:[%s1475 + $0x34] sm:$0x1]
  %v1499 = vld [vmem:[%s1475 + $0x3c] sm:$0x1]
  %v1500 = vld [vmem:[%s1475 + $0x54] sm:$0x1]
  %v1501 = vld [vmem:[%s1475 + $0x5c] sm:$0x1]
  %v1502 = vld [vmem:[%s1475 + $0x64] sm:$0x1]
  %v1503 = vld [vmem:[%s1475 + $0x6c] sm:$0x1]
  %v1504 = vld [vmem:[%s1475 + $0x74] sm:$0x1]
  %v1505 = vld [vmem:[%s1475 + $0x7c] sm:$0x1]
  %v1506 = vld [vmem:[%s1475 + $0x84] sm:$0x1]
  %v1507 = vld [vmem:[%s1475 + $0x8c] sm:$0x1]
  %v1508 = vld [vmem:[%s1475] sm:$0xe]
  %v1509 = vld [vmem:[%s1475 + $0x8] sm:$0xe]
  %v1510 = vld [vmem:[%s1475 + $0x10] sm:$0xe]
  %v1511 = vld [vmem:[%s1475 + $0x18] sm:$0xe]
  %v1512 = vld [vmem:[%s1475 + $0x20] sm:$0xe]
  %v1513 = vld [vmem:[%s1475 + $0x28] sm:$0xe]
  %v1514 = vld [vmem:[%s1475 + $0x30] sm:$0xe]
  %v1515 = vld [vmem:[%s1475 + $0x38] sm:$0xe]
  %v1516 = vld [vmem:[%s1475 + $0x50] sm:$0xe]
  %v1517 = vld [vmem:[%s1475 + $0x58] sm:$0xe]
  %v1518 = vld [vmem:[%s1475 + $0x60] sm:$0xe]
  %v1519 = vld [vmem:[%s1475 + $0x68] sm:$0xe]
  %v1520 = vld [vmem:[%s1475 + $0x70] sm:$0xe]
  %v1521 = vld [vmem:[%s1475 + $0x78] sm:$0xe]
  %v1522 = vld [vmem:[%s1475 + $0x80] sm:$0xe]
  %v1523 = vld [vmem:[%s1475 + $0x88] sm:$0xe]
  %v1556 = vunpack.c.l.b16 %v1379
  %v1557 = vunpack.c.l.b16 %v1395
  %v1558 = vunpack.c.l.b16 %v1380
  %v1559 = vunpack.c.l.b16 %v1396
  %v1560 = vunpack.c.l.b16 %v1381
  %v1561 = vunpack.c.l.b16 %v1397
  %v1562 = vunpack.c.l.b16 %v1382
  %v1563 = vunpack.c.l.b16 %v1398
  %v1564 = vunpack.c.l.b16 %v1383
  %v1565 = vunpack.c.l.b16 %v1399
  %v1566 = vunpack.c.l.b16 %v1384
  %v1567 = vunpack.c.l.b16 %v1400
  %v1568 = vunpack.c.l.b16 %v1385
  %v1569 = vunpack.c.l.b16 %v1401
  %v1570 = vunpack.c.l.b16 %v1386
  %v1571 = vunpack.c.l.b16 %v1402
  %v1572 = vunpack.c.l.b16 %v1387
  %v1573 = vunpack.c.l.b16 %v1403
  %v1574 = vunpack.c.l.b16 %v1388
  %v1575 = vunpack.c.l.b16 %v1404
  %v1576 = vunpack.c.l.b16 %v1389
  %v1577 = vunpack.c.l.b16 %v1405
  %v1578 = vunpack.c.l.b16 %v1390
  %v1579 = vunpack.c.l.b16 %v1406
  %v1580 = vunpack.c.l.b16 %v1391
  %v1581 = vunpack.c.l.b16 %v1407
  %v1582 = vunpack.c.l.b16 %v1392
  %v1583 = vunpack.c.l.b16 %v1408
  %v1584 = vunpack.c.l.b16 %v1393
  %v1585 = vunpack.c.l.b16 %v1409
  %v1586 = vunpack.c.l.b16 %v1394
  %v1587 = vunpack.c.l.b16 %v1410
  %v1588 = vpack.c.b16 %v1557, %v1556
  %v1589 = vpack.c.b16 %v1559, %v1558
  %v1590 = vpack.c.b16 %v1561, %v1560
  %v1591 = vpack.c.b16 %v1563, %v1562
  %v1592 = vpack.c.b16 %v1565, %v1564
  %v1593 = vpack.c.b16 %v1567, %v1566
  %v1594 = vpack.c.b16 %v1569, %v1568
  %v1595 = vpack.c.b16 %v1571, %v1570
  %v1596 = vpack.c.b16 %v1573, %v1572
  %v1597 = vpack.c.b16 %v1575, %v1574
  %v1598 = vpack.c.b16 %v1577, %v1576
  %v1599 = vpack.c.b16 %v1579, %v1578
  %v1600 = vpack.c.b16 %v1581, %v1580
  %v1601 = vpack.c.b16 %v1583, %v1582
  %v1602 = vpack.c.b16 %v1585, %v1584
  %v1603 = vpack.c.b16 %v1587, %v1586
  %v1605 = vshrl.u32 %v1588, 16
  %v1607 = vshll.u32 %v1588, 16
  %v1609 = vrot.slane %v1607, 1
  %v1610 = vor.u32 %v1605, %v1609
  %v1612 = vshrl.u32 %v1589, 16
  %v1614 = vshll.u32 %v1589, 16
  %v1616 = vrot.slane %v1614, 1
  %v1617 = vor.u32 %v1612, %v1616
  %v1619 = vshrl.u32 %v1590, 16
  %v1621 = vshll.u32 %v1590, 16
  %v1623 = vrot.slane %v1621, 1
  %v1624 = vor.u32 %v1619, %v1623
  %v1626 = vshrl.u32 %v1591, 16
  %v1628 = vshll.u32 %v1591, 16
  %v1630 = vrot.slane %v1628, 1
  %v1631 = vor.u32 %v1626, %v1630
  %v1633 = vshrl.u32 %v1592, 16
  %v1635 = vshll.u32 %v1592, 16
  %v1637 = vrot.slane %v1635, 1
  %v1638 = vor.u32 %v1633, %v1637
  %v1640 = vshrl.u32 %v1593, 16
  %v1642 = vshll.u32 %v1593, 16
  %v1644 = vrot.slane %v1642, 1
  %v1645 = vor.u32 %v1640, %v1644
  %v1647 = vshrl.u32 %v1594, 16
  %v1649 = vshll.u32 %v1594, 16
  %v1651 = vrot.slane %v1649, 1
  %v1652 = vor.u32 %v1647, %v1651
  %v1654 = vshrl.u32 %v1595, 16
  %v1656 = vshll.u32 %v1595, 16
  %v1658 = vrot.slane %v1656, 1
  %v1659 = vor.u32 %v1654, %v1658
  %v1661 = vshrl.u32 %v1596, 16
  %v1663 = vshll.u32 %v1596, 16
  %v1665 = vrot.slane %v1663, 1
  %v1666 = vor.u32 %v1661, %v1665
  %v1668 = vshrl.u32 %v1597, 16
  %v1670 = vshll.u32 %v1597, 16
  %v1672 = vrot.slane %v1670, 1
  %v1673 = vor.u32 %v1668, %v1672
  %v1675 = vshrl.u32 %v1598, 16
  %v1677 = vshll.u32 %v1598, 16
  %v1679 = vrot.slane %v1677, 1
  %v1680 = vor.u32 %v1675, %v1679
  %v1682 = vshrl.u32 %v1599, 16
  %v1684 = vshll.u32 %v1599, 16
  %v1686 = vrot.slane %v1684, 1
  %v1687 = vor.u32 %v1682, %v1686
  %v1689 = vshrl.u32 %v1600, 16
  %v1691 = vshll.u32 %v1600, 16
  %v1693 = vrot.slane %v1691, 1
  %v1694 = vor.u32 %v1689, %v1693
  %v1696 = vshrl.u32 %v1601, 16
  %v1698 = vshll.u32 %v1601, 16
  %v1700 = vrot.slane %v1698, 1
  %v1701 = vor.u32 %v1696, %v1700
  %v1703 = vshrl.u32 %v1602, 16
  %v1705 = vshll.u32 %v1602, 16
  %v1707 = vrot.slane %v1705, 1
  %v1708 = vor.u32 %v1703, %v1707
  %v1710 = vshrl.u32 %v1603, 16
  %v1712 = vshll.u32 %v1603, 16
  %v1714 = vrot.slane %v1712, 1
  %v1715 = vor.u32 %v1710, %v1714
  %1716 = vrot.lane.b32.xlu0 %v1610, 8
  %v1717 = vpop.permute.xlu0 %1716
  %1718 = vrot.lane.b32.xlu0 %v1617, 8
  %v1719 = vpop.permute.xlu0 %1718
  %1720 = vrot.lane.b32.xlu0 %v1624, 8
  %v1721 = vpop.permute.xlu0 %1720
  %1722 = vrot.lane.b32.xlu0 %v1631, 8
  %v1723 = vpop.permute.xlu0 %1722
  %1724 = vrot.lane.b32.xlu0 %v1638, 8
  %v1725 = vpop.permute.xlu0 %1724
  %1726 = vrot.lane.b32.xlu0 %v1645, 8
  %v1727 = vpop.permute.xlu0 %1726
  %1728 = vrot.lane.b32.xlu0 %v1652, 8
  %v1729 = vpop.permute.xlu0 %1728
  %1730 = vrot.lane.b32.xlu0 %v1659, 8
  %v1731 = vpop.permute.xlu0 %1730
  %1732 = vrot.lane.b32.xlu0 %v1666, 8
  %v1733 = vpop.permute.xlu0 %1732
  %1734 = vrot.lane.b32.xlu0 %v1673, 8
  %v1735 = vpop.permute.xlu0 %1734
  %1736 = vrot.lane.b32.xlu0 %v1680, 8
  %v1737 = vpop.permute.xlu0 %1736
  %1738 = vrot.lane.b32.xlu0 %v1687, 8
  %v1739 = vpop.permute.xlu0 %1738
  %1740 = vrot.lane.b32.xlu0 %v1694, 8
  %v1741 = vpop.permute.xlu0 %1740
  %1742 = vrot.lane.b32.xlu0 %v1701, 8
  %v1743 = vpop.permute.xlu0 %1742
  %1744 = vrot.lane.b32.xlu0 %v1708, 8
  %v1745 = vpop.permute.xlu0 %1744
  %1746 = vrot.lane.b32.xlu0 %v1715, 8
  %v1747 = vpop.permute.xlu0 %1746
  %v1764 = vunpack.c.l.b16 %v1411
  %v1765 = vunpack.c.l.b16 %v1412
  %v1766 = vunpack.c.l.b16 %v1413
  %v1767 = vunpack.c.l.b16 %v1414
  %v1768 = vunpack.c.l.b16 %v1415
  %v1769 = vunpack.c.l.b16 %v1416
  %v1770 = vunpack.c.l.b16 %v1417
  %v1771 = vunpack.c.l.b16 %v1418
  %v1772 = vunpack.c.l.b16 %v1419
  %v1773 = vunpack.c.l.b16 %v1420
  %v1774 = vunpack.c.l.b16 %v1421
  %v1775 = vunpack.c.l.b16 %v1422
  %v1776 = vunpack.c.l.b16 %v1423
  %v1777 = vunpack.c.l.b16 %v1424
  %v1778 = vunpack.c.l.b16 %v1425
  %v1779 = vunpack.c.l.b16 %v1426
  %v1780 = vpack.c.b16 %v1557, %v1764
  %v1781 = vpack.c.b16 %v1559, %v1765
  %v1782 = vpack.c.b16 %v1561, %v1766
  %v1783 = vpack.c.b16 %v1563, %v1767
  %v1784 = vpack.c.b16 %v1565, %v1768
  %v1785 = vpack.c.b16 %v1567, %v1769
  %v1786 = vpack.c.b16 %v1569, %v1770
  %v1787 = vpack.c.b16 %v1571, %v1771
  %v1788 = vpack.c.b16 %v1573, %v1772
  %v1789 = vpack.c.b16 %v1575, %v1773
  %v1790 = vpack.c.b16 %v1577, %v1774
  %v1791 = vpack.c.b16 %v1579, %v1775
  %v1792 = vpack.c.b16 %v1581, %v1776
  %v1793 = vpack.c.b16 %v1583, %v1777
  %v1794 = vpack.c.b16 %v1585, %v1778
  %v1795 = vpack.c.b16 %v1587, %v1779
  %v1796 = vrot.slane %v1780, 1
  %v1797 = vrot.slane %v1781, 1
  %v1798 = vrot.slane %v1782, 1
  %v1799 = vrot.slane %v1783, 1
  %v1800 = vrot.slane %v1784, 1
  %v1801 = vrot.slane %v1785, 1
  %v1802 = vrot.slane %v1786, 1
  %v1803 = vrot.slane %v1787, 1
  %v1804 = vrot.slane %v1788, 1
  %v1805 = vrot.slane %v1789, 1
  %v1806 = vrot.slane %v1790, 1
  %v1807 = vrot.slane %v1791, 1
  %v1808 = vrot.slane %v1792, 1
  %v1809 = vrot.slane %v1793, 1
  %v1810 = vrot.slane %v1794, 1
  %v1811 = vrot.slane %v1795, 1
  %1812 = vrot.lane.b32.xlu0 %v1796, 16
  %v1813 = vpop.permute.xlu0 %1812
  %1814 = vrot.lane.b32.xlu0 %v1797, 16
  %v1815 = vpop.permute.xlu0 %1814
  %1816 = vrot.lane.b32.xlu0 %v1798, 16
  %v1817 = vpop.permute.xlu0 %1816
  %1818 = vrot.lane.b32.xlu0 %v1799, 16
  %v1819 = vpop.permute.xlu0 %1818
  %1820 = vrot.lane.b32.xlu0 %v1800, 16
  %v1821 = vpop.permute.xlu0 %1820
  %1822 = vrot.lane.b32.xlu0 %v1801, 16
  %v1823 = vpop.permute.xlu0 %1822
  %1824 = vrot.lane.b32.xlu0 %v1802, 16
  %v1825 = vpop.permute.xlu0 %1824
  %1826 = vrot.lane.b32.xlu0 %v1803, 16
  %v1827 = vpop.permute.xlu0 %1826
  %1828 = vrot.lane.b32.xlu0 %v1804, 16
  %v1829 = vpop.permute.xlu0 %1828
  %1830 = vrot.lane.b32.xlu0 %v1805, 16
  %v1831 = vpop.permute.xlu0 %1830
  %1832 = vrot.lane.b32.xlu0 %v1806, 16
  %v1833 = vpop.permute.xlu0 %1832
  %1834 = vrot.lane.b32.xlu0 %v1807, 16
  %v1835 = vpop.permute.xlu0 %1834
  %1836 = vrot.lane.b32.xlu0 %v1808, 16
  %v1837 = vpop.permute.xlu0 %1836
  %1838 = vrot.lane.b32.xlu0 %v1809, 16
  %v1839 = vpop.permute.xlu0 %1838
  %1840 = vrot.lane.b32.xlu0 %v1810, 16
  %v1841 = vpop.permute.xlu0 %1840
  %1842 = vrot.lane.b32.xlu0 %v1811, 16
  %v1843 = vpop.permute.xlu0 %1842
  %v1860 = vunpack.c.l.b16 %v1427
  %v1861 = vunpack.c.l.b16 %v1428
  %v1862 = vunpack.c.l.b16 %v1429
  %v1863 = vunpack.c.l.b16 %v1430
  %v1864 = vunpack.c.l.b16 %v1431
  %v1865 = vunpack.c.l.b16 %v1432
  %v1866 = vunpack.c.l.b16 %v1433
  %v1867 = vunpack.c.l.b16 %v1434
  %v1868 = vunpack.c.l.b16 %v1435
  %v1869 = vunpack.c.l.b16 %v1436
  %v1870 = vunpack.c.l.b16 %v1437
  %v1871 = vunpack.c.l.b16 %v1438
  %v1872 = vunpack.c.l.b16 %v1439
  %v1873 = vunpack.c.l.b16 %v1440
  %v1874 = vunpack.c.l.b16 %v1441
  %v1875 = vunpack.c.l.b16 %v1442
  %v1876 = vpack.c.b16 %v1860, %v1860
  %v1877 = vpack.c.b16 %v1861, %v1861
  %v1878 = vpack.c.b16 %v1862, %v1862
  %v1879 = vpack.c.b16 %v1863, %v1863
  %v1880 = vpack.c.b16 %v1864, %v1864
  %v1881 = vpack.c.b16 %v1865, %v1865
  %v1882 = vpack.c.b16 %v1866, %v1866
  %v1883 = vpack.c.b16 %v1867, %v1867
  %v1884 = vpack.c.b16 %v1868, %v1868
  %v1885 = vpack.c.b16 %v1869, %v1869
  %v1886 = vpack.c.b16 %v1870, %v1870
  %v1887 = vpack.c.b16 %v1871, %v1871
  %v1888 = vpack.c.b16 %v1872, %v1872
  %v1889 = vpack.c.b16 %v1873, %v1873
  %v1890 = vpack.c.b16 %v1874, %v1874
  %v1891 = vpack.c.b16 %v1875, %v1875
  %1892 = vrot.lane.b32.xlu0 %v1876, 24
  %v1893 = vpop.permute.xlu0 %1892
  %1894 = vrot.lane.b32.xlu0 %v1877, 24
  %v1895 = vpop.permute.xlu0 %1894
  %1896 = vrot.lane.b32.xlu0 %v1878, 24
  %v1897 = vpop.permute.xlu0 %1896
  %1898 = vrot.lane.b32.xlu0 %v1879, 24
  %v1899 = vpop.permute.xlu0 %1898
  %1900 = vrot.lane.b32.xlu0 %v1880, 24
  %v1901 = vpop.permute.xlu0 %1900
  %1902 = vrot.lane.b32.xlu0 %v1881, 24
  %v1903 = vpop.permute.xlu0 %1902
  %1904 = vrot.lane.b32.xlu0 %v1882, 24
  %v1905 = vpop.permute.xlu0 %1904
  %1906 = vrot.lane.b32.xlu0 %v1883, 24
  %v1907 = vpop.permute.xlu0 %1906
  %1908 = vrot.lane.b32.xlu0 %v1884, 24
  %v1909 = vpop.permute.xlu0 %1908
  %1910 = vrot.lane.b32.xlu0 %v1885, 24
  %v1911 = vpop.permute.xlu0 %1910
  %1912 = vrot.lane.b32.xlu0 %v1886, 24
  %v1913 = vpop.permute.xlu0 %1912
  %1914 = vrot.lane.b32.xlu0 %v1887, 24
  %v1915 = vpop.permute.xlu0 %1914
  %1916 = vrot.lane.b32.xlu0 %v1888, 24
  %v1917 = vpop.permute.xlu0 %1916
  %1918 = vrot.lane.b32.xlu0 %v1889, 24
  %v1919 = vpop.permute.xlu0 %1918
  %1920 = vrot.lane.b32.xlu0 %v1890, 24
  %v1921 = vpop.permute.xlu0 %1920
  %1922 = vrot.lane.b32.xlu0 %v1891, 24
  %v1923 = vpop.permute.xlu0 %1922
  %v1940 = vunpack.c.l.b16 %v1443
  %v1941 = vunpack.c.l.b16 %v1444
  %v1942 = vunpack.c.l.b16 %v1445
  %v1943 = vunpack.c.l.b16 %v1446
  %v1944 = vunpack.c.l.b16 %v1447
  %v1945 = vunpack.c.l.b16 %v1448
  %v1946 = vunpack.c.l.b16 %v1449
  %v1947 = vunpack.c.l.b16 %v1450
  %v1948 = vunpack.c.l.b16 %v1451
  %v1949 = vunpack.c.l.b16 %v1452
  %v1950 = vunpack.c.l.b16 %v1453
  %v1951 = vunpack.c.l.b16 %v1454
  %v1952 = vunpack.c.l.b16 %v1455
  %v1953 = vunpack.c.l.b16 %v1456
  %v1954 = vunpack.c.l.b16 %v1457
  %v1955 = vunpack.c.l.b16 %v1458
  %v1956 = vpack.c.b16 %v1940, %v1860
  %v1957 = vpack.c.b16 %v1941, %v1861
  %v1958 = vpack.c.b16 %v1942, %v1862
  %v1959 = vpack.c.b16 %v1943, %v1863
  %v1960 = vpack.c.b16 %v1944, %v1864
  %v1961 = vpack.c.b16 %v1945, %v1865
  %v1962 = vpack.c.b16 %v1946, %v1866
  %v1963 = vpack.c.b16 %v1947, %v1867
  %v1964 = vpack.c.b16 %v1948, %v1868
  %v1965 = vpack.c.b16 %v1949, %v1869
  %v1966 = vpack.c.b16 %v1950, %v1870
  %v1967 = vpack.c.b16 %v1951, %v1871
  %v1968 = vpack.c.b16 %v1952, %v1872
  %v1969 = vpack.c.b16 %v1953, %v1873
  %v1970 = vpack.c.b16 %v1954, %v1874
  %v1971 = vpack.c.b16 %v1955, %v1875
  %v1973 = vshrl.u32 %v1956, 16
  %v1975 = vshll.u32 %v1956, 16
  %v1977 = vrot.slane %v1975, 1
  %v1978 = vor.u32 %v1973, %v1977
  %v1980 = vshrl.u32 %v1957, 16
  %v1982 = vshll.u32 %v1957, 16
  %v1984 = vrot.slane %v1982, 1
  %v1985 = vor.u32 %v1980, %v1984
  %v1987 = vshrl.u32 %v1958, 16
  %v1989 = vshll.u32 %v1958, 16
  %v1991 = vrot.slane %v1989, 1
  %v1992 = vor.u32 %v1987, %v1991
  %v1994 = vshrl.u32 %v1959, 16
  %v1996 = vshll.u32 %v1959, 16
  %v1998 = vrot.slane %v1996, 1
  %v1999 = vor.u32 %v1994, %v1998
  %v2001 = vshrl.u32 %v1960, 16
  %v2003 = vshll.u32 %v1960, 16
  %v2005 = vrot.slane %v2003, 1
  %v2006 = vor.u32 %v2001, %v2005
  %v2008 = vshrl.u32 %v1961, 16
  %v2010 = vshll.u32 %v1961, 16
  %v2012 = vrot.slane %v2010, 1
  %v2013 = vor.u32 %v2008, %v2012
  %v2015 = vshrl.u32 %v1962, 16
  %v2017 = vshll.u32 %v1962, 16
  %v2019 = vrot.slane %v2017, 1
  %v2020 = vor.u32 %v2015, %v2019
  %v2022 = vshrl.u32 %v1963, 16
  %v2024 = vshll.u32 %v1963, 16
  %v2026 = vrot.slane %v2024, 1
  %v2027 = vor.u32 %v2022, %v2026
  %v2029 = vshrl.u32 %v1964, 16
  %v2031 = vshll.u32 %v1964, 16
  %v2033 = vrot.slane %v2031, 1
  %v2034 = vor.u32 %v2029, %v2033
  %v2036 = vshrl.u32 %v1965, 16
  %v2038 = vshll.u32 %v1965, 16
  %v2040 = vrot.slane %v2038, 1
  %v2041 = vor.u32 %v2036, %v2040
  %v2043 = vshrl.u32 %v1966, 16
  %v2045 = vshll.u32 %v1966, 16
  %v2047 = vrot.slane %v2045, 1
  %v2048 = vor.u32 %v2043, %v2047
  %v2050 = vshrl.u32 %v1967, 16
  %v2052 = vshll.u32 %v1967, 16
  %v2054 = vrot.slane %v2052, 1
  %v2055 = vor.u32 %v2050, %v2054
  %v2057 = vshrl.u32 %v1968, 16
  %v2059 = vshll.u32 %v1968, 16
  %v2061 = vrot.slane %v2059, 1
  %v2062 = vor.u32 %v2057, %v2061
  %v2064 = vshrl.u32 %v1969, 16
  %v2066 = vshll.u32 %v1969, 16
  %v2068 = vrot.slane %v2066, 1
  %v2069 = vor.u32 %v2064, %v2068
  %v2071 = vshrl.u32 %v1970, 16
  %v2073 = vshll.u32 %v1970, 16
  %v2075 = vrot.slane %v2073, 1
  %v2076 = vor.u32 %v2071, %v2075
  %v2078 = vshrl.u32 %v1971, 16
  %v2080 = vshll.u32 %v1971, 16
  %v2082 = vrot.slane %v2080, 1
  %v2083 = vor.u32 %v2078, %v2082
  %2084 = vrot.lane.b32.xlu0 %v1978, 32
  %v2085 = vpop.permute.xlu0 %2084
  %2086 = vrot.lane.b32.xlu0 %v1985, 32
  %v2087 = vpop.permute.xlu0 %2086
  %2088 = vrot.lane.b32.xlu0 %v1992, 32
  %v2089 = vpop.permute.xlu0 %2088
  %2090 = vrot.lane.b32.xlu0 %v1999, 32
  %v2091 = vpop.permute.xlu0 %2090
  %2092 = vrot.lane.b32.xlu0 %v2006, 32
  %v2093 = vpop.permute.xlu0 %2092
  %2094 = vrot.lane.b32.xlu0 %v2013, 32
  %v2095 = vpop.permute.xlu0 %2094
  %2096 = vrot.lane.b32.xlu0 %v2020, 32
  %v2097 = vpop.permute.xlu0 %2096
  %2098 = vrot.lane.b32.xlu0 %v2027, 32
  %v2099 = vpop.permute.xlu0 %2098
  %2100 = vrot.lane.b32.xlu0 %v2034, 32
  %v2101 = vpop.permute.xlu0 %2100
  %2102 = vrot.lane.b32.xlu0 %v2041, 32
  %v2103 = vpop.permute.xlu0 %2102
  %2104 = vrot.lane.b32.xlu0 %v2048, 32
  %v2105 = vpop.permute.xlu0 %2104
  %2106 = vrot.lane.b32.xlu0 %v2055, 32
  %v2107 = vpop.permute.xlu0 %2106
  %2108 = vrot.lane.b32.xlu0 %v2062, 32
  %v2109 = vpop.permute.xlu0 %2108
  %2110 = vrot.lane.b32.xlu0 %v2069, 32
  %v2111 = vpop.permute.xlu0 %2110
  %2112 = vrot.lane.b32.xlu0 %v2076, 32
  %v2113 = vpop.permute.xlu0 %2112
  %2114 = vrot.lane.b32.xlu0 %v2083, 32
  %v2115 = vpop.permute.xlu0 %2114
  %v2132 = vunpack.c.l.b16 %v1459
  %v2133 = vunpack.c.l.b16 %v1460
  %v2134 = vunpack.c.l.b16 %v1461
  %v2135 = vunpack.c.l.b16 %v1462
  %v2136 = vunpack.c.l.b16 %v1463
  %v2137 = vunpack.c.l.b16 %v1464
  %v2138 = vunpack.c.l.b16 %v1465
  %v2139 = vunpack.c.l.b16 %v1466
  %v2140 = vunpack.c.l.b16 %v1467
  %v2141 = vunpack.c.l.b16 %v1468
  %v2142 = vunpack.c.l.b16 %v1469
  %v2143 = vunpack.c.l.b16 %v1470
  %v2144 = vunpack.c.l.b16 %v1471
  %v2145 = vunpack.c.l.b16 %v1472
  %v2146 = vunpack.c.l.b16 %v1473
  %v2147 = vunpack.c.l.b16 %v1474
  %v2148 = vpack.c.b16 %v1940, %v2132
  %v2149 = vpack.c.b16 %v1941, %v2133
  %v2150 = vpack.c.b16 %v1942, %v2134
  %v2151 = vpack.c.b16 %v1943, %v2135
  %v2152 = vpack.c.b16 %v1944, %v2136
  %v2153 = vpack.c.b16 %v1945, %v2137
  %v2154 = vpack.c.b16 %v1946, %v2138
  %v2155 = vpack.c.b16 %v1947, %v2139
  %v2156 = vpack.c.b16 %v1948, %v2140
  %v2157 = vpack.c.b16 %v1949, %v2141
  %v2158 = vpack.c.b16 %v1950, %v2142
  %v2159 = vpack.c.b16 %v1951, %v2143
  %v2160 = vpack.c.b16 %v1952, %v2144
  %v2161 = vpack.c.b16 %v1953, %v2145
  %v2162 = vpack.c.b16 %v1954, %v2146
  %v2163 = vpack.c.b16 %v1955, %v2147
  %v2164 = vrot.slane %v2148, 1
  %v2165 = vrot.slane %v2149, 1
  %v2166 = vrot.slane %v2150, 1
  %v2167 = vrot.slane %v2151, 1
  %v2168 = vrot.slane %v2152, 1
  %v2169 = vrot.slane %v2153, 1
  %v2170 = vrot.slane %v2154, 1
  %v2171 = vrot.slane %v2155, 1
  %v2172 = vrot.slane %v2156, 1
  %v2173 = vrot.slane %v2157, 1
  %v2174 = vrot.slane %v2158, 1
  %v2175 = vrot.slane %v2159, 1
  %v2176 = vrot.slane %v2160, 1
  %v2177 = vrot.slane %v2161, 1
  %v2178 = vrot.slane %v2162, 1
  %v2179 = vrot.slane %v2163, 1
  %2180 = vrot.lane.b32.xlu0 %v2164, 40
  %v2181 = vpop.permute.xlu0 %2180
  %2182 = vrot.lane.b32.xlu0 %v2165, 40
  %v2183 = vpop.permute.xlu0 %2182
  %2184 = vrot.lane.b32.xlu0 %v2166, 40
  %v2185 = vpop.permute.xlu0 %2184
  %2186 = vrot.lane.b32.xlu0 %v2167, 40
  %v2187 = vpop.permute.xlu0 %2186
  %2188 = vrot.lane.b32.xlu0 %v2168, 40
  %v2189 = vpop.permute.xlu0 %2188
  %2190 = vrot.lane.b32.xlu0 %v2169, 40
  %v2191 = vpop.permute.xlu0 %2190
  %2192 = vrot.lane.b32.xlu0 %v2170, 40
  %v2193 = vpop.permute.xlu0 %2192
  %2194 = vrot.lane.b32.xlu0 %v2171, 40
  %v2195 = vpop.permute.xlu0 %2194
  %2196 = vrot.lane.b32.xlu0 %v2172, 40
  %v2197 = vpop.permute.xlu0 %2196
  %2198 = vrot.lane.b32.xlu0 %v2173, 40
  %v2199 = vpop.permute.xlu0 %2198
  %2200 = vrot.lane.b32.xlu0 %v2174, 40
  %v2201 = vpop.permute.xlu0 %2200
  %2202 = vrot.lane.b32.xlu0 %v2175, 40
  %v2203 = vpop.permute.xlu0 %2202
  %2204 = vrot.lane.b32.xlu0 %v2176, 40
  %v2205 = vpop.permute.xlu0 %2204
  %2206 = vrot.lane.b32.xlu0 %v2177, 40
  %v2207 = vpop.permute.xlu0 %2206
  %2208 = vrot.lane.b32.xlu0 %v2178, 40
  %v2209 = vpop.permute.xlu0 %2208
  %2210 = vrot.lane.b32.xlu0 %v2179, 40
  %v2211 = vpop.permute.xlu0 %2210
  %v2228 = vunpack.c.l.b16 %v1476
  %v2229 = vunpack.c.l.b16 %v1477
  %v2230 = vunpack.c.l.b16 %v1478
  %v2231 = vunpack.c.l.b16 %v1479
  %v2232 = vunpack.c.l.b16 %v1480
  %v2233 = vunpack.c.l.b16 %v1481
  %v2234 = vunpack.c.l.b16 %v1482
  %v2235 = vunpack.c.l.b16 %v1483
  %v2236 = vunpack.c.l.b16 %v1484
  %v2237 = vunpack.c.l.b16 %v1485
  %v2238 = vunpack.c.l.b16 %v1486
  %v2239 = vunpack.c.l.b16 %v1487
  %v2240 = vunpack.c.l.b16 %v1488
  %v2241 = vunpack.c.l.b16 %v1489
  %v2242 = vunpack.c.l.b16 %v1490
  %v2243 = vunpack.c.l.b16 %v1491
  %v2244 = vpack.c.b16 %v2228, %v2228
  %v2245 = vpack.c.b16 %v2229, %v2229
  %v2246 = vpack.c.b16 %v2230, %v2230
  %v2247 = vpack.c.b16 %v2231, %v2231
  %v2248 = vpack.c.b16 %v2232, %v2232
  %v2249 = vpack.c.b16 %v2233, %v2233
  %v2250 = vpack.c.b16 %v2234, %v2234
  %v2251 = vpack.c.b16 %v2235, %v2235
  %v2252 = vpack.c.b16 %v2236, %v2236
  %v2253 = vpack.c.b16 %v2237, %v2237
  %v2254 = vpack.c.b16 %v2238, %v2238
  %v2255 = vpack.c.b16 %v2239, %v2239
  %v2256 = vpack.c.b16 %v2240, %v2240
  %v2257 = vpack.c.b16 %v2241, %v2241
  %v2258 = vpack.c.b16 %v2242, %v2242
  %v2259 = vpack.c.b16 %v2243, %v2243
  %2260 = vrot.lane.b32.xlu0 %v2244, 48
  %v2261 = vpop.permute.xlu0 %2260
  %2262 = vrot.lane.b32.xlu0 %v2245, 48
  %v2263 = vpop.permute.xlu0 %2262
  %2264 = vrot.lane.b32.xlu0 %v2246, 48
  %v2265 = vpop.permute.xlu0 %2264
  %2266 = vrot.lane.b32.xlu0 %v2247, 48
  %v2267 = vpop.permute.xlu0 %2266
  %2268 = vrot.lane.b32.xlu0 %v2248, 48
  %v2269 = vpop.permute.xlu0 %2268
  %2270 = vrot.lane.b32.xlu0 %v2249, 48
  %v2271 = vpop.permute.xlu0 %2270
  %2272 = vrot.lane.b32.xlu0 %v2250, 48
  %v2273 = vpop.permute.xlu0 %2272
  %2274 = vrot.lane.b32.xlu0 %v2251, 48
  %v2275 = vpop.permute.xlu0 %2274
  %2276 = vrot.lane.b32.xlu0 %v2252, 48
  %v2277 = vpop.permute.xlu0 %2276
  %2278 = vrot.lane.b32.xlu0 %v2253, 48
  %v2279 = vpop.permute.xlu0 %2278
  %2280 = vrot.lane.b32.xlu0 %v2254, 48
  %v2281 = vpop.permute.xlu0 %2280
  %2282 = vrot.lane.b32.xlu0 %v2255, 48
  %v2283 = vpop.permute.xlu0 %2282
  %2284 = vrot.lane.b32.xlu0 %v2256, 48
  %v2285 = vpop.permute.xlu0 %2284
  %2286 = vrot.lane.b32.xlu0 %v2257, 48
  %v2287 = vpop.permute.xlu0 %2286
  %2288 = vrot.lane.b32.xlu0 %v2258, 48
  %v2289 = vpop.permute.xlu0 %2288
  %2290 = vrot.lane.b32.xlu0 %v2259, 48
  %v2291 = vpop.permute.xlu0 %2290
  %v2308 = vunpack.c.l.b16 %v1492
  %v2309 = vunpack.c.l.b16 %v1493
  %v2310 = vunpack.c.l.b16 %v1494
  %v2311 = vunpack.c.l.b16 %v1495
  %v2312 = vunpack.c.l.b16 %v1496
  %v2313 = vunpack.c.l.b16 %v1497
  %v2314 = vunpack.c.l.b16 %v1498
  %v2315 = vunpack.c.l.b16 %v1499
  %v2316 = vunpack.c.l.b16 %v1500
  %v2317 = vunpack.c.l.b16 %v1501
  %v2318 = vunpack.c.l.b16 %v1502
  %v2319 = vunpack.c.l.b16 %v1503
  %v2320 = vunpack.c.l.b16 %v1504
  %v2321 = vunpack.c.l.b16 %v1505
  %v2322 = vunpack.c.l.b16 %v1506
  %v2323 = vunpack.c.l.b16 %v1507
  %v2324 = vpack.c.b16 %v2308, %v2228
  %v2325 = vpack.c.b16 %v2309, %v2229
  %v2326 = vpack.c.b16 %v2310, %v2230
  %v2327 = vpack.c.b16 %v2311, %v2231
  %v2328 = vpack.c.b16 %v2312, %v2232
  %v2329 = vpack.c.b16 %v2313, %v2233
  %v2330 = vpack.c.b16 %v2314, %v2234
  %v2331 = vpack.c.b16 %v2315, %v2235
  %v2332 = vpack.c.b16 %v2316, %v2236
  %v2333 = vpack.c.b16 %v2317, %v2237
  %v2334 = vpack.c.b16 %v2318, %v2238
  %v2335 = vpack.c.b16 %v2319, %v2239
  %v2336 = vpack.c.b16 %v2320, %v2240
  %v2337 = vpack.c.b16 %v2321, %v2241
  %v2338 = vpack.c.b16 %v2322, %v2242
  %v2339 = vpack.c.b16 %v2323, %v2243
  %v2341 = vshrl.u32 %v2324, 16
  %v2343 = vshll.u32 %v2324, 16
  %v2345 = vrot.slane %v2343, 1
  %v2346 = vor.u32 %v2341, %v2345
  %v2348 = vshrl.u32 %v2325, 16
  %v2350 = vshll.u32 %v2325, 16
  %v2352 = vrot.slane %v2350, 1
  %v2353 = vor.u32 %v2348, %v2352
  %v2355 = vshrl.u32 %v2326, 16
  %v2357 = vshll.u32 %v2326, 16
  %v2359 = vrot.slane %v2357, 1
  %v2360 = vor.u32 %v2355, %v2359
  %v2362 = vshrl.u32 %v2327, 16
  %v2364 = vshll.u32 %v2327, 16
  %v2366 = vrot.slane %v2364, 1
  %v2367 = vor.u32 %v2362, %v2366
  %v2369 = vshrl.u32 %v2328, 16
  %v2371 = vshll.u32 %v2328, 16
  %v2373 = vrot.slane %v2371, 1
  %v2374 = vor.u32 %v2369, %v2373
  %v2376 = vshrl.u32 %v2329, 16
  %v2378 = vshll.u32 %v2329, 16
  %v2380 = vrot.slane %v2378, 1
  %v2381 = vor.u32 %v2376, %v2380
  %v2383 = vshrl.u32 %v2330, 16
  %v2385 = vshll.u32 %v2330, 16
  %v2387 = vrot.slane %v2385, 1
  %v2388 = vor.u32 %v2383, %v2387
  %v2390 = vshrl.u32 %v2331, 16
  %v2392 = vshll.u32 %v2331, 16
  %v2394 = vrot.slane %v2392, 1
  %v2395 = vor.u32 %v2390, %v2394
  %v2397 = vshrl.u32 %v2332, 16
  %v2399 = vshll.u32 %v2332, 16
  %v2401 = vrot.slane %v2399, 1
  %v2402 = vor.u32 %v2397, %v2401
  %v2404 = vshrl.u32 %v2333, 16
  %v2406 = vshll.u32 %v2333, 16
  %v2408 = vrot.slane %v2406, 1
  %v2409 = vor.u32 %v2404, %v2408
  %v2411 = vshrl.u32 %v2334, 16
  %v2413 = vshll.u32 %v2334, 16
  %v2415 = vrot.slane %v2413, 1
  %v2416 = vor.u32 %v2411, %v2415
  %v2418 = vshrl.u32 %v2335, 16
  %v2420 = vshll.u32 %v2335, 16
  %v2422 = vrot.slane %v2420, 1
  %v2423 = vor.u32 %v2418, %v2422
  %v2425 = vshrl.u32 %v2336, 16
  %v2427 = vshll.u32 %v2336, 16
  %v2429 = vrot.slane %v2427, 1
  %v2430 = vor.u32 %v2425, %v2429
  %v2432 = vshrl.u32 %v2337, 16
  %v2434 = vshll.u32 %v2337, 16
  %v2436 = vrot.slane %v2434, 1
  %v2437 = vor.u32 %v2432, %v2436
  %v2439 = vshrl.u32 %v2338, 16
  %v2441 = vshll.u32 %v2338, 16
  %v2443 = vrot.slane %v2441, 1
  %v2444 = vor.u32 %v2439, %v2443
  %v2446 = vshrl.u32 %v2339, 16
  %v2448 = vshll.u32 %v2339, 16
  %v2450 = vrot.slane %v2448, 1
  %v2451 = vor.u32 %v2446, %v2450
  %2452 = vrot.lane.b32.xlu0 %v2346, 56
  %v2453 = vpop.permute.xlu0 %2452
  %2454 = vrot.lane.b32.xlu0 %v2353, 56
  %v2455 = vpop.permute.xlu0 %2454
  %2456 = vrot.lane.b32.xlu0 %v2360, 56
  %v2457 = vpop.permute.xlu0 %2456
  %2458 = vrot.lane.b32.xlu0 %v2367, 56
  %v2459 = vpop.permute.xlu0 %2458
  %2460 = vrot.lane.b32.xlu0 %v2374, 56
  %v2461 = vpop.permute.xlu0 %2460
  %2462 = vrot.lane.b32.xlu0 %v2381, 56
  %v2463 = vpop.permute.xlu0 %2462
  %2464 = vrot.lane.b32.xlu0 %v2388, 56
  %v2465 = vpop.permute.xlu0 %2464
  %2466 = vrot.lane.b32.xlu0 %v2395, 56
  %v2467 = vpop.permute.xlu0 %2466
  %2468 = vrot.lane.b32.xlu0 %v2402, 56
  %v2469 = vpop.permute.xlu0 %2468
  %2470 = vrot.lane.b32.xlu0 %v2409, 56
  %v2471 = vpop.permute.xlu0 %2470
  %2472 = vrot.lane.b32.xlu0 %v2416, 56
  %v2473 = vpop.permute.xlu0 %2472
  %2474 = vrot.lane.b32.xlu0 %v2423, 56
  %v2475 = vpop.permute.xlu0 %2474
  %2476 = vrot.lane.b32.xlu0 %v2430, 56
  %v2477 = vpop.permute.xlu0 %2476
  %2478 = vrot.lane.b32.xlu0 %v2437, 56
  %v2479 = vpop.permute.xlu0 %2478
  %2480 = vrot.lane.b32.xlu0 %v2444, 56
  %v2481 = vpop.permute.xlu0 %2480
  %2482 = vrot.lane.b32.xlu0 %v2451, 56
  %v2483 = vpop.permute.xlu0 %2482
  %v2500 = vunpack.c.l.b16 %v1508
  %v2501 = vunpack.c.l.b16 %v1509
  %v2502 = vunpack.c.l.b16 %v1510
  %v2503 = vunpack.c.l.b16 %v1511
  %v2504 = vunpack.c.l.b16 %v1512
  %v2505 = vunpack.c.l.b16 %v1513
  %v2506 = vunpack.c.l.b16 %v1514
  %v2507 = vunpack.c.l.b16 %v1515
  %v2508 = vunpack.c.l.b16 %v1516
  %v2509 = vunpack.c.l.b16 %v1517
  %v2510 = vunpack.c.l.b16 %v1518
  %v2511 = vunpack.c.l.b16 %v1519
  %v2512 = vunpack.c.l.b16 %v1520
  %v2513 = vunpack.c.l.b16 %v1521
  %v2514 = vunpack.c.l.b16 %v1522
  %v2515 = vunpack.c.l.b16 %v1523
  %v2516 = vpack.c.b16 %v2308, %v2500
  %v2517 = vpack.c.b16 %v2309, %v2501
  %v2518 = vpack.c.b16 %v2310, %v2502
  %v2519 = vpack.c.b16 %v2311, %v2503
  %v2520 = vpack.c.b16 %v2312, %v2504
  %v2521 = vpack.c.b16 %v2313, %v2505
  %v2522 = vpack.c.b16 %v2314, %v2506
  %v2523 = vpack.c.b16 %v2315, %v2507
  %v2524 = vpack.c.b16 %v2316, %v2508
  %v2525 = vpack.c.b16 %v2317, %v2509
  %v2526 = vpack.c.b16 %v2318, %v2510
  %v2527 = vpack.c.b16 %v2319, %v2511
  %v2528 = vpack.c.b16 %v2320, %v2512
  %v2529 = vpack.c.b16 %v2321, %v2513
  %v2530 = vpack.c.b16 %v2322, %v2514
  %v2531 = vpack.c.b16 %v2323, %v2515
  %v2532 = vrot.slane %v2516, 1
  %v2533 = vrot.slane %v2517, 1
  %v2534 = vrot.slane %v2518, 1
  %v2535 = vrot.slane %v2519, 1
  %v2536 = vrot.slane %v2520, 1
  %v2537 = vrot.slane %v2521, 1
  %v2538 = vrot.slane %v2522, 1
  %v2539 = vrot.slane %v2523, 1
  %v2540 = vrot.slane %v2524, 1
  %v2541 = vrot.slane %v2525, 1
  %v2542 = vrot.slane %v2526, 1
  %v2543 = vrot.slane %v2527, 1
  %v2544 = vrot.slane %v2528, 1
  %v2545 = vrot.slane %v2529, 1
  %v2546 = vrot.slane %v2530, 1
  %v2547 = vrot.slane %v2531, 1
  %2548 = vrot.lane.b32.xlu0 %v2532, 64
  %v2549 = vpop.permute.xlu0 %2548
  %2550 = vrot.lane.b32.xlu0 %v2533, 64
  %v2551 = vpop.permute.xlu0 %2550
  %2552 = vrot.lane.b32.xlu0 %v2534, 64
  %v2553 = vpop.permute.xlu0 %2552
  %2554 = vrot.lane.b32.xlu0 %v2535, 64
  %v2555 = vpop.permute.xlu0 %2554
  %2556 = vrot.lane.b32.xlu0 %v2536, 64
  %v2557 = vpop.permute.xlu0 %2556
  %2558 = vrot.lane.b32.xlu0 %v2537, 64
  %v2559 = vpop.permute.xlu0 %2558
  %2560 = vrot.lane.b32.xlu0 %v2538, 64
  %v2561 = vpop.permute.xlu0 %2560
  %2562 = vrot.lane.b32.xlu0 %v2539, 64
  %v2563 = vpop.permute.xlu0 %2562
  %2564 = vrot.lane.b32.xlu0 %v2540, 64
  %v2565 = vpop.permute.xlu0 %2564
  %2566 = vrot.lane.b32.xlu0 %v2541, 64
  %v2567 = vpop.permute.xlu0 %2566
  %2568 = vrot.lane.b32.xlu0 %v2542, 64
  %v2569 = vpop.permute.xlu0 %2568
  %2570 = vrot.lane.b32.xlu0 %v2543, 64
  %v2571 = vpop.permute.xlu0 %2570
  %2572 = vrot.lane.b32.xlu0 %v2544, 64
  %v2573 = vpop.permute.xlu0 %2572
  %2574 = vrot.lane.b32.xlu0 %v2545, 64
  %v2575 = vpop.permute.xlu0 %2574
  %2576 = vrot.lane.b32.xlu0 %v2546, 64
  %v2577 = vpop.permute.xlu0 %2576
  %2578 = vrot.lane.b32.xlu0 %v2547, 64
  %v2579 = vpop.permute.xlu0 %2578
  %vm2580 = vcmask 64512
  %v2583 = vsel %vm2580, %v1379, %v1717
  %v2586 = vsel %vm2580, %v1380, %v1719
  %v2589 = vsel %vm2580, %v1381, %v1721
  %v2592 = vsel %vm2580, %v1382, %v1723
  %v2595 = vsel %vm2580, %v1383, %v1725
  %v2598 = vsel %vm2580, %v1384, %v1727
  %v2601 = vsel %vm2580, %v1385, %v1729
  %v2604 = vsel %vm2580, %v1386, %v1731
  %v2607 = vsel %vm2580, %v1387, %v1733
  %v2610 = vsel %vm2580, %v1388, %v1735
  %v2613 = vsel %vm2580, %v1389, %v1737
  %v2616 = vsel %vm2580, %v1390, %v1739
  %v2619 = vsel %vm2580, %v1391, %v1741
  %v2622 = vsel %vm2580, %v1392, %v1743
  %v2625 = vsel %vm2580, %v1393, %v1745
  %v2628 = vsel %vm2580, %v1394, %v1747
  %v2630 = vsel %vm579, %v2583, %v1813
  %v2632 = vsel %vm579, %v2586, %v1815
  %v2634 = vsel %vm579, %v2589, %v1817
  %v2636 = vsel %vm579, %v2592, %v1819
  %v2638 = vsel %vm579, %v2595, %v1821
  %v2640 = vsel %vm579, %v2598, %v1823
  %v2642 = vsel %vm579, %v2601, %v1825
  %v2644 = vsel %vm579, %v2604, %v1827
  %v2646 = vsel %vm579, %v2607, %v1829
  %v2648 = vsel %vm579, %v2610, %v1831
  %v2650 = vsel %vm579, %v2613, %v1833
  %v2652 = vsel %vm579, %v2616, %v1835
  %v2654 = vsel %vm579, %v2619, %v1837
  %v2656 = vsel %vm579, %v2622, %v1839
  %v2658 = vsel %vm579, %v2625, %v1841
  %v2660 = vsel %vm579, %v2628, %v1843
  %vm2661 = vcmask 195584
  %v2663 = vsel %vm2661, %v2630, %v1893
  %v2665 = vsel %vm2661, %v2632, %v1895
  %v2667 = vsel %vm2661, %v2634, %v1897
  %v2669 = vsel %vm2661, %v2636, %v1899
  %v2671 = vsel %vm2661, %v2638, %v1901
  %v2673 = vsel %vm2661, %v2640, %v1903
  %v2675 = vsel %vm2661, %v2642, %v1905
  %v2677 = vsel %vm2661, %v2644, %v1907
  %v2679 = vsel %vm2661, %v2646, %v1909
  %v2681 = vsel %vm2661, %v2648, %v1911
  %v2683 = vsel %vm2661, %v2650, %v1913
  %v2685 = vsel %vm2661, %v2652, %v1915
  %v2687 = vsel %vm2661, %v2654, %v1917
  %v2689 = vsel %vm2661, %v2656, %v1919
  %v2691 = vsel %vm2661, %v2658, %v1921
  %v2693 = vsel %vm2661, %v2660, %v1923
  %v2695 = vsel %vm628, %v2663, %v2085
  %v2697 = vsel %vm628, %v2665, %v2087
  %v2699 = vsel %vm628, %v2667, %v2089
  %v2701 = vsel %vm628, %v2669, %v2091
  %v2703 = vsel %vm628, %v2671, %v2093
  %v2705 = vsel %vm628, %v2673, %v2095
  %v2707 = vsel %vm628, %v2675, %v2097
  %v2709 = vsel %vm628, %v2677, %v2099
  %v2711 = vsel %vm628, %v2679, %v2101
  %v2713 = vsel %vm628, %v2681, %v2103
  %v2715 = vsel %vm628, %v2683, %v2105
  %v2717 = vsel %vm628, %v2685, %v2107
  %v2719 = vsel %vm628, %v2687, %v2109
  %v2721 = vsel %vm628, %v2689, %v2111
  %v2723 = vsel %vm628, %v2691, %v2113
  %v2725 = vsel %vm628, %v2693, %v2115
  %vm2726 = vcmask 326656
  %v2728 = vsel %vm2726, %v2695, %v2181
  %v2730 = vsel %vm2726, %v2697, %v2183
  %v2732 = vsel %vm2726, %v2699, %v2185
  %v2734 = vsel %vm2726, %v2701, %v2187
  %v2736 = vsel %vm2726, %v2703, %v2189
  %v2738 = vsel %vm2726, %v2705, %v2191
  %v2740 = vsel %vm2726, %v2707, %v2193
  %v2742 = vsel %vm2726, %v2709, %v2195
  %v2744 = vsel %vm2726, %v2711, %v2197
  %v2746 = vsel %vm2726, %v2713, %v2199
  %v2748 = vsel %vm2726, %v2715, %v2201
  %v2750 = vsel %vm2726, %v2717, %v2203
  %v2752 = vsel %vm2726, %v2719, %v2205
  %v2754 = vsel %vm2726, %v2721, %v2207
  %v2756 = vsel %vm2726, %v2723, %v2209
  %v2758 = vsel %vm2726, %v2725, %v2211
  %v2760 = vsel %vm661, %v2728, %v2261
  %v2762 = vsel %vm661, %v2730, %v2263
  %v2764 = vsel %vm661, %v2732, %v2265
  %v2766 = vsel %vm661, %v2734, %v2267
  %v2768 = vsel %vm661, %v2736, %v2269
  %v2770 = vsel %vm661, %v2738, %v2271
  %v2772 = vsel %vm661, %v2740, %v2273
  %v2774 = vsel %vm661, %v2742, %v2275
  %v2776 = vsel %vm661, %v2744, %v2277
  %v2778 = vsel %vm661, %v2746, %v2279
  %v2780 = vsel %vm661, %v2748, %v2281
  %v2782 = vsel %vm661, %v2750, %v2283
  %v2784 = vsel %vm661, %v2752, %v2285
  %v2786 = vsel %vm661, %v2754, %v2287
  %v2788 = vsel %vm661, %v2756, %v2289
  %v2790 = vsel %vm661, %v2758, %v2291
  %vm2791 = vcmask 457728
  %v2793 = vsel %vm2791, %v2760, %v2453
  %v2795 = vsel %vm2791, %v2762, %v2455
  %v2797 = vsel %vm2791, %v2764, %v2457
  %v2799 = vsel %vm2791, %v2766, %v2459
  %v2801 = vsel %vm2791, %v2768, %v2461
  %v2803 = vsel %vm2791, %v2770, %v2463
  %v2805 = vsel %vm2791, %v2772, %v2465
  %v2807 = vsel %vm2791, %v2774, %v2467
  %v2809 = vsel %vm2791, %v2776, %v2469
  %v2811 = vsel %vm2791, %v2778, %v2471
  %v2813 = vsel %vm2791, %v2780, %v2473
  %v2815 = vsel %vm2791, %v2782, %v2475
  %v2817 = vsel %vm2791, %v2784, %v2477
  %v2819 = vsel %vm2791, %v2786, %v2479
  %v2821 = vsel %vm2791, %v2788, %v2481
  %v2823 = vsel %vm2791, %v2790, %v2483
  %v2825 = vsel %vm766, %v2793, %v2549
  %v2827 = vsel %vm766, %v2795, %v2551
  %v2829 = vsel %vm766, %v2797, %v2553
  %v2831 = vsel %vm766, %v2799, %v2555
  %v2833 = vsel %vm766, %v2801, %v2557
  %v2835 = vsel %vm766, %v2803, %v2559
  %v2837 = vsel %vm766, %v2805, %v2561
  %v2839 = vsel %vm766, %v2807, %v2563
  %v2841 = vsel %vm766, %v2809, %v2565
  %v2843 = vsel %vm766, %v2811, %v2567
  %v2845 = vsel %vm766, %v2813, %v2569
  %v2847 = vsel %vm766, %v2815, %v2571
  %v2849 = vsel %vm766, %v2817, %v2573
  %v2851 = vsel %vm766, %v2819, %v2575
  %v2853 = vsel %vm766, %v2821, %v2577
  %v2855 = vsel %vm766, %v2823, %v2579
  %v2856 = vld [vmem:[%s2] sm:$0xf]
  %v2857 = vld [vmem:[%s2 + $0x4] sm:$0xf]
  %v2858 = vld [vmem:[%s2 + $0x8] sm:$0xf]
  %v2859 = vld [vmem:[%s2 + $0xc] sm:$0xf]
  %v2860 = vld [vmem:[%s2 + $0x10] sm:$0xf]
  %v2861 = vld [vmem:[%s2 + $0x14] sm:$0xf]
  %v2862 = vld [vmem:[%s2 + $0x18] sm:$0xf]
  %v2863 = vld [vmem:[%s2 + $0x1c] sm:$0xf]
  %v2864 = vld [vmem:[%s2 + $0x20] sm:$0xf]
  %v2881 = vunpack.c.l.b16 %v2825
  %v2882 = vunpack.c.l.b16 %v2827
  %v2883 = vunpack.c.l.b16 %v2829
  %v2884 = vunpack.c.l.b16 %v2831
  %v2885 = vunpack.c.l.b16 %v2833
  %v2886 = vunpack.c.l.b16 %v2835
  %v2887 = vunpack.c.l.b16 %v2837
  %v2888 = vunpack.c.l.b16 %v2839
  %v2889 = vunpack.c.l.b16 %v2841
  %v2890 = vunpack.c.l.b16 %v2843
  %v2891 = vunpack.c.l.b16 %v2845
  %v2892 = vunpack.c.l.b16 %v2847
  %v2893 = vunpack.c.l.b16 %v2849
  %v2894 = vunpack.c.l.b16 %v2851
  %v2895 = vunpack.c.l.b16 %v2853
  %v2896 = vunpack.c.l.b16 %v2855
  %v2897 = vpack.c.b16 %v2882, %v2881
  %v2898 = vpack.c.b16 %v2884, %v2883
  %v2899 = vpack.c.b16 %v2886, %v2885
  %v2900 = vpack.c.b16 %v2888, %v2887
  %v2901 = vpack.c.b16 %v2890, %v2889
  %v2902 = vpack.c.b16 %v2892, %v2891
  %v2903 = vpack.c.b16 %v2894, %v2893
  %v2904 = vpack.c.b16 %v2896, %v2895
  %v2914 = vunpack.c.l.b16 %v2856
  %v2915 = vunpack.c.l.b16 %v2857
  %v2916 = vunpack.c.l.b16 %v2858
  %v2917 = vunpack.c.l.b16 %v2859
  %v2918 = vunpack.c.l.b16 %v2860
  %v2919 = vunpack.c.l.b16 %v2861
  %v2920 = vunpack.c.l.b16 %v2862
  %v2921 = vunpack.c.l.b16 %v2863
  %v2922 = vunpack.c.l.b16 %v2864
  %v2923 = vpack.c.b16 %v2915, %v2914
  %v2924 = vpack.c.b16 %v2917, %v2916
  %v2925 = vpack.c.b16 %v2919, %v2918
  %v2926 = vpack.c.b16 %v2921, %v2920
  %v2927 = vpack.c.b16 %v2922, %v2922
  %vm2932 = vcmask 588800
  %v2934 = vsel %vm2932, %v2897, 0
  %v2937 = vsel %vm2932, %v2898, 0
  %v2940 = vsel %vm2932, %v2899, 0
  %v2943 = vsel %vm2932, %v2900, 0
  %v2946 = vsel %vm2932, %v2901, 0
  %v2949 = vsel %vm2932, %v2902, 0
  %v2952 = vsel %vm2932, %v2903, 0
  %v2955 = vsel %vm2932, %v2904, 0
  %vm2957 = vcmask 1043456
  %v2959 = vsel %vm2957, %v2927, 0
  %2961 = vmatprep.subr.bf16.mxu0 0
  %2962 = vmatpush1.bf16.msra.mxu0 %v2923
  %2963 = vmatprep.subr.bf16.mxu0 0
  %2964 = vmatpush1.bf16.msra.mxu0 %v2924
  %2965 = vmatprep.subr.bf16.mxu0 0
  %2966 = vmatpush1.bf16.msra.mxu0 %v2925
  %2967 = vmatprep.subr.bf16.mxu0 0
  %2968 = vmatpush1.bf16.msra.mxu0 %v2926
  %2969 = vmatprep.subr.bf16.mxu0 0
  %2970 = vmatpush1.bf16.msra.mxu0 %v2959
  %2971 = vmatprep.subr.bf16.mxu0 0
  %2972 = vmatpush1.bf16.msra.mxu0 0
  %2973 = vmatprep.subr.bf16.mxu0 0
  %2974 = vmatpush1.bf16.msra.mxu0 0
  %2975 = vmatprep.subr.bf16.mxu0 0
  %2976 = vmatpush1.bf16.msra.mxu0 0
  %2977 = vmatprep.subr.bf16.mxu0 0
  %2978 = vmatpush1.bf16.msra.mxu0 0
  %2979 = vmatprep.subr.bf16.mxu0 0
  %2980 = vmatpush1.bf16.msra.mxu0 0
  %2981 = vmatprep.subr.bf16.mxu0 0
  %2982 = vmatpush1.bf16.msra.mxu0 0
  %2983 = vmatprep.subr.bf16.mxu0 0
  %2984 = vmatpush1.bf16.msra.mxu0 0
  %2985 = vmatprep.subr.bf16.mxu0 0
  %2986 = vmatpush1.bf16.msra.mxu0 0
  %2987 = vmatprep.subr.bf16.mxu0 0
  %2988 = vmatpush1.bf16.msra.mxu0 0
  %2989 = vmatprep.subr.bf16.mxu0 0
  %2990 = vmatpush1.bf16.msra.mxu0 0
  %2991 = vmatprep.subr.bf16.mxu0 0
  %2992 = vmatpush1.bf16.msra.mxu0 0
  %2993 = vmatprep.mubr.bf16.mxu0 0
  %2994 = vmatmul.mubr.bf16.gmra.mrb[0].mxu0 %v2934
  %v2995 = vpop.f32.mrb[0].mxu0
  %v2996 = vadd.f32 0.0, %v2995
  %v2997 = vpop.f32.mrb[0].mxu0
  %v2998 = vpop.f32.mrb[0].mxu0
  %v2999 = vadd.f32 0.0, %v2998
  %v3000 = vpop.f32.mrb[0].mxu0
  %3001 = vmatprep.mubr.bf16.mxu0 0
  %3002 = vmatmul.mubr.bf16.gmra.mrb[0].mxu0 %v2937
  %v3003 = vpop.f32.mrb[0].mxu0
  %v3004 = vadd.f32 0.0, %v3003
  %v3005 = vpop.f32.mrb[0].mxu0
  %v3006 = vpop.f32.mrb[0].mxu0
  %v3007 = vadd.f32 0.0, %v3006
  %v3008 = vpop.f32.mrb[0].mxu0
  %3009 = vmatprep.mubr.bf16.mxu0 0
  %3010 = vmatmul.mubr.bf16.gmra.mrb[0].mxu0 %v2940
  %v3011 = vpop.f32.mrb[0].mxu0
  %v3012 = vadd.f32 0.0, %v3011
  %v3013 = vpop.f32.mrb[0].mxu0
  %v3014 = vpop.f32.mrb[0].mxu0
  %v3015 = vadd.f32 0.0, %v3014
  %v3016 = vpop.f32.mrb[0].mxu0
  %3017 = vmatprep.mubr.bf16.mxu0 0
  %3018 = vmatmul.mubr.bf16.gmra.mrb[0].mxu0 %v2943
  %v3019 = vpop.f32.mrb[0].mxu0
  %v3020 = vadd.f32 0.0, %v3019
  %v3021 = vpop.f32.mrb[0].mxu0
  %v3022 = vpop.f32.mrb[0].mxu0
  %v3023 = vadd.f32 0.0, %v3022
  %v3024 = vpop.f32.mrb[0].mxu0
  %3025 = vmatprep.mubr.bf16.mxu0 0
  %3026 = vmatmul.mubr.bf16.gmra.mrb[0].mxu0 %v2946
  %v3027 = vpop.f32.mrb[0].mxu0
  %v3028 = vadd.f32 0.0, %v3027
  %v3029 = vpop.f32.mrb[0].mxu0
  %v3030 = vpop.f32.mrb[0].mxu0
  %v3031 = vadd.f32 0.0, %v3030
  %v3032 = vpop.f32.mrb[0].mxu0
  %3033 = vmatprep.mubr.bf16.mxu0 0
  %3034 = vmatmul.mubr.bf16.gmra.mrb[0].mxu0 %v2949
  %v3035 = vpop.f32.mrb[0].mxu0
  %v3036 = vadd.f32 0.0, %v3035
  %v3037 = vpop.f32.mrb[0].mxu0
  %v3038 = vpop.f32.mrb[0].mxu0
  %v3039 = vadd.f32 0.0, %v3038
  %v3040 = vpop.f32.mrb[0].mxu0
  %3041 = vmatprep.mubr.bf16.mxu0 0
  %3042 = vmatmul.mubr.bf16.gmra.mrb[0].mxu0 %v2952
  %v3043 = vpop.f32.mrb[0].mxu0
  %v3044 = vadd.f32 0.0, %v3043
  %v3045 = vpop.f32.mrb[0].mxu0
  %v3046 = vpop.f32.mrb[0].mxu0
  %v3047 = vadd.f32 0.0, %v3046
  %v3048 = vpop.f32.mrb[0].mxu0
  %3049 = vmatprep.mubr.bf16.mxu0 0
  %3050 = vmatmul.mubr.bf16.gmra.mrb[0].mxu0 %v2955
  %v3051 = vpop.f32.mrb[0].mxu0
  %v3052 = vadd.f32 0.0, %v3051
  %v3053 = vpop.f32.mrb[0].mxu0
  %v3054 = vpop.f32.mrb[0].mxu0
  %v3055 = vadd.f32 0.0, %v3054
  %v3056 = vpop.f32.mrb[0].mxu0
  %3057 = vdwg.mxu0
  %v3058 = vmul.f32 %v2996, 0.2
  %v3059 = vmul.f32 %v2999, 0.2
  %v3060 = vmul.f32 %v3004, 0.2
  %v3061 = vmul.f32 %v3007, 0.2
  %v3062 = vmul.f32 %v3012, 0.2
  %v3063 = vmul.f32 %v3015, 0.2
  %v3064 = vmul.f32 %v3020, 0.2
  %v3065 = vmul.f32 %v3023, 0.2
  %v3066 = vmul.f32 %v3028, 0.2
  %v3067 = vmul.f32 %v3031, 0.2
  %v3068 = vmul.f32 %v3036, 0.2
  %v3069 = vmul.f32 %v3039, 0.2
  %v3070 = vmul.f32 %v3044, 0.2
  %v3071 = vmul.f32 %v3047, 0.2
  %v3072 = vmul.f32 %v3052, 0.2
  %v3073 = vmul.f32 %v3055, 0.2
  %v3074 = vmax.f32 %v2996, %v3058
  %v3075 = vmax.f32 %v2999, %v3059
  %v3076 = vmax.f32 %v3004, %v3060
  %v3077 = vmax.f32 %v3007, %v3061
  %v3078 = vmax.f32 %v3012, %v3062
  %v3079 = vmax.f32 %v3015, %v3063
  %v3080 = vmax.f32 %v3020, %v3064
  %v3081 = vmax.f32 %v3023, %v3065
  %v3082 = vmax.f32 %v3028, %v3066
  %v3083 = vmax.f32 %v3031, %v3067
  %v3084 = vmax.f32 %v3036, %v3068
  %v3085 = vmax.f32 %v3039, %v3069
  %v3086 = vmax.f32 %v3044, %v3070
  %v3087 = vmax.f32 %v3047, %v3071
  %v3088 = vmax.f32 %v3052, %v3072
  %v3089 = vmax.f32 %v3055, %v3073
  %v3090 = vld [vmem:[%s0] sm:$0xf]
  %v3091 = vld [vmem:[%s0 + $0x8] sm:$0xf]
  %v3092 = vld [vmem:[%s0 + $0x10] sm:$0xf]
  %v3093 = vld [vmem:[%s0 + $0x18] sm:$0xf]
  %v3094 = vld [vmem:[%s0 + $0x20] sm:$0xf]
  %v3095 = vld [vmem:[%s0 + $0x28] sm:$0xf]
  %v3096 = vld [vmem:[%s0 + $0x30] sm:$0xf]
  %v3097 = vld [vmem:[%s0 + $0x38] sm:$0xf]
  %v3098 = vld [vmem:[%s0 + $0x48] sm:$0xf]
  %v3099 = vld [vmem:[%s0 + $0x50] sm:$0xf]
  %v3100 = vld [vmem:[%s0 + $0x58] sm:$0xf]
  %v3101 = vld [vmem:[%s0 + $0x60] sm:$0xf]
  %v3102 = vld [vmem:[%s0 + $0x68] sm:$0xf]
  %v3103 = vld [vmem:[%s0 + $0x70] sm:$0xf]
  %v3104 = vld [vmem:[%s0 + $0x78] sm:$0xf]
  %v3105 = vld [vmem:[%s0 + $0x80] sm:$0xf]
  %v3106 = vunpack.c.l.bf16 %v3090
  %v3107 = vunpack.c.l.bf16 %v3091
  %v3108 = vunpack.c.l.bf16 %v3092
  %v3109 = vunpack.c.l.bf16 %v3093
  %v3110 = vunpack.c.l.bf16 %v3094
  %v3111 = vunpack.c.l.bf16 %v3095
  %v3112 = vunpack.c.l.bf16 %v3096
  %v3113 = vunpack.c.l.bf16 %v3097
  %v3114 = vunpack.c.l.bf16 %v3098
  %v3115 = vunpack.c.l.bf16 %v3099
  %v3116 = vunpack.c.l.bf16 %v3100
  %v3117 = vunpack.c.l.bf16 %v3101
  %v3118 = vunpack.c.l.bf16 %v3102
  %v3119 = vunpack.c.l.bf16 %v3103
  %v3120 = vunpack.c.l.bf16 %v3104
  %v3121 = vunpack.c.l.bf16 %v3105
  %v3122 = vld [vmem:[%s0 + $0x4] sm:$0x1]
  %v3123 = vld [vmem:[%s0 + $0xc] sm:$0x1]
  %v3124 = vld [vmem:[%s0 + $0x14] sm:$0x1]
  %v3125 = vld [vmem:[%s0 + $0x1c] sm:$0x1]
  %v3126 = vld [vmem:[%s0 + $0x24] sm:$0x1]
  %v3127 = vld [vmem:[%s0 + $0x2c] sm:$0x1]
  %v3128 = vld [vmem:[%s0 + $0x34] sm:$0x1]
  %v3129 = vld [vmem:[%s0 + $0x3c] sm:$0x1]
  %v3130 = vld [vmem:[%s0 + $0x4c] sm:$0x1]
  %v3131 = vld [vmem:[%s0 + $0x54] sm:$0x1]
  %v3132 = vld [vmem:[%s0 + $0x5c] sm:$0x1]
  %v3133 = vld [vmem:[%s0 + $0x64] sm:$0x1]
  %v3134 = vld [vmem:[%s0 + $0x6c] sm:$0x1]
  %v3135 = vld [vmem:[%s0 + $0x74] sm:$0x1]
  %v3136 = vld [vmem:[%s0 + $0x7c] sm:$0x1]
  %v3137 = vld [vmem:[%s0 + $0x84] sm:$0x1]
  %v3138 = vunpack.c.l.bf16 %v3122
  %v3139 = vunpack.c.l.bf16 %v3123
  %v3140 = vunpack.c.l.bf16 %v3124
  %v3141 = vunpack.c.l.bf16 %v3125
  %v3142 = vunpack.c.l.bf16 %v3126
  %v3143 = vunpack.c.l.bf16 %v3127
  %v3144 = vunpack.c.l.bf16 %v3128
  %v3145 = vunpack.c.l.bf16 %v3129
  %v3146 = vunpack.c.l.bf16 %v3130
  %v3147 = vunpack.c.l.bf16 %v3131
  %v3148 = vunpack.c.l.bf16 %v3132
  %v3149 = vunpack.c.l.bf16 %v3133
  %v3150 = vunpack.c.l.bf16 %v3134
  %v3151 = vunpack.c.l.bf16 %v3135
  %v3152 = vunpack.c.l.bf16 %v3136
  %v3153 = vunpack.c.l.bf16 %v3137
  %vm3186 = vcmask 1046528
  %v3187 = vrot.slane %v3106, 1
  %v3188 = vrot.slane %v3138, 1
  %v3189 = vsel %vm3186, %v3187, %v3188
  %v3190 = vrot.slane %v3107, 1
  %v3191 = vrot.slane %v3139, 1
  %v3192 = vsel %vm3186, %v3190, %v3191
  %v3193 = vrot.slane %v3108, 1
  %v3194 = vrot.slane %v3140, 1
  %v3195 = vsel %vm3186, %v3193, %v3194
  %v3196 = vrot.slane %v3109, 1
  %v3197 = vrot.slane %v3141, 1
  %v3198 = vsel %vm3186, %v3196, %v3197
  %v3199 = vrot.slane %v3110, 1
  %v3200 = vrot.slane %v3142, 1
  %v3201 = vsel %vm3186, %v3199, %v3200
  %v3202 = vrot.slane %v3111, 1
  %v3203 = vrot.slane %v3143, 1
  %v3204 = vsel %vm3186, %v3202, %v3203
  %v3205 = vrot.slane %v3112, 1
  %v3206 = vrot.slane %v3144, 1
  %v3207 = vsel %vm3186, %v3205, %v3206
  %v3208 = vrot.slane %v3113, 1
  %v3209 = vrot.slane %v3145, 1
  %v3210 = vsel %vm3186, %v3208, %v3209
  %v3211 = vrot.slane %v3114, 1
  %v3212 = vrot.slane %v3146, 1
  %v3213 = vsel %vm3186, %v3211, %v3212
  %v3214 = vrot.slane %v3115, 1
  %v3215 = vrot.slane %v3147, 1
  %v3216 = vsel %vm3186, %v3214, %v3215
  %v3217 = vrot.slane %v3116, 1
  %v3218 = vrot.slane %v3148, 1
  %v3219 = vsel %vm3186, %v3217, %v3218
  %v3220 = vrot.slane %v3117, 1
  %v3221 = vrot.slane %v3149, 1
  %v3222 = vsel %vm3186, %v3220, %v3221
  %v3223 = vrot.slane %v3118, 1
  %v3224 = vrot.slane %v3150, 1
  %v3225 = vsel %vm3186, %v3223, %v3224
  %v3226 = vrot.slane %v3119, 1
  %v3227 = vrot.slane %v3151, 1
  %v3228 = vsel %vm3186, %v3226, %v3227
  %v3229 = vrot.slane %v3120, 1
  %v3230 = vrot.slane %v3152, 1
  %v3231 = vsel %vm3186, %v3229, %v3230
  %v3232 = vrot.slane %v3121, 1
  %v3233 = vrot.slane %v3153, 1
  %v3234 = vsel %vm3186, %v3232, %v3233
  %3235 = vrot.lane.b32.xlu0 %v3189, 4
  %v3236 = vpop.permute.xlu0 %3235
  %3237 = vrot.lane.b32.xlu0 %v3192, 4
  %v3238 = vpop.permute.xlu0 %3237
  %3239 = vrot.lane.b32.xlu0 %v3195, 4
  %v3240 = vpop.permute.xlu0 %3239
  %3241 = vrot.lane.b32.xlu0 %v3198, 4
  %v3242 = vpop.permute.xlu0 %3241
  %3243 = vrot.lane.b32.xlu0 %v3201, 4
  %v3244 = vpop.permute.xlu0 %3243
  %3245 = vrot.lane.b32.xlu0 %v3204, 4
  %v3246 = vpop.permute.xlu0 %3245
  %3247 = vrot.lane.b32.xlu0 %v3207, 4
  %v3248 = vpop.permute.xlu0 %3247
  %3249 = vrot.lane.b32.xlu0 %v3210, 4
  %v3250 = vpop.permute.xlu0 %3249
  %3251 = vrot.lane.b32.xlu0 %v3213, 4
  %v3252 = vpop.permute.xlu0 %3251
  %3253 = vrot.lane.b32.xlu0 %v3216, 4
  %v3254 = vpop.permute.xlu0 %3253
  %3255 = vrot.lane.b32.xlu0 %v3219, 4
  %v3256 = vpop.permute.xlu0 %3255
  %3257 = vrot.lane.b32.xlu0 %v3222, 4
  %v3258 = vpop.permute.xlu0 %3257
  %3259 = vrot.lane.b32.xlu0 %v3225, 4
  %v3260 = vpop.permute.xlu0 %3259
  %3261 = vrot.lane.b32.xlu0 %v3228, 4
  %v3262 = vpop.permute.xlu0 %3261
  %3263 = vrot.lane.b32.xlu0 %v3231, 4
  %v3264 = vpop.permute.xlu0 %3263
  %3265 = vrot.lane.b32.xlu0 %v3234, 4
  %v3266 = vpop.permute.xlu0 %3265
  %v3283 = vadd.f32 %v3106, %v3236
  %v3284 = vadd.f32 %v3107, %v3238
  %v3285 = vadd.f32 %v3108, %v3240
  %v3286 = vadd.f32 %v3109, %v3242
  %v3287 = vadd.f32 %v3110, %v3244
  %v3288 = vadd.f32 %v3111, %v3246
  %v3289 = vadd.f32 %v3112, %v3248
  %v3290 = vadd.f32 %v3113, %v3250
  %v3291 = vadd.f32 %v3114, %v3252
  %v3292 = vadd.f32 %v3115, %v3254
  %v3293 = vadd.f32 %v3116, %v3256
  %v3294 = vadd.f32 %v3117, %v3258
  %v3295 = vadd.f32 %v3118, %v3260
  %v3296 = vadd.f32 %v3119, %v3262
  %v3297 = vadd.f32 %v3120, %v3264
  %v3298 = vadd.f32 %v3121, %v3266
  %v3299 = vld [vmem:[%s50] sm:$0xf]
  %v3300 = vld [vmem:[%s50 + $0x8] sm:$0xf]
  %v3301 = vld [vmem:[%s50 + $0x10] sm:$0xf]
  %v3302 = vld [vmem:[%s50 + $0x18] sm:$0xf]
  %v3303 = vld [vmem:[%s50 + $0x20] sm:$0xf]
  %v3304 = vld [vmem:[%s50 + $0x28] sm:$0xf]
  %v3305 = vld [vmem:[%s50 + $0x30] sm:$0xf]
  %v3306 = vld [vmem:[%s50 + $0x38] sm:$0xf]
  %v3307 = vld [vmem:[%s50 + $0x48] sm:$0xf]
  %v3308 = vld [vmem:[%s50 + $0x50] sm:$0xf]
  %v3309 = vld [vmem:[%s50 + $0x58] sm:$0xf]
  %v3310 = vld [vmem:[%s50 + $0x60] sm:$0xf]
  %v3311 = vld [vmem:[%s50 + $0x68] sm:$0xf]
  %v3312 = vld [vmem:[%s50 + $0x70] sm:$0xf]
  %v3313 = vld [vmem:[%s50 + $0x78] sm:$0xf]
  %v3314 = vld [vmem:[%s50 + $0x80] sm:$0xf]
  %v3315 = vunpack.c.l.bf16 %v3299
  %v3316 = vunpack.c.l.bf16 %v3300
  %v3317 = vunpack.c.l.bf16 %v3301
  %v3318 = vunpack.c.l.bf16 %v3302
  %v3319 = vunpack.c.l.bf16 %v3303
  %v3320 = vunpack.c.l.bf16 %v3304
  %v3321 = vunpack.c.l.bf16 %v3305
  %v3322 = vunpack.c.l.bf16 %v3306
  %v3323 = vunpack.c.l.bf16 %v3307
  %v3324 = vunpack.c.l.bf16 %v3308
  %v3325 = vunpack.c.l.bf16 %v3309
  %v3326 = vunpack.c.l.bf16 %v3310
  %v3327 = vunpack.c.l.bf16 %v3311
  %v3328 = vunpack.c.l.bf16 %v3312
  %v3329 = vunpack.c.l.bf16 %v3313
  %v3330 = vunpack.c.l.bf16 %v3314
  %3347 = vrot.lane.b32.xlu0 %v3315, 8
  %v3348 = vpop.permute.xlu0 %3347
  %3349 = vrot.lane.b32.xlu0 %v3316, 8
  %v3350 = vpop.permute.xlu0 %3349
  %3351 = vrot.lane.b32.xlu0 %v3317, 8
  %v3352 = vpop.permute.xlu0 %3351
  %3353 = vrot.lane.b32.xlu0 %v3318, 8
  %v3354 = vpop.permute.xlu0 %3353
  %3355 = vrot.lane.b32.xlu0 %v3319, 8
  %v3356 = vpop.permute.xlu0 %3355
  %3357 = vrot.lane.b32.xlu0 %v3320, 8
  %v3358 = vpop.permute.xlu0 %3357
  %3359 = vrot.lane.b32.xlu0 %v3321, 8
  %v3360 = vpop.permute.xlu0 %3359
  %3361 = vrot.lane.b32.xlu0 %v3322, 8
  %v3362 = vpop.permute.xlu0 %3361
  %3363 = vrot.lane.b32.xlu0 %v3323, 8
  %v3364 = vpop.permute.xlu0 %3363
  %3365 = vrot.lane.b32.xlu0 %v3324, 8
  %v3366 = vpop.permute.xlu0 %3365
  %3367 = vrot.lane.b32.xlu0 %v3325, 8
  %v3368 = vpop.permute.xlu0 %3367
  %3369 = vrot.lane.b32.xlu0 %v3326, 8
  %v3370 = vpop.permute.xlu0 %3369
  %3371 = vrot.lane.b32.xlu0 %v3327, 8
  %v3372 = vpop.permute.xlu0 %3371
  %3373 = vrot.lane.b32.xlu0 %v3328, 8
  %v3374 = vpop.permute.xlu0 %3373
  %3375 = vrot.lane.b32.xlu0 %v3329, 8
  %v3376 = vpop.permute.xlu0 %3375
  %3377 = vrot.lane.b32.xlu0 %v3330, 8
  %v3378 = vpop.permute.xlu0 %3377
  %v3395 = vadd.f32 %v3283, %v3348
  %v3396 = vadd.f32 %v3284, %v3350
  %v3397 = vadd.f32 %v3285, %v3352
  %v3398 = vadd.f32 %v3286, %v3354
  %v3399 = vadd.f32 %v3287, %v3356
  %v3400 = vadd.f32 %v3288, %v3358
  %v3401 = vadd.f32 %v3289, %v3360
  %v3402 = vadd.f32 %v3290, %v3362
  %v3403 = vadd.f32 %v3291, %v3364
  %v3404 = vadd.f32 %v3292, %v3366
  %v3405 = vadd.f32 %v3293, %v3368
  %v3406 = vadd.f32 %v3294, %v3370
  %v3407 = vadd.f32 %v3295, %v3372
  %v3408 = vadd.f32 %v3296, %v3374
  %v3409 = vadd.f32 %v3297, %v3376
  %v3410 = vadd.f32 %v3298, %v3378
  %v3411 = vld [vmem:[%s50 + $0x4] sm:$0x1]
  %v3412 = vld [vmem:[%s50 + $0xc] sm:$0x1]
  %v3413 = vld [vmem:[%s50 + $0x14] sm:$0x1]
  %v3414 = vld [vmem:[%s50 + $0x1c] sm:$0x1]
  %v3415 = vld [vmem:[%s50 + $0x24] sm:$0x1]
  %v3416 = vld [vmem:[%s50 + $0x2c] sm:$0x1]
  %v3417 = vld [vmem:[%s50 + $0x34] sm:$0x1]
  %v3418 = vld [vmem:[%s50 + $0x3c] sm:$0x1]
  %v3419 = vld [vmem:[%s50 + $0x4c] sm:$0x1]
  %v3420 = vld [vmem:[%s50 + $0x54] sm:$0x1]
  %v3421 = vld [vmem:[%s50 + $0x5c] sm:$0x1]
  %v3422 = vld [vmem:[%s50 + $0x64] sm:$0x1]
  %v3423 = vld [vmem:[%s50 + $0x6c] sm:$0x1]
  %v3424 = vld [vmem:[%s50 + $0x74] sm:$0x1]
  %v3425 = vld [vmem:[%s50 + $0x7c] sm:$0x1]
  %v3426 = vld [vmem:[%s50 + $0x84] sm:$0x1]
  %v3427 = vunpack.c.l.bf16 %v3411
  %v3428 = vunpack.c.l.bf16 %v3412
  %v3429 = vunpack.c.l.bf16 %v3413
  %v3430 = vunpack.c.l.bf16 %v3414
  %v3431 = vunpack.c.l.bf16 %v3415
  %v3432 = vunpack.c.l.bf16 %v3416
  %v3433 = vunpack.c.l.bf16 %v3417
  %v3434 = vunpack.c.l.bf16 %v3418
  %v3435 = vunpack.c.l.bf16 %v3419
  %v3436 = vunpack.c.l.bf16 %v3420
  %v3437 = vunpack.c.l.bf16 %v3421
  %v3438 = vunpack.c.l.bf16 %v3422
  %v3439 = vunpack.c.l.bf16 %v3423
  %v3440 = vunpack.c.l.bf16 %v3424
  %v3441 = vunpack.c.l.bf16 %v3425
  %v3442 = vunpack.c.l.bf16 %v3426
  %v3459 = vrot.slane %v3315, 1
  %v3460 = vrot.slane %v3427, 1
  %v3461 = vsel %vm3186, %v3459, %v3460
  %v3462 = vrot.slane %v3316, 1
  %v3463 = vrot.slane %v3428, 1
  %v3464 = vsel %vm3186, %v3462, %v3463
  %v3465 = vrot.slane %v3317, 1
  %v3466 = vrot.slane %v3429, 1
  %v3467 = vsel %vm3186, %v3465, %v3466
  %v3468 = vrot.slane %v3318, 1
  %v3469 = vrot.slane %v3430, 1
  %v3470 = vsel %vm3186, %v3468, %v3469
  %v3471 = vrot.slane %v3319, 1
  %v3472 = vrot.slane %v3431, 1
  %v3473 = vsel %vm3186, %v3471, %v3472
  %v3474 = vrot.slane %v3320, 1
  %v3475 = vrot.slane %v3432, 1
  %v3476 = vsel %vm3186, %v3474, %v3475
  %v3477 = vrot.slane %v3321, 1
  %v3478 = vrot.slane %v3433, 1
  %v3479 = vsel %vm3186, %v3477, %v3478
  %v3480 = vrot.slane %v3322, 1
  %v3481 = vrot.slane %v3434, 1
  %v3482 = vsel %vm3186, %v3480, %v3481
  %v3483 = vrot.slane %v3323, 1
  %v3484 = vrot.slane %v3435, 1
  %v3485 = vsel %vm3186, %v3483, %v3484
  %v3486 = vrot.slane %v3324, 1
  %v3487 = vrot.slane %v3436, 1
  %v3488 = vsel %vm3186, %v3486, %v3487
  %v3489 = vrot.slane %v3325, 1
  %v3490 = vrot.slane %v3437, 1
  %v3491 = vsel %vm3186, %v3489, %v3490
  %v3492 = vrot.slane %v3326, 1
  %v3493 = vrot.slane %v3438, 1
  %v3494 = vsel %vm3186, %v3492, %v3493
  %v3495 = vrot.slane %v3327, 1
  %v3496 = vrot.slane %v3439, 1
  %v3497 = vsel %vm3186, %v3495, %v3496
  %v3498 = vrot.slane %v3328, 1
  %v3499 = vrot.slane %v3440, 1
  %v3500 = vsel %vm3186, %v3498, %v3499
  %v3501 = vrot.slane %v3329, 1
  %v3502 = vrot.slane %v3441, 1
  %v3503 = vsel %vm3186, %v3501, %v3502
  %v3504 = vrot.slane %v3330, 1
  %v3505 = vrot.slane %v3442, 1
  %v3506 = vsel %vm3186, %v3504, %v3505
  %3507 = vrot.lane.b32.xlu0 %v3461, 12
  %v3508 = vpop.permute.xlu0 %3507
  %3509 = vrot.lane.b32.xlu0 %v3464, 12
  %v3510 = vpop.permute.xlu0 %3509
  %3511 = vrot.lane.b32.xlu0 %v3467, 12
  %v3512 = vpop.permute.xlu0 %3511
  %3513 = vrot.lane.b32.xlu0 %v3470, 12
  %v3514 = vpop.permute.xlu0 %3513
  %3515 = vrot.lane.b32.xlu0 %v3473, 12
  %v3516 = vpop.permute.xlu0 %3515
  %3517 = vrot.lane.b32.xlu0 %v3476, 12
  %v3518 = vpop.permute.xlu0 %3517
  %3519 = vrot.lane.b32.xlu0 %v3479, 12
  %v3520 = vpop.permute.xlu0 %3519
  %3521 = vrot.lane.b32.xlu0 %v3482, 12
  %v3522 = vpop.permute.xlu0 %3521
  %3523 = vrot.lane.b32.xlu0 %v3485, 12
  %v3524 = vpop.permute.xlu0 %3523
  %3525 = vrot.lane.b32.xlu0 %v3488, 12
  %v3526 = vpop.permute.xlu0 %3525
  %3527 = vrot.lane.b32.xlu0 %v3491, 12
  %v3528 = vpop.permute.xlu0 %3527
  %3529 = vrot.lane.b32.xlu0 %v3494, 12
  %v3530 = vpop.permute.xlu0 %3529
  %3531 = vrot.lane.b32.xlu0 %v3497, 12
  %v3532 = vpop.permute.xlu0 %3531
  %3533 = vrot.lane.b32.xlu0 %v3500, 12
  %v3534 = vpop.permute.xlu0 %3533
  %3535 = vrot.lane.b32.xlu0 %v3503, 12
  %v3536 = vpop.permute.xlu0 %3535
  %3537 = vrot.lane.b32.xlu0 %v3506, 12
  %v3538 = vpop.permute.xlu0 %3537
  %v3555 = vadd.f32 %v3395, %v3508
  %v3556 = vadd.f32 %v3396, %v3510
  %v3557 = vadd.f32 %v3397, %v3512
  %v3558 = vadd.f32 %v3398, %v3514
  %v3559 = vadd.f32 %v3399, %v3516
  %v3560 = vadd.f32 %v3400, %v3518
  %v3561 = vadd.f32 %v3401, %v3520
  %v3562 = vadd.f32 %v3402, %v3522
  %v3563 = vadd.f32 %v3403, %v3524
  %v3564 = vadd.f32 %v3404, %v3526
  %v3565 = vadd.f32 %v3405, %v3528
  %v3566 = vadd.f32 %v3406, %v3530
  %v3567 = vadd.f32 %v3407, %v3532
  %v3568 = vadd.f32 %v3408, %v3534
  %v3569 = vadd.f32 %v3409, %v3536
  %v3570 = vadd.f32 %v3410, %v3538
  %v3571 = vmul.f32 %v3555, 0.25
  %v3572 = vmul.f32 %v3556, 0.25
  %v3573 = vmul.f32 %v3557, 0.25
  %v3574 = vmul.f32 %v3558, 0.25
  %v3575 = vmul.f32 %v3559, 0.25
  %v3576 = vmul.f32 %v3560, 0.25
  %v3577 = vmul.f32 %v3561, 0.25
  %v3578 = vmul.f32 %v3562, 0.25
  %v3579 = vmul.f32 %v3563, 0.25
  %v3580 = vmul.f32 %v3564, 0.25
  %v3581 = vmul.f32 %v3565, 0.25
  %v3582 = vmul.f32 %v3566, 0.25
  %v3583 = vmul.f32 %v3567, 0.25
  %v3584 = vmul.f32 %v3568, 0.25
  %v3585 = vmul.f32 %v3569, 0.25
  %v3586 = vmul.f32 %v3570, 0.25
  %v3587 = vpack.c.bf16 %v3572, %v3571
  %v3588 = vpack.c.bf16 %v3574, %v3573
  %v3589 = vpack.c.bf16 %v3576, %v3575
  %v3590 = vpack.c.bf16 %v3578, %v3577
  %v3591 = vpack.c.bf16 %v3580, %v3579
  %v3592 = vpack.c.bf16 %v3582, %v3581
  %v3593 = vpack.c.bf16 %v3584, %v3583
  %v3594 = vpack.c.bf16 %v3586, %v3585
  %v3595 = vld [vmem:[%s3] sm:$0x3]
  %3604 = vrot.lane.b32.xlu0 %v3587, 116
  %v3605 = vpop.permute.xlu0 %3604
  %3606 = vrot.lane.b32.xlu0 %v3588, 116
  %v3607 = vpop.permute.xlu0 %3606
  %3608 = vrot.lane.b32.xlu0 %v3589, 116
  %v3609 = vpop.permute.xlu0 %3608
  %3610 = vrot.lane.b32.xlu0 %v3590, 116
  %v3611 = vpop.permute.xlu0 %3610
  %3612 = vrot.lane.b32.xlu0 %v3591, 116
  %v3613 = vpop.permute.xlu0 %3612
  %3614 = vrot.lane.b32.xlu0 %v3592, 116
  %v3615 = vpop.permute.xlu0 %3614
  %3616 = vrot.lane.b32.xlu0 %v3593, 116
  %v3617 = vpop.permute.xlu0 %3616
  %3618 = vrot.lane.b32.xlu0 %v3594, 116
  %v3619 = vpop.permute.xlu0 %3618
  %vm3620 = vcmask 31744
  %v3622 = vsel %vm3620, %v3605, 0
  %v3625 = vsel %vm3620, %v3607, 0
  %v3628 = vsel %vm3620, %v3609, 0
  %v3631 = vsel %vm3620, %v3611, 0
  %v3634 = vsel %vm3620, %v3613, 0
  %v3637 = vsel %vm3620, %v3615, 0
  %v3640 = vsel %vm3620, %v3617, 0
  %v3643 = vsel %vm3620, %v3619, 0
  %vm3645 = vcmask 1041408
  %v3647 = vsel %vm3645, %v3595, 0
  %3649 = vmatprep.subr.bf16.mxu0 0
  %3650 = vmatpush1.bf16.msra.mxu0 %v3647
  %3651 = vmatprep.subr.bf16.mxu0 0
  %3652 = vmatpush1.bf16.msra.mxu0 0
  %3653 = vmatprep.subr.bf16.mxu0 0
  %3654 = vmatpush1.bf16.msra.mxu0 0
  %3655 = vmatprep.subr.bf16.mxu0 0
  %3656 = vmatpush1.bf16.msra.mxu0 0
  %3657 = vmatprep.subr.bf16.mxu0 0
  %3658 = vmatpush1.bf16.msra.mxu0 0
  %3659 = vmatprep.subr.bf16.mxu0 0
  %3660 = vmatpush1.bf16.msra.mxu0 0
  %3661 = vmatprep.subr.bf16.mxu0 0
  %3662 = vmatpush1.bf16.msra.mxu0 0
  %3663 = vmatprep.subr.bf16.mxu0 0
  %3664 = vmatpush1.bf16.msra.mxu0 0
  %3665 = vmatprep.subr.bf16.mxu0 0
  %3666 = vmatpush1.bf16.msra.mxu0 0
  %3667 = vmatprep.subr.bf16.mxu0 0
  %3668 = vmatpush1.bf16.msra.mxu0 0
  %3669 = vmatprep.subr.bf16.mxu0 0
  %3670 = vmatpush1.bf16.msra.mxu0 0
  %3671 = vmatprep.subr.bf16.mxu0 0
  %3672 = vmatpush1.bf16.msra.mxu0 0
  %3673 = vmatprep.subr.bf16.mxu0 0
  %3674 = vmatpush1.bf16.msra.mxu0 0
  %3675 = vmatprep.subr.bf16.mxu0 0
  %3676 = vmatpush1.bf16.msra.mxu0 0
  %3677 = vmatprep.subr.bf16.mxu0 0
  %3678 = vmatpush1.bf16.msra.mxu0 0
  %3679 = vmatprep.subr.bf16.mxu0 0
  %3680 = vmatpush1.bf16.msra.mxu0 0
  %3681 = vmatprep.mubr.bf16.mxu0 0
  %3682 = vmatmul.mubr.bf16.gmra.mrb[0].mxu0 %v3622
  %v3683 = vpop.f32.mrb[0].mxu0
  %v3684 = vadd.f32 0.0, %v3683
  %v3685 = vpop.f32.mrb[0].mxu0
  %v3686 = vpop.f32.mrb[0].mxu0
  %v3687 = vadd.f32 0.0, %v3686
  %v3688 = vpop.f32.mrb[0].mxu0
  %3689 = vmatprep.mubr.bf16.mxu0 0
  %3690 = vmatmul.mubr.bf16.gmra.mrb[0].mxu0 %v3625
  %v3691 = vpop.f32.mrb[0].mxu0
  %v3692 = vadd.f32 0.0, %v3691
  %v3693 = vpop.f32.mrb[0].mxu0
  %v3694 = vpop.f32.mrb[0].mxu0
  %v3695 = vadd.f32 0.0, %v3694
  %v3696 = vpop.f32.mrb[0].mxu0
  %3697 = vmatprep.mubr.bf16.mxu0 0
  %3698 = vmatmul.mubr.bf16.gmra.mrb[0].mxu0 %v3628
  %v3699 = vpop.f32.mrb[0].mxu0
  %v3700 = vadd.f32 0.0, %v3699
  %v3701 = vpop.f32.mrb[0].mxu0
  %v3702 = vpop.f32.mrb[0].mxu0
  %v3703 = vadd.f32 0.0, %v3702
  %v3704 = vpop.f32.mrb[0].mxu0
  %3705 = vmatprep.mubr.bf16.mxu0 0
  %3706 = vmatmul.mubr.bf16.gmra.mrb[0].mxu0 %v3631
  %v3707 = vpop.f32.mrb[0].mxu0
  %v3708 = vadd.f32 0.0, %v3707
  %v3709 = vpop.f32.mrb[0].mxu0
  %v3710 = vpop.f32.mrb[0].mxu0
  %v3711 = vadd.f32 0.0, %v3710
  %v3712 = vpop.f32.mrb[0].mxu0
  %3713 = vmatprep.mubr.bf16.mxu0 0
  %3714 = vmatmul.mubr.bf16.gmra.mrb[0].mxu0 %v3634
  %v3715 = vpop.f32.mrb[0].mxu0
  %v3716 = vadd.f32 0.0, %v3715
  %v3717 = vpop.f32.mrb[0].mxu0
  %v3718 = vpop.f32.mrb[0].mxu0
  %v3719 = vadd.f32 0.0, %v3718
  %v3720 = vpop.f32.mrb[0].mxu0
  %3721 = vmatprep.mubr.bf16.mxu0 0
  %3722 = vmatmul.mubr.bf16.gmra.mrb[0].mxu0 %v3637
  %v3723 = vpop.f32.mrb[0].mxu0
  %v3724 = vadd.f32 0.0, %v3723
  %v3725 = vpop.f32.mrb[0].mxu0
  %v3726 = vpop.f32.mrb[0].mxu0
  %v3727 = vadd.f32 0.0, %v3726
  %v3728 = vpop.f32.mrb[0].mxu0
  %3729 = vmatprep.mubr.bf16.mxu0 0
  %3730 = vmatmul.mubr.bf16.gmra.mrb[0].mxu0 %v3640
  %v3731 = vpop.f32.mrb[0].mxu0
  %v3732 = vadd.f32 0.0, %v3731
  %v3733 = vpop.f32.mrb[0].mxu0
  %v3734 = vpop.f32.mrb[0].mxu0
  %v3735 = vadd.f32 0.0, %v3734
  %v3736 = vpop.f32.mrb[0].mxu0
  %3737 = vmatprep.mubr.bf16.mxu0 0
  %3738 = vmatmul.mubr.bf16.gmra.mrb[0].mxu0 %v3643
  %v3739 = vpop.f32.mrb[0].mxu0
  %v3740 = vadd.f32 0.0, %v3739
  %v3741 = vpop.f32.mrb[0].mxu0
  %v3742 = vpop.f32.mrb[0].mxu0
  %v3743 = vadd.f32 0.0, %v3742
  %v3744 = vpop.f32.mrb[0].mxu0
  %3745 = vdwg.mxu0
  %v3746 = vmul.f32 %v3684, 0.2
  %v3747 = vmul.f32 %v3687, 0.2
  %v3748 = vmul.f32 %v3692, 0.2
  %v3749 = vmul.f32 %v3695, 0.2
  %v3750 = vmul.f32 %v3700, 0.2
  %v3751 = vmul.f32 %v3703, 0.2
  %v3752 = vmul.f32 %v3708, 0.2
  %v3753 = vmul.f32 %v3711, 0.2
  %v3754 = vmul.f32 %v3716, 0.2
  %v3755 = vmul.f32 %v3719, 0.2
  %v3756 = vmul.f32 %v3724, 0.2
  %v3757 = vmul.f32 %v3727, 0.2
  %v3758 = vmul.f32 %v3732, 0.2
  %v3759 = vmul.f32 %v3735, 0.2
  %v3760 = vmul.f32 %v3740, 0.2
  %v3761 = vmul.f32 %v3743, 0.2
  %v3762 = vmax.f32 %v3684, %v3746
  %v3763 = vmax.f32 %v3687, %v3747
  %v3764 = vmax.f32 %v3692, %v3748
  %v3765 = vmax.f32 %v3695, %v3749
  %v3766 = vmax.f32 %v3700, %v3750
  %v3767 = vmax.f32 %v3703, %v3751
  %v3768 = vmax.f32 %v3708, %v3752
  %v3769 = vmax.f32 %v3711, %v3753
  %v3770 = vmax.f32 %v3716, %v3754
  %v3771 = vmax.f32 %v3719, %v3755
  %v3772 = vmax.f32 %v3724, %v3756
  %v3773 = vmax.f32 %v3727, %v3757
  %v3774 = vmax.f32 %v3732, %v3758
  %v3775 = vmax.f32 %v3735, %v3759
  %v3776 = vmax.f32 %v3740, %v3760
  %v3777 = vmax.f32 %v3743, %v3761
  %v3778 = vadd.f32 %v3074, %v3762
  %v3779 = vadd.f32 %v3075, %v3763
  %v3780 = vadd.f32 %v3076, %v3764
  %v3781 = vadd.f32 %v3077, %v3765
  %v3782 = vadd.f32 %v3078, %v3766
  %v3783 = vadd.f32 %v3079, %v3767
  %v3784 = vadd.f32 %v3080, %v3768
  %v3785 = vadd.f32 %v3081, %v3769
  %v3786 = vadd.f32 %v3082, %v3770
  %v3787 = vadd.f32 %v3083, %v3771
  %v3788 = vadd.f32 %v3084, %v3772
  %v3789 = vadd.f32 %v3085, %v3773
  %v3790 = vadd.f32 %v3086, %v3774
  %v3791 = vadd.f32 %v3087, %v3775
  %v3792 = vadd.f32 %v3088, %v3776
  %v3793 = vadd.f32 %v3089, %v3777
  %v3794 = vmul.f32 %v3778, 0.5
  %v3795 = vmul.f32 %v3779, 0.5
  %v3796 = vmul.f32 %v3780, 0.5
  %v3797 = vmul.f32 %v3781, 0.5
  %v3798 = vmul.f32 %v3782, 0.5
  %v3799 = vmul.f32 %v3783, 0.5
  %v3800 = vmul.f32 %v3784, 0.5
  %v3801 = vmul.f32 %v3785, 0.5
  %v3802 = vmul.f32 %v3786, 0.5
  %v3803 = vmul.f32 %v3787, 0.5
  %v3804 = vmul.f32 %v3788, 0.5
  %v3805 = vmul.f32 %v3789, 0.5
  %v3806 = vmul.f32 %v3790, 0.5
  %v3807 = vmul.f32 %v3791, 0.5
  %v3808 = vmul.f32 %v3792, 0.5
  %v3809 = vmul.f32 %v3793, 0.5
  %3810 = vxpose.xlu0.b32.start [1/16] %v3794, 128
  %3811 = vxpose.xlu0.b32.cont [2/16] %v3795, 128
  %3812 = vxpose.xlu0.b32.cont [3/16] %v3796, 128
  %3813 = vxpose.xlu0.b32.cont [4/16] %v3797, 128
  %3814 = vxpose.xlu0.b32.cont [5/16] %v3798, 128
  %3815 = vxpose.xlu0.b32.cont [6/16] %v3799, 128
  %3816 = vxpose.xlu0.b32.cont [7/16] %v3800, 128
  %3817 = vxpose.xlu0.b32.cont [8/16] %v3801, 128
  %3818 = vxpose.xlu0.b32.cont [9/16] %v3802, 128
  %3819 = vxpose.xlu0.b32.cont [10/16] %v3803, 128
  %3820 = vxpose.xlu0.b32.cont [11/16] %v3804, 128
  %3821 = vxpose.xlu0.b32.cont [12/16] %v3805, 128
  %3822 = vxpose.xlu0.b32.cont [13/16] %v3806, 128
  %3823 = vxpose.xlu0.b32.cont [14/16] %v3807, 128
  %3824 = vxpose.xlu0.b32.cont [15/16] %v3808, 128
  %3825 = vxpose.xlu0.b32.end [16/16] %v3809, 128
  %v3826 = vpop.trf.xlu0
  %v3827 = vpop.trf.xlu0
  %v3828 = vpop.trf.xlu0
  %v3829 = vpop.trf.xlu0
  %v3830 = vpop.trf.xlu0
  %v3831 = vpop.trf.xlu0
  %v3832 = vpop.trf.xlu0
  %v3833 = vpop.trf.xlu0
  %v3834 = vpop.trf.xlu0
  %v3835 = vpop.trf.xlu0
  %v3836 = vpop.trf.xlu0
  %v3837 = vpop.trf.xlu0
  %v3838 = vpop.trf.xlu0
  %v3839 = vpop.trf.xlu0
  %v3840 = vpop.trf.xlu0
  %v3841 = vpop.trf.xlu0
  %3842 = vst [vmem:[%s4] sm:$0xff] %v3826
  // Predicated region
  $region18: #{down_block_comp.1} parent=0 // pred_check
    _
  $region19: #{down_block_comp.1} parent=0 // pred_check_branch
    %3844 = sbr.rel (0) target = $region21
  $region20: #{down_block_comp.1} parent=0 // pred_region
    _
  $region21: #{down_block_comp.1} parent=0 // pred_fallthru
    _
  // Predicated region
  $region22: #{down_block_comp.1} parent=0 // pred_check
    _
  $region23: #{down_block_comp.1} parent=0 // pred_check_branch
    %3846 = sbr.rel (0) target = $region25
  $region24: #{down_block_comp.1} parent=0 // pred_region
    _
  $region25: #{down_block_comp.1} parent=0 // pred_fallthru
    _

</llo_original>
